<compile_context>
chip_gen: v6e
topology: v6e:2x2x1
jax: 0.10.0
libtpu: 0.0.40
codegen_flags: <defaults>
</compile_context>

<pallas_src>
import functools

import jax
import jax.numpy as jnp
from jax.experimental import pallas as pl
from jax.experimental.pallas import tpu as pltpu


def _round_up(x, m):
    return (x + m - 1) // m * m


# ---------------------------------------------------------------------------
# Kernel 1: batched input projection  gates_x[d] = x @ W_ih[d] + bias[d]
# grid = (2 directions, row tiles), both axes "parallel".
# ---------------------------------------------------------------------------
def _gates_proj_kernel(x_ref, w_ref, b_ref, o_ref):
    o_ref[0] = (jnp.dot(x_ref[...], w_ref[0],
                        preferred_element_type=jnp.float32) + b_ref[0])


# ---------------------------------------------------------------------------
# Kernel 2: recurrent chunk kernel with fused Linear head.
# grid = (2 directions ["parallel"], NC time chunks ["arbitrary"/sequential]).
# Recurrent state lives in VMEM scratch and persists across time chunks.
# ---------------------------------------------------------------------------
def _bilstm_chunk_kernel(gx_ref, len_ref, whh_ref, wlin_ref, y_ref,
                         h_st, c_st):
    d = pl.program_id(0)            # 0 = forward direction, 1 = backward
    cidx = pl.program_id(1)         # sequential chunk counter
    NC = pl.num_programs(1)
    TC = gx_ref.shape[1]
    Bp, Hp = h_st.shape

    @pl.when(cidx == 0)
    def _init():
        h_st[...] = jnp.zeros_like(h_st)
        c_st[...] = jnp.zeros_like(c_st)

    tb = cidx + d * (NC - 1 - 2 * cidx)       # chunk index in natural time
    rem = len_ref[...] - tb * TC              # (Bp, 1) int32: length rel. chunk

    def step(s, carry):
        h_prev, c_prev = carry
        r = s + d * (TC - 1 - 2 * s)          # row within chunk (rev. for bwd)
        # only the unavoidable sequential h-matmul stays in the loop
        gates = gx_ref[0, r] + jnp.dot(h_prev, whh_ref[0],
                                       preferred_element_type=jnp.float32)
        # each gate slice is a 128-lane-aligned full block (Hp % 128 == 0)
        i_g = jax.nn.sigmoid(gates[:, 0 * Hp:1 * Hp])
        f_g = jax.nn.sigmoid(gates[:, 1 * Hp:2 * Hp])
        g_g = jnp.tanh(gates[:, 2 * Hp:3 * Hp])
        o_g = jax.nn.sigmoid(gates[:, 3 * Hp:4 * Hp])
        c_new = f_g * c_prev + i_g * g_g
        h_new = o_g * jnp.tanh(c_new)
        mask = r < rem                        # (Bp, 1) bool, int compare
        h_out = jnp.where(mask, h_new, 0.0)   # packed-seq: 0 past length
        # fused Linear head: this direction's contribution, 128-lane-dense out
        y_ref[0, r] = jnp.dot(h_out, wlin_ref[0],
                              preferred_element_type=jnp.float32)
        return (jnp.where(mask, h_new, h_prev),   # freeze state past length
                jnp.where(mask, c_new, c_prev))

    h_fin, c_fin = jax.lax.fori_loop(0, TC, step, (h_st[...], c_st[...]),
                                     unroll=True)
    h_st[...] = h_fin
    c_st[...] = c_fin


# ---------------------------------------------------------------------------
# Wrapper (layout / parameter plumbing in plain JAX)
# ---------------------------------------------------------------------------
@functools.partial(jax.jit, static_argnames=("time_chunk",))
def bilstmp_forward(x, lengths, params, *, time_chunk=8):
    """x: (B, T, input_size) f32, lengths: (B,) int -> (B, T, output_size)."""
    B, T, D = x.shape
    H = params["whh_f"].shape[0]
    O = params["w_lin"].shape[1]
    Hp = _round_up(H, 128)                    # lane-aligned gate blocks
    Gp = 4 * Hp
    Op = _round_up(O, 128)                    # lane-dense output stores
    Bp = _round_up(B, 8)                      # sublane-aligned batch / state

    TC = int(time_chunk)
    T_pad = _round_up(T, TC)
    NC = T_pad // TC

    # ---- layout glue: time-major, batch padded to 8, time padded to TC ----
    x_tm = jnp.transpose(x, (1, 0, 2)).astype(jnp.float32)        # (T, B, D)
    x_tm = jnp.pad(x_tm, ((0, T_pad - T), (0, Bp - B), (0, 0)))   # (T', Bp, D)
    rows = T_pad * Bp
    x2 = x_tm.reshape(rows, D)

    TM = 256 if rows >= 256 else rows                             # row tile
    rows_pad = _round_up(rows, TM)
    if rows_pad != rows:
        x2 = jnp.pad(x2, ((0, rows_pad - rows), (0, 0)))

    # ---- direction-major stacked weights, padded to (Hp, 4*Hp, Op) ----
    # TODO(synk): cast weights to bfloat16 (keep f32 accumulation / cell state)
    # for production sizes; kept f32 here to match the f32 reference exactly.
    def pad_gcols(w):                          # (R, 4H) -> (R, 4*Hp), per gate
        R = w.shape[0]
        return jnp.pad(w.reshape(R, 4, H),
                       ((0, 0), (0, 0), (0, Hp - H))).reshape(R, Gp)

    wih = jnp.stack([pad_gcols(params["wih_f"]),
                     pad_gcols(params["wih_b"])])                 # (2, D, Gp)
    bia = jnp.stack([pad_gcols(params["b_f"]),
                     pad_gcols(params["b_b"])])                   # (2, 1, Gp)
    whh = jnp.stack([
        jnp.pad(pad_gcols(params["whh_f"]), ((0, Hp - H), (0, 0))),
        jnp.pad(pad_gcols(params["whh_b"]), ((0, Hp - H), (0, 0))),
    ])                                                            # (2, Hp, Gp)
    wlin = jnp.zeros((2, Hp, Op), jnp.float32)
    wlin = wlin.at[0, :H, :O].set(params["w_lin"][:H])
    wlin = wlin.at[1, :H, :O].set(params["w_lin"][H:])

    # ---- kernel 1: input projection for all timesteps, both directions ----
    gates = pl.pallas_call(
        _gates_proj_kernel,
        out_shape=jax.ShapeDtypeStruct((2, rows_pad, Gp), jnp.float32),
        grid_spec=pltpu.PrefetchScalarGridSpec(
            num_scalar_prefetch=0,
            grid=(2, rows_pad // TM),
            in_specs=[
                pl.BlockSpec((TM, D), lambda d, i: (i, 0)),
                pl.BlockSpec((1, D, Gp), lambda d, i: (d, 0, 0)),
                pl.BlockSpec((1, 1, Gp), lambda d, i: (d, 0, 0)),
            ],
            out_specs=pl.BlockSpec((1, TM, Gp), lambda d, i: (d, i, 0)),
        ),
        compiler_params=pltpu.CompilerParams(
            dimension_semantics=("parallel", "parallel")),
    )(x2, wih, bia)

    gates = gates[:, :rows].reshape(2, T_pad, Bp, Gp)             # (2,T',Bp,Gp)

    # ---- kernel 2: sequential recurrence + fused linear head ----
    lens = jnp.pad(lengths.astype(jnp.int32), (0, Bp - B)).reshape(Bp, 1)

    y_pad = pl.pallas_call(
        _bilstm_chunk_kernel,
        out_shape=jax.ShapeDtypeStruct((2, T_pad, Bp, Op), jnp.float32),
        grid_spec=pltpu.PrefetchScalarGridSpec(
            num_scalar_prefetch=0,
            grid=(2, NC),
            in_specs=[
                # gates: fwd reads chunk c, bwd reads chunk NC-1-c
                pl.BlockSpec((1, TC, Bp, Gp),
                             lambda d, c: (d, c + d * (NC - 1 - 2 * c), 0, 0)),
                pl.BlockSpec((Bp, 1), lambda d, c: (0, 0)),         # lengths
                pl.BlockSpec((1, Hp, Gp), lambda d, c: (d, 0, 0)),  # W_hh[d]
                pl.BlockSpec((1, Hp, Op), lambda d, c: (d, 0, 0)),  # W_lin half
            ],
            out_specs=pl.BlockSpec(
                (1, TC, Bp, Op),
                lambda d, c: (d, c + d * (NC - 1 - 2 * c), 0, 0)),
            scratch_shapes=[
                pltpu.VMEM((Bp, Hp), jnp.float32),   # h state
                pltpu.VMEM((Bp, Hp), jnp.float32),   # c state
            ],
        ),
        compiler_params=pltpu.CompilerParams(
            dimension_semantics=("parallel", "arbitrary")),
    )(gates, lens, whh, wlin)

    # combine the two directions' partial head outputs, add bias, unpad
    y = (y_pad[0, :T, :B, :O] + y_pad[1, :T, :B, :O]
         + params["b_lin"])                                       # (T, B, O)
    return jnp.transpose(y, (1, 0, 2))                            # (B, T, O)


# ---------------------------------------------------------------------------
# Deterministic parameter init (shapes from torch.nn.LSTM / Linear)
# ---------------------------------------------------------------------------
def init_params(key, input_size, hidden_size, output_size):
    D, H, O = input_size, hidden_size, output_size
    ks = jax.random.split(key, 10)
    bound = 1.0 / jnp.sqrt(jnp.float32(H))
    u = lambda k, shape: jax.random.uniform(k, shape, jnp.float32, -bound, bound)
    # stored transposed relative to torch (so kernel does x @ W); gate order i,f,g,o
    return {
        "wih_f": u(ks[0], (D, 4 * H)),
        "whh_f": u(ks[1], (H, 4 * H)),
        "b_f":   (u(ks[2], (4 * H,)) + u(ks[3], (4 * H,))).reshape(1, 4 * H),
        "wih_b": u(ks[4], (D, 4 * H)),
        "whh_b": u(ks[5], (H, 4 * H)),
        "b_b":   (u(ks[6], (4 * H,)) + u(ks[7], (4 * H,))).reshape(1, 4 * H),
        "w_lin": u(ks[8], (2 * H, O)),
        "b_lin": u(ks[9], (O,)),
    }


# ---------------------------------------------------------------------------
# Pure-JAX reference (matches PyTorch packed-sequence BiLSTM + Linear)
# ---------------------------------------------------------------------------
def reference_forward(x, lengths, p):
    B, T, D = x.shape
    H = p["whh_f"].shape[0]

    def run_dir(w_ih, w_hh, b, reverse):
        h = jnp.zeros((B, H), jnp.float32)
        c = jnp.zeros((B, H), jnp.float32)
        outs = [None] * T
        order = range(T - 1, -1, -1) if reverse else range(T)
        for t in order:
            xt = x[:, t, :]
            g = xt @ w_ih + h @ w_hh + b
            i = jax.nn.sigmoid(g[:, :H])
            f = jax.nn.sigmoid(g[:, H:2 * H])
            gg = jnp.tanh(g[:, 2 * H:3 * H])
            o = jax.nn.sigmoid(g[:, 3 * H:])
            c_new = f * c + i * gg
            h_new = o * jnp.tanh(c_new)
            m = (t < lengths).astype(jnp.float32)[:, None]
            h = m * h_new + (1 - m) * h
            c = m * c_new + (1 - m) * c
            outs[t] = m * h_new
        return jnp.stack(outs, axis=1)

    of = run_dir(p["wih_f"], p["whh_f"], p["b_f"], reverse=False)
    ob = run_dir(p["wih_b"], p["whh_b"], p["b_b"], reverse=True)
    out = jnp.concatenate([of, ob], axis=-1)
    return out @ p["w_lin"] + p["b_lin"]


if __name__ == "__main__":
    B, T, D, H, O = 2, 8, 16, 32, 2

    key = jax.random.PRNGKey(0)
    k_x, k_p = jax.random.split(key)
    x = jax.random.normal(k_x, (B, T, D), jnp.float32)
    lengths = jnp.array([T, 5], dtype=jnp.int32)   # max(lengths) == T
    params = init_params(k_p, D, H, O)

    y_ref = reference_forward(x, lengths, params)

    # single-chunk path (TC == T)
    y = bilstmp_forward(x, lengths, params, time_chunk=8)
    jax.block_until_ready(y)
    assert y.shape == (B, T, O)
    assert jnp.allclose(y, y_ref, atol=1e-4, rtol=1e-4), "mismatch (TC=8)"

    # multi-chunk path (NC > 1) exercises sequential state carry + bwd chunk order
    y2 = bilstmp_forward(x, lengths, params, time_chunk=4)
    jax.block_until_ready(y2)
    assert jnp.allclose(y2, y_ref, atol=1e-4, rtol=1e-4), "mismatch (TC=4)"

    print("KERNEL_OK")
</pallas_src>

<mosaic_0001>
module attributes {stable_mosaic.version = 11 : i64} {
  func.func @_gates_proj_kernel(%arg0: i32, %arg1: i32, %arg2: memref<64x16xf32, #tpu.memory_space<vmem>>, %arg3: memref<1x16x512xf32, #tpu.memory_space<vmem>>, %arg4: memref<1x1x512xf32, #tpu.memory_space<vmem>>, %arg5: memref<1x64x512xf32, #tpu.memory_space<vmem>>) attributes {dimension_semantics = [#tpu.dimension_semantics<parallel>, #tpu.dimension_semantics<parallel>], iteration_bounds = array<i64: 2, 1>, scalar_prefetch = 0 : i64, scratch_operands = 0 : i64, tpu.core_type = #tpu.core_type<tc>, window_params = [{transform_indices = @transform_0, window_bounds = array<i64: 64, 16>}, {transform_indices = @transform_1, window_bounds = array<i64: 1, 16, 512>}, {transform_indices = @transform_2, window_bounds = array<i64: 1, 1, 512>}, {transform_indices = @transform_3, window_bounds = array<i64: 1, 64, 512>}]} {
    %c0 = arith.constant 0 : index
    %c0_0 = arith.constant 0 : index
    %0 = vector.load %arg2[%c0, %c0_0] : memref<64x16xf32, #tpu.memory_space<vmem>>, vector<64x16xf32>
    %c0_1 = arith.constant 0 : index
    %c0_2 = arith.constant 0 : index
    %c0_3 = arith.constant 0 : index
    %1 = vector.load %arg3[%c0_1, %c0_2, %c0_3] : memref<1x16x512xf32, #tpu.memory_space<vmem>>, vector<1x16x512xf32>
    %2 = vector.shape_cast %1 : vector<1x16x512xf32> to vector<16x512xf32>
    %cst = arith.constant dense<0.000000e+00> : vector<64x512xf32>
    %3 = tpu.matmul %0, %2, %cst {dimension_numbers = #tpu.dot_dimension_numbers<[1], [0], [0], [1], [0, 0, 1, 1], [], []>} : vector<64x16xf32>, vector<16x512xf32>, vector<64x512xf32> -> vector<64x512xf32>
    %c0_4 = arith.constant 0 : index
    %c0_5 = arith.constant 0 : index
    %c0_6 = arith.constant 0 : index
    %4 = vector.load %arg4[%c0_4, %c0_5, %c0_6] : memref<1x1x512xf32, #tpu.memory_space<vmem>>, vector<1x1x512xf32>
    %5 = vector.shape_cast %4 : vector<1x1x512xf32> to vector<1x512xf32>
    %6 = vector.broadcast %5 : vector<1x512xf32> to vector<64x512xf32>
    %7 = arith.addf %3, %6 : vector<64x512xf32>
    %c0_7 = arith.constant 0 : index
    %c0_8 = arith.constant 0 : index
    %c0_9 = arith.constant 0 : index
    %8 = vector.load %arg5[%c0_7, %c0_8, %c0_9] : memref<1x64x512xf32, #tpu.memory_space<vmem>>, vector<1x64x512xf32>
    %9 = vector.shape_cast %8 : vector<1x64x512xf32> to vector<64x512xf32>
    %10 = vector.shape_cast %7 : vector<64x512xf32> to vector<1x64x512xf32>
    tpu.vector_store %arg5[%c0_7, %c0_8, %c0_9], %10 {strides = array<i32>} : memref<1x64x512xf32, #tpu.memory_space<vmem>>, vector<1x64x512xf32>,
    return
  }
  func.func @transform_0(%arg0: i32, %arg1: i32) -> (i32, i32) {
    %c0_i32 = arith.constant 0 : i32
    %c0_i32_0 = arith.constant 0 : i32
    return %arg1, %c0_i32 : i32, i32
  }
  func.func @transform_1(%arg0: i32, %arg1: i32) -> (i32, i32, i32) {
    %c0_i32 = arith.constant 0 : i32
    %c0_i32_0 = arith.constant 0 : i32
    %c0_i32_1 = arith.constant 0 : i32
    return %arg0, %c0_i32, %c0_i32_0 : i32, i32, i32
  }
  func.func @transform_2(%arg0: i32, %arg1: i32) -> (i32, i32, i32) {
    %c0_i32 = arith.constant 0 : i32
    %c0_i32_0 = arith.constant 0 : i32
    %c0_i32_1 = arith.constant 0 : i32
    return %arg0, %c0_i32, %c0_i32_0 : i32, i32, i32
  }
  func.func @transform_3(%arg0: i32, %arg1: i32) -> (i32, i32, i32) {
    %c0_i32 = arith.constant 0 : i32
    %c0_i32_0 = arith.constant 0 : i32
    return %arg0, %arg1, %c0_i32 : i32, i32, i32
  }
}

module attributes {stable_mosaic.version = 11 : i64} {
  func.func @_bilstm_chunk_kernel(%arg0: i32, %arg1: i32, %arg2: memref<1x8x8x512xf32, #tpu.memory_space<vmem>>, %arg3: memref<8x1xi32, #tpu.memory_space<vmem>>, %arg4: memref<1x128x512xf32, #tpu.memory_space<vmem>>, %arg5: memref<1x128x128xf32, #tpu.memory_space<vmem>>, %arg6: memref<1x8x8x128xf32, #tpu.memory_space<vmem>>, %arg7: memref<8x128xf32, #tpu.memory_space<vmem>>, %arg8: memref<8x128xf32, #tpu.memory_space<vmem>>) attributes {dimension_semantics = [#tpu.dimension_semantics<parallel>, #tpu.dimension_semantics<arbitrary>], iteration_bounds = array<i64: 2, 1>, scalar_prefetch = 0 : i64, scratch_operands = 2 : i64, tpu.core_type = #tpu.core_type<tc>, window_params = [{transform_indices = @transform_0, window_bounds = array<i64: 1, 8, 8, 512>}, {pipeline_mode = #tpu.pipeline_mode<synchronous>, transform_indices = @transform_1, window_bounds = array<i64: 8, 1>}, {transform_indices = @transform_2, window_bounds = array<i64: 1, 128, 512>}, {transform_indices = @transform_3, window_bounds = array<i64: 1, 128, 128>}, {transform_indices = @transform_4, window_bounds = array<i64: 1, 8, 8, 128>}]} {
    %c0_i32 = arith.constant 0 : i32
    %0 = arith.cmpi eq, %arg1, %c0_i32 : i32
    %1 = arith.extui %0 : i1 to i32
    %c0_i32_0 = arith.constant 0 : i32
    %2 = arith.cmpi ne, %1, %c0_i32_0 : i32
    scf.if %2 {
      %cst_173 = arith.constant 0.000000e+00 : f32
      %455 = vector.broadcast %cst_173 : f32 to vector<8x128xf32>
      %c0_174 = arith.constant 0 : index
      %c0_175 = arith.constant 0 : index
      %456 = vector.load %arg7[%c0_174, %c0_175] : memref<8x128xf32, #tpu.memory_space<vmem>>, vector<8x128xf32>
      tpu.vector_store %arg7[%c0_174, %c0_175], %455 {strides = array<i32>} : memref<8x128xf32, #tpu.memory_space<vmem>>, vector<8x128xf32>,
      %cst_176 = arith.constant 0.000000e+00 : f32
      %457 = vector.broadcast %cst_176 : f32 to vector<8x128xf32>
      %c0_177 = arith.constant 0 : index
      %c0_178 = arith.constant 0 : index
      %458 = vector.load %arg8[%c0_177, %c0_178] : memref<8x128xf32, #tpu.memory_space<vmem>>, vector<8x128xf32>
      tpu.vector_store %arg8[%c0_177, %c0_178], %457 {strides = array<i32>} : memref<8x128xf32, #tpu.memory_space<vmem>>, vector<8x128xf32>,
    } else {
    }
    %c2_i32 = arith.constant 2 : i32
    %3 = arith.muli %c2_i32, %arg1 : i32
    %c0_i32_1 = arith.constant 0 : i32
    %4 = arith.subi %c0_i32_1, %3 : i32
    %5 = arith.muli %arg0, %4 : i32
    %6 = arith.addi %arg1, %5 : i32
    %c0 = arith.constant 0 : index
    %c0_2 = arith.constant 0 : index
    %7 = vector.load %arg3[%c0, %c0_2] : memref<8x1xi32, #tpu.memory_space<vmem>>, vector<8x1xi32>
    %c8_i32 = arith.constant 8 : i32
    %8 = arith.muli %6, %c8_i32 : i32
    %9 = vector.broadcast %8 : i32 to vector<8x1xi32>
    %10 = arith.subi %7, %9 : vector<8x1xi32>
    %c0_3 = arith.constant 0 : index
    %c0_4 = arith.constant 0 : index
    %11 = vector.load %arg7[%c0_3, %c0_4] : memref<8x128xf32, #tpu.memory_space<vmem>>, vector<8x128xf32>
    %c0_5 = arith.constant 0 : index
    %c0_6 = arith.constant 0 : index
    %12 = vector.load %arg8[%c0_5, %c0_6] : memref<8x128xf32, #tpu.memory_space<vmem>>, vector<8x128xf32>
    %c0_i32_7 = arith.constant 0 : i32
    %c2_i32_8 = arith.constant 2 : i32
    %13 = arith.muli %c2_i32_8, %c0_i32_7 : i32
    %c7_i32 = arith.constant 7 : i32
    %14 = arith.subi %c7_i32, %13 : i32
    %15 = arith.muli %arg0, %14 : i32
    %16 = arith.addi %c0_i32_7, %15 : i32
    %c0_9 = arith.constant 0 : index
    %17 = arith.index_cast %16 : i32 to index
    %c0_10 = arith.constant 0 : index
    %c0_11 = arith.constant 0 : index
    %18 = vector.load %arg2[%c0_9, %17, %c0_10, %c0_11] : memref<1x8x8x512xf32, #tpu.memory_space<vmem>>, vector<1x1x8x512xf32>
    %19 = vector.shape_cast %18 : vector<1x1x8x512xf32> to vector<8x512xf32>
    %c0_12 = arith.constant 0 : index
    %c0_13 = arith.constant 0 : index
    %c0_14 = arith.constant 0 : index
    %20 = vector.load %arg4[%c0_12, %c0_13, %c0_14] : memref<1x128x512xf32, #tpu.memory_space<vmem>>, vector<1x128x512xf32>
    %21 = vector.shape_cast %20 : vector<1x128x512xf32> to vector<128x512xf32>
    %cst = arith.constant dense<0.000000e+00> : vector<8x512xf32>
    %22 = tpu.matmul %11, %21, %cst {dimension_numbers = #tpu.dot_dimension_numbers<[1], [0], [0], [1], [0, 0, 1, 1], [], []>} : vector<8x128xf32>, vector<128x512xf32>, vector<8x512xf32> -> vector<8x512xf32>
    %23 = arith.addf %19, %22 : vector<8x512xf32>
    %24 = vector.extract_strided_slice %23 {offsets = [0, 0], sizes = [8, 128], strides = [1, 1]} : vector<8x512xf32> to vector<8x128xf32>
    %25 = arith.negf %24 : vector<8x128xf32>
    %26 = math.exp %25 : vector<8x128xf32>
    %cst_15 = arith.constant 1.000000e+00 : f32
    %27 = vector.broadcast %cst_15 : f32 to vector<8x128xf32>
    %28 = arith.addf %27, %26 : vector<8x128xf32>
    %29 = arith.divf %27, %28 : vector<8x128xf32>
    %30 = vector.extract_strided_slice %23 {offsets = [0, 128], sizes = [8, 128], strides = [1, 1]} : vector<8x512xf32> to vector<8x128xf32>
    %31 = arith.negf %30 : vector<8x128xf32>
    %32 = math.exp %31 : vector<8x128xf32>
    %cst_16 = arith.constant 1.000000e+00 : f32
    %33 = vector.broadcast %cst_16 : f32 to vector<8x128xf32>
    %34 = arith.addf %33, %32 : vector<8x128xf32>
    %35 = arith.divf %33, %34 : vector<8x128xf32>
    %36 = vector.extract_strided_slice %23 {offsets = [0, 256], sizes = [8, 128], strides = [1, 1]} : vector<8x512xf32> to vector<8x128xf32>
    %37 = math.tanh %36 : vector<8x128xf32>
    %38 = vector.extract_strided_slice %23 {offsets = [0, 384], sizes = [8, 128], strides = [1, 1]} : vector<8x512xf32> to vector<8x128xf32>
    %39 = arith.negf %38 : vector<8x128xf32>
    %40 = math.exp %39 : vector<8x128xf32>
    %cst_17 = arith.constant 1.000000e+00 : f32
    %41 = vector.broadcast %cst_17 : f32 to vector<8x128xf32>
    %42 = arith.addf %41, %40 : vector<8x128xf32>
    %43 = arith.divf %41, %42 : vector<8x128xf32>
    %44 = arith.mulf %35, %12 : vector<8x128xf32>
    %45 = arith.mulf %29, %37 : vector<8x128xf32>
    %46 = arith.addf %44, %45 : vector<8x128xf32>
    %47 = math.tanh %46 : vector<8x128xf32>
    %48 = arith.mulf %43, %47 : vector<8x128xf32>
    %49 = vector.broadcast %16 : i32 to vector<8x1xi32>
    %50 = arith.cmpi slt, %49, %10 : vector<8x1xi32>
    %cst_18 = arith.constant 0.000000e+00 : f32
    %51 = vector.shape_cast %50 : vector<8x1xi1> to vector<8x1xi1>
    %52 = vector.broadcast %51 : vector<8x1xi1> to vector<8x128xi1>
    %53 = vector.broadcast %cst_18 : f32 to vector<8x128xf32>
    %54 = arith.select %52, %48, %53 : vector<8x128xi1>, vector<8x128xf32>
    %c0_19 = arith.constant 0 : index
    %c0_20 = arith.constant 0 : index
    %c0_21 = arith.constant 0 : index
    %55 = vector.load %arg5[%c0_19, %c0_20, %c0_21] : memref<1x128x128xf32, #tpu.memory_space<vmem>>, vector<1x128x128xf32>
    %56 = vector.shape_cast %55 : vector<1x128x128xf32> to vector<128x128xf32>
    %cst_22 = arith.constant dense<0.000000e+00> : vector<8x128xf32>
    %57 = tpu.matmul %54, %56, %cst_22 {dimension_numbers = #tpu.dot_dimension_numbers<[1], [0], [0], [1], [0, 0, 1, 1], [], []>} : vector<8x128xf32>, vector<128x128xf32>, vector<8x128xf32> -> vector<8x128xf32>
    %c0_23 = arith.constant 0 : index
    %58 = arith.index_cast %16 : i32 to index
    %c0_24 = arith.constant 0 : index
    %c0_25 = arith.constant 0 : index
    %59 = vector.load %arg6[%c0_23, %58, %c0_24, %c0_25] : memref<1x8x8x128xf32, #tpu.memory_space<vmem>>, vector<1x1x8x128xf32>
    %60 = vector.shape_cast %59 : vector<1x1x8x128xf32> to vector<8x128xf32>
    %61 = vector.shape_cast %57 : vector<8x128xf32> to vector<1x1x8x128xf32>
    tpu.vector_store %arg6[%c0_23, %58, %c0_24, %c0_25], %61 {strides = array<i32>} : memref<1x8x8x128xf32, #tpu.memory_space<vmem>>, vector<1x1x8x128xf32>,
    %62 = vector.shape_cast %50 : vector<8x1xi1> to vector<8x1xi1>
    %63 = vector.broadcast %62 : vector<8x1xi1> to vector<8x128xi1>
    %64 = arith.select %63, %48, %11 : vector<8x128xi1>, vector<8x128xf32>
    %65 = vector.shape_cast %50 : vector<8x1xi1> to vector<8x1xi1>
    %66 = vector.broadcast %65 : vector<8x1xi1> to vector<8x128xi1>
    %67 = arith.select %66, %46, %12 : vector<8x128xi1>, vector<8x128xf32>
    %c1_i32 = arith.constant 1 : i32
    %c2_i32_26 = arith.constant 2 : i32
    %68 = arith.muli %c2_i32_26, %c1_i32 : i32
    %c7_i32_27 = arith.constant 7 : i32
    %69 = arith.subi %c7_i32_27, %68 : i32
    %70 = arith.muli %arg0, %69 : i32
    %71 = arith.addi %c1_i32, %70 : i32
    %c0_28 = arith.constant 0 : index
    %72 = arith.index_cast %71 : i32 to index
    %c0_29 = arith.constant 0 : index
    %c0_30 = arith.constant 0 : index
    %73 = vector.load %arg2[%c0_28, %72, %c0_29, %c0_30] : memref<1x8x8x512xf32, #tpu.memory_space<vmem>>, vector<1x1x8x512xf32>
    %74 = vector.shape_cast %73 : vector<1x1x8x512xf32> to vector<8x512xf32>
    %c0_31 = arith.constant 0 : index
    %c0_32 = arith.constant 0 : index
    %c0_33 = arith.constant 0 : index
    %75 = vector.load %arg4[%c0_31, %c0_32, %c0_33] : memref<1x128x512xf32, #tpu.memory_space<vmem>>, vector<1x128x512xf32>
    %76 = vector.shape_cast %75 : vector<1x128x512xf32> to vector<128x512xf32>
    %cst_34 = arith.constant dense<0.000000e+00> : vector<8x512xf32>
    %77 = tpu.matmul %64, %76, %cst_34 {dimension_numbers = #tpu.dot_dimension_numbers<[1], [0], [0], [1], [0, 0, 1, 1], [], []>} : vector<8x128xf32>, vector<128x512xf32>, vector<8x512xf32> -> vector<8x512xf32>
    %78 = arith.addf %74, %77 : vector<8x512xf32>
    %79 = vector.extract_strided_slice %78 {offsets = [0, 0], sizes = [8, 128], strides = [1, 1]} : vector<8x512xf32> to vector<8x128xf32>
    %80 = arith.negf %79 : vector<8x128xf32>
    %81 = math.exp %80 : vector<8x128xf32>
    %cst_35 = arith.constant 1.000000e+00 : f32
    %82 = vector.broadcast %cst_35 : f32 to vector<8x128xf32>
    %83 = arith.addf %82, %81 : vector<8x128xf32>
    %84 = arith.divf %82, %83 : vector<8x128xf32>
    %85 = vector.extract_strided_slice %78 {offsets = [0, 128], sizes = [8, 128], strides = [1, 1]} : vector<8x512xf32> to vector<8x128xf32>
    %86 = arith.negf %85 : vector<8x128xf32>
    %87 = math.exp %86 : vector<8x128xf32>
    %cst_36 = arith.constant 1.000000e+00 : f32
    %88 = vector.broadcast %cst_36 : f32 to vector<8x128xf32>
    %89 = arith.addf %88, %87 : vector<8x128xf32>
    %90 = arith.divf %88, %89 : vector<8x128xf32>
    %91 = vector.extract_strided_slice %78 {offsets = [0, 256], sizes = [8, 128], strides = [1, 1]} : vector<8x512xf32> to vector<8x128xf32>
    %92 = math.tanh %91 : vector<8x128xf32>
    %93 = vector.extract_strided_slice %78 {offsets = [0, 384], sizes = [8, 128], strides = [1, 1]} : vector<8x512xf32> to vector<8x128xf32>
    %94 = arith.negf %93 : vector<8x128xf32>
    %95 = math.exp %94 : vector<8x128xf32>
    %cst_37 = arith.constant 1.000000e+00 : f32
    %96 = vector.broadcast %cst_37 : f32 to vector<8x128xf32>
    %97 = arith.addf %96, %95 : vector<8x128xf32>
    %98 = arith.divf %96, %97 : vector<8x128xf32>
    %99 = arith.mulf %90, %67 : vector<8x128xf32>
    %100 = arith.mulf %84, %92 : vector<8x128xf32>
    %101 = arith.addf %99, %100 : vector<8x128xf32>
    %102 = math.tanh %101 : vector<8x128xf32>
    %103 = arith.mulf %98, %102 : vector<8x128xf32>
    %104 = vector.broadcast %71 : i32 to vector<8x1xi32>
    %105 = arith.cmpi slt, %104, %10 : vector<8x1xi32>
    %cst_38 = arith.constant 0.000000e+00 : f32
    %106 = vector.shape_cast %105 : vector<8x1xi1> to vector<8x1xi1>
    %107 = vector.broadcast %106 : vector<8x1xi1> to vector<8x128xi1>
    %108 = vector.broadcast %cst_38 : f32 to vector<8x128xf32>
    %109 = arith.select %107, %103, %108 : vector<8x128xi1>, vector<8x128xf32>
    %c0_39 = arith.constant 0 : index
    %c0_40 = arith.constant 0 : index
    %c0_41 = arith.constant 0 : index
    %110 = vector.load %arg5[%c0_39, %c0_40, %c0_41] : memref<1x128x128xf32, #tpu.memory_space<vmem>>, vector<1x128x128xf32>
    %111 = vector.shape_cast %110 : vector<1x128x128xf32> to vector<128x128xf32>
    %cst_42 = arith.constant dense<0.000000e+00> : vector<8x128xf32>
    %112 = tpu.matmul %109, %111, %cst_42 {dimension_numbers = #tpu.dot_dimension_numbers<[1], [0], [0], [1], [0, 0, 1, 1], [], []>} : vector<8x128xf32>, vector<128x128xf32>, vector<8x128xf32> -> vector<8x128xf32>
    %c0_43 = arith.constant 0 : index
    %113 = arith.index_cast %71 : i32 to index
    %c0_44 = arith.constant 0 : index
    %c0_45 = arith.constant 0 : index
    %114 = vector.load %arg6[%c0_43, %113, %c0_44, %c0_45] : memref<1x8x8x128xf32, #tpu.memory_space<vmem>>, vector<1x1x8x128xf32>
    %115 = vector.shape_cast %114 : vector<1x1x8x128xf32> to vector<8x128xf32>
    %116 = vector.shape_cast %112 : vector<8x128xf32> to vector<1x1x8x128xf32>
    tpu.vector_store %arg6[%c0_43, %113, %c0_44, %c0_45], %116 {strides = array<i32>} : memref<1x8x8x128xf32, #tpu.memory_space<vmem>>, vector<1x1x8x128xf32>,
    %117 = vector.shape_cast %105 : vector<8x1xi1> to vector<8x1xi1>
    %118 = vector.broadcast %117 : vector<8x1xi1> to vector<8x128xi1>
    %119 = arith.select %118, %103, %64 : vector<8x128xi1>, vector<8x128xf32>
    %120 = vector.shape_cast %105 : vector<8x1xi1> to vector<8x1xi1>
    %121 = vector.broadcast %120 : vector<8x1xi1> to vector<8x128xi1>
    %122 = arith.select %121, %101, %67 : vector<8x128xi1>, vector<8x128xf32>
    %c2_i32_46 = arith.constant 2 : i32
    %c2_i32_47 = arith.constant 2 : i32
    %123 = arith.muli %c2_i32_47, %c2_i32_46 : i32
    %c7_i32_48 = arith.constant 7 : i32
    %124 = arith.subi %c7_i32_48, %123 : i32
    %125 = arith.muli %arg0, %124 : i32
    %126 = arith.addi %c2_i32_46, %125 : i32
    %c0_49 = arith.constant 0 : index
    %127 = arith.index_cast %126 : i32 to index
    %c0_50 = arith.constant 0 : index
    %c0_51 = arith.constant 0 : index
    %128 = vector.load %arg2[%c0_49, %127, %c0_50, %c0_51] : memref<1x8x8x512xf32, #tpu.memory_space<vmem>>, vector<1x1x8x512xf32>
    %129 = vector.shape_cast %128 : vector<1x1x8x512xf32> to vector<8x512xf32>
    %c0_52 = arith.constant 0 : index
    %c0_53 = arith.constant 0 : index
    %c0_54 = arith.constant 0 : index
    %130 = vector.load %arg4[%c0_52, %c0_53, %c0_54] : memref<1x128x512xf32, #tpu.memory_space<vmem>>, vector<1x128x512xf32>
    %131 = vector.shape_cast %130 : vector<1x128x512xf32> to vector<128x512xf32>
    %cst_55 = arith.constant dense<0.000000e+00> : vector<8x512xf32>
    %132 = tpu.matmul %119, %131, %cst_55 {dimension_numbers = #tpu.dot_dimension_numbers<[1], [0], [0], [1], [0, 0, 1, 1], [], []>} : vector<8x128xf32>, vector<128x512xf32>, vector<8x512xf32> -> vector<8x512xf32>
    %133 = arith.addf %129, %132 : vector<8x512xf32>
    %134 = vector.extract_strided_slice %133 {offsets = [0, 0], sizes = [8, 128], strides = [1, 1]} : vector<8x512xf32> to vector<8x128xf32>
    %135 = arith.negf %134 : vector<8x128xf32>
    %136 = math.exp %135 : vector<8x128xf32>
    %cst_56 = arith.constant 1.000000e+00 : f32
    %137 = vector.broadcast %cst_56 : f32 to vector<8x128xf32>
    %138 = arith.addf %137, %136 : vector<8x128xf32>
    %139 = arith.divf %137, %138 : vector<8x128xf32>
    %140 = vector.extract_strided_slice %133 {offsets = [0, 128], sizes = [8, 128], strides = [1, 1]} : vector<8x512xf32> to vector<8x128xf32>
    %141 = arith.negf %140 : vector<8x128xf32>
    %142 = math.exp %141 : vector<8x128xf32>
    %cst_57 = arith.constant 1.000000e+00 : f32
    %143 = vector.broadcast %cst_57 : f32 to vector<8x128xf32>
    %144 = arith.addf %143, %142 : vector<8x128xf32>
    %145 = arith.divf %143, %144 : vector<8x128xf32>
    %146 = vector.extract_strided_slice %133 {offsets = [0, 256], sizes = [8, 128], strides = [1, 1]} : vector<8x512xf32> to vector<8x128xf32>
    %147 = math.tanh %146 : vector<8x128xf32>
    %148 = vector.extract_strided_slice %133 {offsets = [0, 384], sizes = [8, 128], strides = [1, 1]} : vector<8x512xf32> to vector<8x128xf32>
    %149 = arith.negf %148 : vector<8x128xf32>
    %150 = math.exp %149 : vector<8x128xf32>
    %cst_58 = arith.constant 1.000000e+00 : f32
    %151 = vector.broadcast %cst_58 : f32 to vector<8x128xf32>
    %152 = arith.addf %151, %150 : vector<8x128xf32>
    %153 = arith.divf %151, %152 : vector<8x128xf32>
    %154 = arith.mulf %145, %122 : vector<8x128xf32>
    %155 = arith.mulf %139, %147 : vector<8x128xf32>
    %156 = arith.addf %154, %155 : vector<8x128xf32>
    %157 = math.tanh %156 : vector<8x128xf32>
    %158 = arith.mulf %153, %157 : vector<8x128xf32>
    %159 = vector.broadcast %126 : i32 to vector<8x1xi32>
    %160 = arith.cmpi slt, %159, %10 : vector<8x1xi32>
    %cst_59 = arith.constant 0.000000e+00 : f32
    %161 = vector.shape_cast %160 : vector<8x1xi1> to vector<8x1xi1>
    %162 = vector.broadcast %161 : vector<8x1xi1> to vector<8x128xi1>
    %163 = vector.broadcast %cst_59 : f32 to vector<8x128xf32>
    %164 = arith.select %162, %158, %163 : vector<8x128xi1>, vector<8x128xf32>
    %c0_60 = arith.constant 0 : index
    %c0_61 = arith.constant 0 : index
    %c0_62 = arith.constant 0 : index
    %165 = vector.load %arg5[%c0_60, %c0_61, %c0_62] : memref<1x128x128xf32, #tpu.memory_space<vmem>>, vector<1x128x128xf32>
    %166 = vector.shape_cast %165 : vector<1x128x128xf32> to vector<128x128xf32>
    %cst_63 = arith.constant dense<0.000000e+00> : vector<8x128xf32>
    %167 = tpu.matmul %164, %166, %cst_63 {dimension_numbers = #tpu.dot_dimension_numbers<[1], [0], [0], [1], [0, 0, 1, 1], [], []>} : vector<8x128xf32>, vector<128x128xf32>, vector<8x128xf32> -> vector<8x128xf32>
    %c0_64 = arith.constant 0 : index
    %168 = arith.index_cast %126 : i32 to index
    %c0_65 = arith.constant 0 : index
    %c0_66 = arith.constant 0 : index
    %169 = vector.load %arg6[%c0_64, %168, %c0_65, %c0_66] : memref<1x8x8x128xf32, #tpu.memory_space<vmem>>, vector<1x1x8x128xf32>
    %170 = vector.shape_cast %169 : vector<1x1x8x128xf32> to vector<8x128xf32>
    %171 = vector.shape_cast %167 : vector<8x128xf32> to vector<1x1x8x128xf32>
    tpu.vector_store %arg6[%c0_64, %168, %c0_65, %c0_66], %171 {strides = array<i32>} : memref<1x8x8x128xf32, #tpu.memory_space<vmem>>, vector<1x1x8x128xf32>,
    %172 = vector.shape_cast %160 : vector<8x1xi1> to vector<8x1xi1>
    %173 = vector.broadcast %172 : vector<8x1xi1> to vector<8x128xi1>
    %174 = arith.select %173, %158, %119 : vector<8x128xi1>, vector<8x128xf32>
    %175 = vector.shape_cast %160 : vector<8x1xi1> to vector<8x1xi1>
    %176 = vector.broadcast %175 : vector<8x1xi1> to vector<8x128xi1>
    %177 = arith.select %176, %156, %122 : vector<8x128xi1>, vector<8x128xf32>
    %c3_i32 = arith.constant 3 : i32
    %c2_i32_67 = arith.constant 2 : i32
    %178 = arith.muli %c2_i32_67, %c3_i32 : i32
    %c7_i32_68 = arith.constant 7 : i32
    %179 = arith.subi %c7_i32_68, %178 : i32
    %180 = arith.muli %arg0, %179 : i32
    %181 = arith.addi %c3_i32, %180 : i32
    %c0_69 = arith.constant 0 : index
    %182 = arith.index_cast %181 : i32 to index
    %c0_70 = arith.constant 0 : index
    %c0_71 = arith.constant 0 : index
    %183 = vector.load %arg2[%c0_69, %182, %c0_70, %c0_71] : memref<1x8x8x512xf32, #tpu.memory_space<vmem>>, vector<1x1x8x512xf32>
    %184 = vector.shape_cast %183 : vector<1x1x8x512xf32> to vector<8x512xf32>
    %c0_72 = arith.constant 0 : index
    %c0_73 = arith.constant 0 : index
    %c0_74 = arith.constant 0 : index
    %185 = vector.load %arg4[%c0_72, %c0_73, %c0_74] : memref<1x128x512xf32, #tpu.memory_space<vmem>>, vector<1x128x512xf32>
    %186 = vector.shape_cast %185 : vector<1x128x512xf32> to vector<128x512xf32>
    %cst_75 = arith.constant dense<0.000000e+00> : vector<8x512xf32>
    %187 = tpu.matmul %174, %186, %cst_75 {dimension_numbers = #tpu.dot_dimension_numbers<[1], [0], [0], [1], [0, 0, 1, 1], [], []>} : vector<8x128xf32>, vector<128x512xf32>, vector<8x512xf32> -> vector<8x512xf32>
    %188 = arith.addf %184, %187 : vector<8x512xf32>
    %189 = vector.extract_strided_slice %188 {offsets = [0, 0], sizes = [8, 128], strides = [1, 1]} : vector<8x512xf32> to vector<8x128xf32>
    %190 = arith.negf %189 : vector<8x128xf32>
    %191 = math.exp %190 : vector<8x128xf32>
    %cst_76 = arith.constant 1.000000e+00 : f32
    %192 = vector.broadcast %cst_76 : f32 to vector<8x128xf32>
    %193 = arith.addf %192, %191 : vector<8x128xf32>
    %194 = arith.divf %192, %193 : vector<8x128xf32>
    %195 = vector.extract_strided_slice %188 {offsets = [0, 128], sizes = [8, 128], strides = [1, 1]} : vector<8x512xf32> to vector<8x128xf32>
    %196 = arith.negf %195 : vector<8x128xf32>
    %197 = math.exp %196 : vector<8x128xf32>
    %cst_77 = arith.constant 1.000000e+00 : f32
    %198 = vector.broadcast %cst_77 : f32 to vector<8x128xf32>
    %199 = arith.addf %198, %197 : vector<8x128xf32>
    %200 = arith.divf %198, %199 : vector<8x128xf32>
    %201 = vector.extract_strided_slice %188 {offsets = [0, 256], sizes = [8, 128], strides = [1, 1]} : vector<8x512xf32> to vector<8x128xf32>
    %202 = math.tanh %201 : vector<8x128xf32>
    %203 = vector.extract_strided_slice %188 {offsets = [0, 384], sizes = [8, 128], strides = [1, 1]} : vector<8x512xf32> to vector<8x128xf32>
    %204 = arith.negf %203 : vector<8x128xf32>
    %205 = math.exp %204 : vector<8x128xf32>
    %cst_78 = arith.constant 1.000000e+00 : f32
    %206 = vector.broadcast %cst_78 : f32 to vector<8x128xf32>
    %207 = arith.addf %206, %205 : vector<8x128xf32>
    %208 = arith.divf %206, %207 : vector<8x128xf32>
    %209 = arith.mulf %200, %177 : vector<8x128xf32>
    %210 = arith.mulf %194, %202 : vector<8x128xf32>
    %211 = arith.addf %209, %210 : vector<8x128xf32>
    %212 = math.tanh %211 : vector<8x128xf32>
    %213 = arith.mulf %208, %212 : vector<8x128xf32>
    %214 = vector.broadcast %181 : i32 to vector<8x1xi32>
    %215 = arith.cmpi slt, %214, %10 : vector<8x1xi32>
    %cst_79 = arith.constant 0.000000e+00 : f32
    %216 = vector.shape_cast %215 : vector<8x1xi1> to vector<8x1xi1>
    %217 = vector.broadcast %216 : vector<8x1xi1> to vector<8x128xi1>
    %218 = vector.broadcast %cst_79 : f32 to vector<8x128xf32>
    %219 = arith.select %217, %213, %218 : vector<8x128xi1>, vector<8x128xf32>
    %c0_80 = arith.constant 0 : index
    %c0_81 = arith.constant 0 : index
    %c0_82 = arith.constant 0 : index
    %220 = vector.load %arg5[%c0_80, %c0_81, %c0_82] : memref<1x128x128xf32, #tpu.memory_space<vmem>>, vector<1x128x128xf32>
    %221 = vector.shape_cast %220 : vector<1x128x128xf32> to vector<128x128xf32>
    %cst_83 = arith.constant dense<0.000000e+00> : vector<8x128xf32>
    %222 = tpu.matmul %219, %221, %cst_83 {dimension_numbers = #tpu.dot_dimension_numbers<[1], [0], [0], [1], [0, 0, 1, 1], [], []>} : vector<8x128xf32>, vector<128x128xf32>, vector<8x128xf32> -> vector<8x128xf32>
    %c0_84 = arith.constant 0 : index
    %223 = arith.index_cast %181 : i32 to index
    %c0_85 = arith.constant 0 : index
    %c0_86 = arith.constant 0 : index
    %224 = vector.load %arg6[%c0_84, %223, %c0_85, %c0_86] : memref<1x8x8x128xf32, #tpu.memory_space<vmem>>, vector<1x1x8x128xf32>
    %225 = vector.shape_cast %224 : vector<1x1x8x128xf32> to vector<8x128xf32>
    %226 = vector.shape_cast %222 : vector<8x128xf32> to vector<1x1x8x128xf32>
    tpu.vector_store %arg6[%c0_84, %223, %c0_85, %c0_86], %226 {strides = array<i32>} : memref<1x8x8x128xf32, #tpu.memory_space<vmem>>, vector<1x1x8x128xf32>,
    %227 = vector.shape_cast %215 : vector<8x1xi1> to vector<8x1xi1>
    %228 = vector.broadcast %227 : vector<8x1xi1> to vector<8x128xi1>
    %229 = arith.select %228, %213, %174 : vector<8x128xi1>, vector<8x128xf32>
    %230 = vector.shape_cast %215 : vector<8x1xi1> to vector<8x1xi1>
    %231 = vector.broadcast %230 : vector<8x1xi1> to vector<8x128xi1>
    %232 = arith.select %231, %211, %177 : vector<8x128xi1>, vector<8x128xf32>
    %c4_i32 = arith.constant 4 : i32
    %c2_i32_87 = arith.constant 2 : i32
    %233 = arith.muli %c2_i32_87, %c4_i32 : i32
    %c7_i32_88 = arith.constant 7 : i32
    %234 = arith.subi %c7_i32_88, %233 : i32
    %235 = arith.muli %arg0, %234 : i32
    %236 = arith.addi %c4_i32, %235 : i32
    %c0_89 = arith.constant 0 : index
    %237 = arith.index_cast %236 : i32 to index
    %c0_90 = arith.constant 0 : index
    %c0_91 = arith.constant 0 : index
    %238 = vector.load %arg2[%c0_89, %237, %c0_90, %c0_91] : memref<1x8x8x512xf32, #tpu.memory_space<vmem>>, vector<1x1x8x512xf32>
    %239 = vector.shape_cast %238 : vector<1x1x8x512xf32> to vector<8x512xf32>
    %c0_92 = arith.constant 0 : index
    %c0_93 = arith.constant 0 : index
    %c0_94 = arith.constant 0 : index
    %240 = vector.load %arg4[%c0_92, %c0_93, %c0_94] : memref<1x128x512xf32, #tpu.memory_space<vmem>>, vector<1x128x512xf32>
    %241 = vector.shape_cast %240 : vector<1x128x512xf32> to vector<128x512xf32>
    %cst_95 = arith.constant dense<0.000000e+00> : vector<8x512xf32>
    %242 = tpu.matmul %229, %241, %cst_95 {dimension_numbers = #tpu.dot_dimension_numbers<[1], [0], [0], [1], [0, 0, 1, 1], [], []>} : vector<8x128xf32>, vector<128x512xf32>, vector<8x512xf32> -> vector<8x512xf32>
    %243 = arith.addf %239, %242 : vector<8x512xf32>
    %244 = vector.extract_strided_slice %243 {offsets = [0, 0], sizes = [8, 128], strides = [1, 1]} : vector<8x512xf32> to vector<8x128xf32>
    %245 = arith.negf %244 : vector<8x128xf32>
    %246 = math.exp %245 : vector<8x128xf32>
    %cst_96 = arith.constant 1.000000e+00 : f32
    %247 = vector.broadcast %cst_96 : f32 to vector<8x128xf32>
    %248 = arith.addf %247, %246 : vector<8x128xf32>
    %249 = arith.divf %247, %248 : vector<8x128xf32>
    %250 = vector.extract_strided_slice %243 {offsets = [0, 128], sizes = [8, 128], strides = [1, 1]} : vector<8x512xf32> to vector<8x128xf32>
    %251 = arith.negf %250 : vector<8x128xf32>
    %252 = math.exp %251 : vector<8x128xf32>
    %cst_97 = arith.constant 1.000000e+00 : f32
    %253 = vector.broadcast %cst_97 : f32 to vector<8x128xf32>
    %254 = arith.addf %253, %252 : vector<8x128xf32>
    %255 = arith.divf %253, %254 : vector<8x128xf32>
    %256 = vector.extract_strided_slice %243 {offsets = [0, 256], sizes = [8, 128], strides = [1, 1]} : vector<8x512xf32> to vector<8x128xf32>
    %257 = math.tanh %256 : vector<8x128xf32>
    %258 = vector.extract_strided_slice %243 {offsets = [0, 384], sizes = [8, 128], strides = [1, 1]} : vector<8x512xf32> to vector<8x128xf32>
    %259 = arith.negf %258 : vector<8x128xf32>
    %260 = math.exp %259 : vector<8x128xf32>
    %cst_98 = arith.constant 1.000000e+00 : f32
    %261 = vector.broadcast %cst_98 : f32 to vector<8x128xf32>
    %262 = arith.addf %261, %260 : vector<8x128xf32>
    %263 = arith.divf %261, %262 : vector<8x128xf32>
    %264 = arith.mulf %255, %232 : vector<8x128xf32>
    %265 = arith.mulf %249, %257 : vector<8x128xf32>
    %266 = arith.addf %264, %265 : vector<8x128xf32>
    %267 = math.tanh %266 : vector<8x128xf32>
    %268 = arith.mulf %263, %267 : vector<8x128xf32>
    %269 = vector.broadcast %236 : i32 to vector<8x1xi32>
    %270 = arith.cmpi slt, %269, %10 : vector<8x1xi32>
    %cst_99 = arith.constant 0.000000e+00 : f32
    %271 = vector.shape_cast %270 : vector<8x1xi1> to vector<8x1xi1>
    %272 = vector.broadcast %271 : vector<8x1xi1> to vector<8x128xi1>
    %273 = vector.broadcast %cst_99 : f32 to vector<8x128xf32>
    %274 = arith.select %272, %268, %273 : vector<8x128xi1>, vector<8x128xf32>
    %c0_100 = arith.constant 0 : index
    %c0_101 = arith.constant 0 : index
    %c0_102 = arith.constant 0 : index
    %275 = vector.load %arg5[%c0_100, %c0_101, %c0_102] : memref<1x128x128xf32, #tpu.memory_space<vmem>>, vector<1x128x128xf32>
    %276 = vector.shape_cast %275 : vector<1x128x128xf32> to vector<128x128xf32>
    %cst_103 = arith.constant dense<0.000000e+00> : vector<8x128xf32>
    %277 = tpu.matmul %274, %276, %cst_103 {dimension_numbers = #tpu.dot_dimension_numbers<[1], [0], [0], [1], [0, 0, 1, 1], [], []>} : vector<8x128xf32>, vector<128x128xf32>, vector<8x128xf32> -> vector<8x128xf32>
    %c0_104 = arith.constant 0 : index
    %278 = arith.index_cast %236 : i32 to index
    %c0_105 = arith.constant 0 : index
    %c0_106 = arith.constant 0 : index
    %279 = vector.load %arg6[%c0_104, %278, %c0_105, %c0_106] : memref<1x8x8x128xf32, #tpu.memory_space<vmem>>, vector<1x1x8x128xf32>
    %280 = vector.shape_cast %279 : vector<1x1x8x128xf32> to vector<8x128xf32>
    %281 = vector.shape_cast %277 : vector<8x128xf32> to vector<1x1x8x128xf32>
    tpu.vector_store %arg6[%c0_104, %278, %c0_105, %c0_106], %281 {strides = array<i32>} : memref<1x8x8x128xf32, #tpu.memory_space<vmem>>, vector<1x1x8x128xf32>,
    %282 = vector.shape_cast %270 : vector<8x1xi1> to vector<8x1xi1>
    %283 = vector.broadcast %282 : vector<8x1xi1> to vector<8x128xi1>
    %284 = arith.select %283, %268, %229 : vector<8x128xi1>, vector<8x128xf32>
    %285 = vector.shape_cast %270 : vector<8x1xi1> to vector<8x1xi1>
    %286 = vector.broadcast %285 : vector<8x1xi1> to vector<8x128xi1>
    %287 = arith.select %286, %266, %232 : vector<8x128xi1>, vector<8x128xf32>
    %c5_i32 = arith.constant 5 : i32
    %c2_i32_107 = arith.constant 2 : i32
    %288 = arith.muli %c2_i32_107, %c5_i32 : i32
    %c7_i32_108 = arith.constant 7 : i32
    %289 = arith.subi %c7_i32_108, %288 : i32
    %290 = arith.muli %arg0, %289 : i32
    %291 = arith.addi %c5_i32, %290 : i32
    %c0_109 = arith.constant 0 : index
    %292 = arith.index_cast %291 : i32 to index
    %c0_110 = arith.constant 0 : index
    %c0_111 = arith.constant 0 : index
    %293 = vector.load %arg2[%c0_109, %292, %c0_110, %c0_111] : memref<1x8x8x512xf32, #tpu.memory_space<vmem>>, vector<1x1x8x512xf32>
    %294 = vector.shape_cast %293 : vector<1x1x8x512xf32> to vector<8x512xf32>
    %c0_112 = arith.constant 0 : index
    %c0_113 = arith.constant 0 : index
    %c0_114 = arith.constant 0 : index
    %295 = vector.load %arg4[%c0_112, %c0_113, %c0_114] : memref<1x128x512xf32, #tpu.memory_space<vmem>>, vector<1x128x512xf32>
    %296 = vector.shape_cast %295 : vector<1x128x512xf32> to vector<128x512xf32>
    %cst_115 = arith.constant dense<0.000000e+00> : vector<8x512xf32>
    %297 = tpu.matmul %284, %296, %cst_115 {dimension_numbers = #tpu.dot_dimension_numbers<[1], [0], [0], [1], [0, 0, 1, 1], [], []>} : vector<8x128xf32>, vector<128x512xf32>, vector<8x512xf32> -> vector<8x512xf32>
    %298 = arith.addf %294, %297 : vector<8x512xf32>
    %299 = vector.extract_strided_slice %298 {offsets = [0, 0], sizes = [8, 128], strides = [1, 1]} : vector<8x512xf32> to vector<8x128xf32>
    %300 = arith.negf %299 : vector<8x128xf32>
    %301 = math.exp %300 : vector<8x128xf32>
    %cst_116 = arith.constant 1.000000e+00 : f32
    %302 = vector.broadcast %cst_116 : f32 to vector<8x128xf32>
    %303 = arith.addf %302, %301 : vector<8x128xf32>
    %304 = arith.divf %302, %303 : vector<8x128xf32>
    %305 = vector.extract_strided_slice %298 {offsets = [0, 128], sizes = [8, 128], strides = [1, 1]} : vector<8x512xf32> to vector<8x128xf32>
    %306 = arith.negf %305 : vector<8x128xf32>
    %307 = math.exp %306 : vector<8x128xf32>
    %cst_117 = arith.constant 1.000000e+00 : f32
    %308 = vector.broadcast %cst_117 : f32 to vector<8x128xf32>
    %309 = arith.addf %308, %307 : vector<8x128xf32>
    %310 = arith.divf %308, %309 : vector<8x128xf32>
    %311 = vector.extract_strided_slice %298 {offsets = [0, 256], sizes = [8, 128], strides = [1, 1]} : vector<8x512xf32> to vector<8x128xf32>
    %312 = math.tanh %311 : vector<8x128xf32>
    %313 = vector.extract_strided_slice %298 {offsets = [0, 384], sizes = [8, 128], strides = [1, 1]} : vector<8x512xf32> to vector<8x128xf32>
    %314 = arith.negf %313 : vector<8x128xf32>
    %315 = math.exp %314 : vector<8x128xf32>
    %cst_118 = arith.constant 1.000000e+00 : f32
    %316 = vector.broadcast %cst_118 : f32 to vector<8x128xf32>
    %317 = arith.addf %316, %315 : vector<8x128xf32>
    %318 = arith.divf %316, %317 : vector<8x128xf32>
    %319 = arith.mulf %310, %287 : vector<8x128xf32>
    %320 = arith.mulf %304, %312 : vector<8x128xf32>
    %321 = arith.addf %319, %320 : vector<8x128xf32>
    %322 = math.tanh %321 : vector<8x128xf32>
    %323 = arith.mulf %318, %322 : vector<8x128xf32>
    %324 = vector.broadcast %291 : i32 to vector<8x1xi32>
    %325 = arith.cmpi slt, %324, %10 : vector<8x1xi32>
    %cst_119 = arith.constant 0.000000e+00 : f32
    %326 = vector.shape_cast %325 : vector<8x1xi1> to vector<8x1xi1>
    %327 = vector.broadcast %326 : vector<8x1xi1> to vector<8x128xi1>
    %328 = vector.broadcast %cst_119 : f32 to vector<8x128xf32>
    %329 = arith.select %327, %323, %328 : vector<8x128xi1>, vector<8x128xf32>
    %c0_120 = arith.constant 0 : index
    %c0_121 = arith.constant 0 : index
    %c0_122 = arith.constant 0 : index
    %330 = vector.load %arg5[%c0_120, %c0_121, %c0_122] : memref<1x128x128xf32, #tpu.memory_space<vmem>>, vector<1x128x128xf32>
    %331 = vector.shape_cast %330 : vector<1x128x128xf32> to vector<128x128xf32>
    %cst_123 = arith.constant dense<0.000000e+00> : vector<8x128xf32>
    %332 = tpu.matmul %329, %331, %cst_123 {dimension_numbers = #tpu.dot_dimension_numbers<[1], [0], [0], [1], [0, 0, 1, 1], [], []>} : vector<8x128xf32>, vector<128x128xf32>, vector<8x128xf32> -> vector<8x128xf32>
    %c0_124 = arith.constant 0 : index
    %333 = arith.index_cast %291 : i32 to index
    %c0_125 = arith.constant 0 : index
    %c0_126 = arith.constant 0 : index
    %334 = vector.load %arg6[%c0_124, %333, %c0_125, %c0_126] : memref<1x8x8x128xf32, #tpu.memory_space<vmem>>, vector<1x1x8x128xf32>
    %335 = vector.shape_cast %334 : vector<1x1x8x128xf32> to vector<8x128xf32>
    %336 = vector.shape_cast %332 : vector<8x128xf32> to vector<1x1x8x128xf32>
    tpu.vector_store %arg6[%c0_124, %333, %c0_125, %c0_126], %336 {strides = array<i32>} : memref<1x8x8x128xf32, #tpu.memory_space<vmem>>, vector<1x1x8x128xf32>,
    %337 = vector.shape_cast %325 : vector<8x1xi1> to vector<8x1xi1>
    %338 = vector.broadcast %337 : vector<8x1xi1> to vector<8x128xi1>
    %339 = arith.select %338, %323, %284 : vector<8x128xi1>, vector<8x128xf32>
    %340 = vector.shape_cast %325 : vector<8x1xi1> to vector<8x1xi1>
    %341 = vector.broadcast %340 : vector<8x1xi1> to vector<8x128xi1>
    %342 = arith.select %341, %321, %287 : vector<8x128xi1>, vector<8x128xf32>
    %c6_i32 = arith.constant 6 : i32
    %c2_i32_127 = arith.constant 2 : i32
    %343 = arith.muli %c2_i32_127, %c6_i32 : i32
    %c7_i32_128 = arith.constant 7 : i32
    %344 = arith.subi %c7_i32_128, %343 : i32
    %345 = arith.muli %arg0, %344 : i32
    %346 = arith.addi %c6_i32, %345 : i32
    %c0_129 = arith.constant 0 : index
    %347 = arith.index_cast %346 : i32 to index
    %c0_130 = arith.constant 0 : index
    %c0_131 = arith.constant 0 : index
    %348 = vector.load %arg2[%c0_129, %347, %c0_130, %c0_131] : memref<1x8x8x512xf32, #tpu.memory_space<vmem>>, vector<1x1x8x512xf32>
    %349 = vector.shape_cast %348 : vector<1x1x8x512xf32> to vector<8x512xf32>
    %c0_132 = arith.constant 0 : index
    %c0_133 = arith.constant 0 : index
    %c0_134 = arith.constant 0 : index
    %350 = vector.load %arg4[%c0_132, %c0_133, %c0_134] : memref<1x128x512xf32, #tpu.memory_space<vmem>>, vector<1x128x512xf32>
    %351 = vector.shape_cast %350 : vector<1x128x512xf32> to vector<128x512xf32>
    %cst_135 = arith.constant dense<0.000000e+00> : vector<8x512xf32>
    %352 = tpu.matmul %339, %351, %cst_135 {dimension_numbers = #tpu.dot_dimension_numbers<[1], [0], [0], [1], [0, 0, 1, 1], [], []>} : vector<8x128xf32>, vector<128x512xf32>, vector<8x512xf32> -> vector<8x512xf32>
    %353 = arith.addf %349, %352 : vector<8x512xf32>
    %354 = vector.extract_strided_slice %353 {offsets = [0, 0], sizes = [8, 128], strides = [1, 1]} : vector<8x512xf32> to vector<8x128xf32>
    %355 = arith.negf %354 : vector<8x128xf32>
    %356 = math.exp %355 : vector<8x128xf32>
    %cst_136 = arith.constant 1.000000e+00 : f32
    %357 = vector.broadcast %cst_136 : f32 to vector<8x128xf32>
    %358 = arith.addf %357, %356 : vector<8x128xf32>
    %359 = arith.divf %357, %358 : vector<8x128xf32>
    %360 = vector.extract_strided_slice %353 {offsets = [0, 128], sizes = [8, 128], strides = [1, 1]} : vector<8x512xf32> to vector<8x128xf32>
    %361 = arith.negf %360 : vector<8x128xf32>
    %362 = math.exp %361 : vector<8x128xf32>
    %cst_137 = arith.constant 1.000000e+00 : f32
    %363 = vector.broadcast %cst_137 : f32 to vector<8x128xf32>
    %364 = arith.addf %363, %362 : vector<8x128xf32>
    %365 = arith.divf %363, %364 : vector<8x128xf32>
    %366 = vector.extract_strided_slice %353 {offsets = [0, 256], sizes = [8, 128], strides = [1, 1]} : vector<8x512xf32> to vector<8x128xf32>
    %367 = math.tanh %366 : vector<8x128xf32>
    %368 = vector.extract_strided_slice %353 {offsets = [0, 384], sizes = [8, 128], strides = [1, 1]} : vector<8x512xf32> to vector<8x128xf32>
    %369 = arith.negf %368 : vector<8x128xf32>
    %370 = math.exp %369 : vector<8x128xf32>
    %cst_138 = arith.constant 1.000000e+00 : f32
    %371 = vector.broadcast %cst_138 : f32 to vector<8x128xf32>
    %372 = arith.addf %371, %370 : vector<8x128xf32>
    %373 = arith.divf %371, %372 : vector<8x128xf32>
    %374 = arith.mulf %365, %342 : vector<8x128xf32>
    %375 = arith.mulf %359, %367 : vector<8x128xf32>
    %376 = arith.addf %374, %375 : vector<8x128xf32>
    %377 = math.tanh %376 : vector<8x128xf32>
    %378 = arith.mulf %373, %377 : vector<8x128xf32>
    %379 = vector.broadcast %346 : i32 to vector<8x1xi32>
    %380 = arith.cmpi slt, %379, %10 : vector<8x1xi32>
    %cst_139 = arith.constant 0.000000e+00 : f32
    %381 = vector.shape_cast %380 : vector<8x1xi1> to vector<8x1xi1>
    %382 = vector.broadcast %381 : vector<8x1xi1> to vector<8x128xi1>
    %383 = vector.broadcast %cst_139 : f32 to vector<8x128xf32>
    %384 = arith.select %382, %378, %383 : vector<8x128xi1>, vector<8x128xf32>
    %c0_140 = arith.constant 0 : index
    %c0_141 = arith.constant 0 : index
    %c0_142 = arith.constant 0 : index
    %385 = vector.load %arg5[%c0_140, %c0_141, %c0_142] : memref<1x128x128xf32, #tpu.memory_space<vmem>>, vector<1x128x128xf32>
    %386 = vector.shape_cast %385 : vector<1x128x128xf32> to vector<128x128xf32>
    %cst_143 = arith.constant dense<0.000000e+00> : vector<8x128xf32>
    %387 = tpu.matmul %384, %386, %cst_143 {dimension_numbers = #tpu.dot_dimension_numbers<[1], [0], [0], [1], [0, 0, 1, 1], [], []>} : vector<8x128xf32>, vector<128x128xf32>, vector<8x128xf32> -> vector<8x128xf32>
    %c0_144 = arith.constant 0 : index
    %388 = arith.index_cast %346 : i32 to index
    %c0_145 = arith.constant 0 : index
    %c0_146 = arith.constant 0 : index
    %389 = vector.load %arg6[%c0_144, %388, %c0_145, %c0_146] : memref<1x8x8x128xf32, #tpu.memory_space<vmem>>, vector<1x1x8x128xf32>
    %390 = vector.shape_cast %389 : vector<1x1x8x128xf32> to vector<8x128xf32>
    %391 = vector.shape_cast %387 : vector<8x128xf32> to vector<1x1x8x128xf32>
    tpu.vector_store %arg6[%c0_144, %388, %c0_145, %c0_146], %391 {strides = array<i32>} : memref<1x8x8x128xf32, #tpu.memory_space<vmem>>, vector<1x1x8x128xf32>,
    %392 = vector.shape_cast %380 : vector<8x1xi1> to vector<8x1xi1>
    %393 = vector.broadcast %392 : vector<8x1xi1> to vector<8x128xi1>
    %394 = arith.select %393, %378, %339 : vector<8x128xi1>, vector<8x128xf32>
    %395 = vector.shape_cast %380 : vector<8x1xi1> to vector<8x1xi1>
    %396 = vector.broadcast %395 : vector<8x1xi1> to vector<8x128xi1>
    %397 = arith.select %396, %376, %342 : vector<8x128xi1>, vector<8x128xf32>
    %c7_i32_147 = arith.constant 7 : i32
    %c2_i32_148 = arith.constant 2 : i32
    %398 = arith.muli %c2_i32_148, %c7_i32_147 : i32
    %c7_i32_149 = arith.constant 7 : i32
    %399 = arith.subi %c7_i32_149, %398 : i32
    %400 = arith.muli %arg0, %399 : i32
    %401 = arith.addi %c7_i32_147, %400 : i32
    %c0_150 = arith.constant 0 : index
    %402 = arith.index_cast %401 : i32 to index
    %c0_151 = arith.constant 0 : index
    %c0_152 = arith.constant 0 : index
    %403 = vector.load %arg2[%c0_150, %402, %c0_151, %c0_152] : memref<1x8x8x512xf32, #tpu.memory_space<vmem>>, vector<1x1x8x512xf32>
    %404 = vector.shape_cast %403 : vector<1x1x8x512xf32> to vector<8x512xf32>
    %c0_153 = arith.constant 0 : index
    %c0_154 = arith.constant 0 : index
    %c0_155 = arith.constant 0 : index
    %405 = vector.load %arg4[%c0_153, %c0_154, %c0_155] : memref<1x128x512xf32, #tpu.memory_space<vmem>>, vector<1x128x512xf32>
    %406 = vector.shape_cast %405 : vector<1x128x512xf32> to vector<128x512xf32>
    %cst_156 = arith.constant dense<0.000000e+00> : vector<8x512xf32>
    %407 = tpu.matmul %394, %406, %cst_156 {dimension_numbers = #tpu.dot_dimension_numbers<[1], [0], [0], [1], [0, 0, 1, 1], [], []>} : vector<8x128xf32>, vector<128x512xf32>, vector<8x512xf32> -> vector<8x512xf32>
    %408 = arith.addf %404, %407 : vector<8x512xf32>
    %409 = vector.extract_strided_slice %408 {offsets = [0, 0], sizes = [8, 128], strides = [1, 1]} : vector<8x512xf32> to vector<8x128xf32>
    %410 = arith.negf %409 : vector<8x128xf32>
    %411 = math.exp %410 : vector<8x128xf32>
    %cst_157 = arith.constant 1.000000e+00 : f32
    %412 = vector.broadcast %cst_157 : f32 to vector<8x128xf32>
    %413 = arith.addf %412, %411 : vector<8x128xf32>
    %414 = arith.divf %412, %413 : vector<8x128xf32>
    %415 = vector.extract_strided_slice %408 {offsets = [0, 128], sizes = [8, 128], strides = [1, 1]} : vector<8x512xf32> to vector<8x128xf32>
    %416 = arith.negf %415 : vector<8x128xf32>
    %417 = math.exp %416 : vector<8x128xf32>
    %cst_158 = arith.constant 1.000000e+00 : f32
    %418 = vector.broadcast %cst_158 : f32 to vector<8x128xf32>
    %419 = arith.addf %418, %417 : vector<8x128xf32>
    %420 = arith.divf %418, %419 : vector<8x128xf32>
    %421 = vector.extract_strided_slice %408 {offsets = [0, 256], sizes = [8, 128], strides = [1, 1]} : vector<8x512xf32> to vector<8x128xf32>
    %422 = math.tanh %421 : vector<8x128xf32>
    %423 = vector.extract_strided_slice %408 {offsets = [0, 384], sizes = [8, 128], strides = [1, 1]} : vector<8x512xf32> to vector<8x128xf32>
    %424 = arith.negf %423 : vector<8x128xf32>
    %425 = math.exp %424 : vector<8x128xf32>
    %cst_159 = arith.constant 1.000000e+00 : f32
    %426 = vector.broadcast %cst_159 : f32 to vector<8x128xf32>
    %427 = arith.addf %426, %425 : vector<8x128xf32>
    %428 = arith.divf %426, %427 : vector<8x128xf32>
    %429 = arith.mulf %420, %397 : vector<8x128xf32>
    %430 = arith.mulf %414, %422 : vector<8x128xf32>
    %431 = arith.addf %429, %430 : vector<8x128xf32>
    %432 = math.tanh %431 : vector<8x128xf32>
    %433 = arith.mulf %428, %432 : vector<8x128xf32>
    %434 = vector.broadcast %401 : i32 to vector<8x1xi32>
    %435 = arith.cmpi slt, %434, %10 : vector<8x1xi32>
    %cst_160 = arith.constant 0.000000e+00 : f32
    %436 = vector.shape_cast %435 : vector<8x1xi1> to vector<8x1xi1>
    %437 = vector.broadcast %436 : vector<8x1xi1> to vector<8x128xi1>
    %438 = vector.broadcast %cst_160 : f32 to vector<8x128xf32>
    %439 = arith.select %437, %433, %438 : vector<8x128xi1>, vector<8x128xf32>
    %c0_161 = arith.constant 0 : index
    %c0_162 = arith.constant 0 : index
    %c0_163 = arith.constant 0 : index
    %440 = vector.load %arg5[%c0_161, %c0_162, %c0_163] : memref<1x128x128xf32, #tpu.memory_space<vmem>>, vector<1x128x128xf32>
    %441 = vector.shape_cast %440 : vector<1x128x128xf32> to vector<128x128xf32>
    %cst_164 = arith.constant dense<0.000000e+00> : vector<8x128xf32>
    %442 = tpu.matmul %439, %441, %cst_164 {dimension_numbers = #tpu.dot_dimension_numbers<[1], [0], [0], [1], [0, 0, 1, 1], [], []>} : vector<8x128xf32>, vector<128x128xf32>, vector<8x128xf32> -> vector<8x128xf32>
    %c0_165 = arith.constant 0 : index
    %443 = arith.index_cast %401 : i32 to index
    %c0_166 = arith.constant 0 : index
    %c0_167 = arith.constant 0 : index
    %444 = vector.load %arg6[%c0_165, %443, %c0_166, %c0_167] : memref<1x8x8x128xf32, #tpu.memory_space<vmem>>, vector<1x1x8x128xf32>
    %445 = vector.shape_cast %444 : vector<1x1x8x128xf32> to vector<8x128xf32>
    %446 = vector.shape_cast %442 : vector<8x128xf32> to vector<1x1x8x128xf32>
    tpu.vector_store %arg6[%c0_165, %443, %c0_166, %c0_167], %446 {strides = array<i32>} : memref<1x8x8x128xf32, #tpu.memory_space<vmem>>, vector<1x1x8x128xf32>,
    %447 = vector.shape_cast %435 : vector<8x1xi1> to vector<8x1xi1>
    %448 = vector.broadcast %447 : vector<8x1xi1> to vector<8x128xi1>
    %449 = arith.select %448, %433, %394 : vector<8x128xi1>, vector<8x128xf32>
    %450 = vector.shape_cast %435 : vector<8x1xi1> to vector<8x1xi1>
    %451 = vector.broadcast %450 : vector<8x1xi1> to vector<8x128xi1>
    %452 = arith.select %451, %431, %397 : vector<8x128xi1>, vector<8x128xf32>
    %c8_i32_168 = arith.constant 8 : i32
    %c0_169 = arith.constant 0 : index
    %c0_170 = arith.constant 0 : index
    %453 = vector.load %arg7[%c0_169, %c0_170] : memref<8x128xf32, #tpu.memory_space<vmem>>, vector<8x128xf32>
    tpu.vector_store %arg7[%c0_169, %c0_170], %449 {strides = array<i32>} : memref<8x128xf32, #tpu.memory_space<vmem>>, vector<8x128xf32>,
    %c0_171 = arith.constant 0 : index
    %c0_172 = arith.constant 0 : index
    %454 = vector.load %arg8[%c0_171, %c0_172] : memref<8x128xf32, #tpu.memory_space<vmem>>, vector<8x128xf32>
    tpu.vector_store %arg8[%c0_171, %c0_172], %452 {strides = array<i32>} : memref<8x128xf32, #tpu.memory_space<vmem>>, vector<8x128xf32>,
    return
  }
  func.func @transform_0(%arg0: i32, %arg1: i32) -> (i32, i32, i32, i32) {
    %c2_i32 = arith.constant 2 : i32
    %0 = arith.muli %c2_i32, %arg1 : i32
    %c0_i32 = arith.constant 0 : i32
    %1 = arith.subi %c0_i32, %0 : i32
    %2 = arith.muli %arg0, %1 : i32
    %3 = arith.addi %arg1, %2 : i32
    %c0_i32_0 = arith.constant 0 : i32
    %c0_i32_1 = arith.constant 0 : i32
    %c0_i32_2 = arith.constant 0 : i32
    return %arg0, %3, %c0_i32_0, %c0_i32_1 : i32, i32, i32, i32
  }
  func.func @transform_1(%arg0: i32, %arg1: i32) -> (i32, i32) {
    %c0_i32 = arith.constant 0 : i32
    %c0_i32_0 = arith.constant 0 : i32
    %c0_i32_1 = arith.constant 0 : i32
    return %c0_i32, %c0_i32_0 : i32, i32
  }
  func.func @transform_2(%arg0: i32, %arg1: i32) -> (i32, i32, i32) {
    %c0_i32 = arith.constant 0 : i32
    %c0_i32_0 = arith.constant 0 : i32
    %c0_i32_1 = arith.constant 0 : i32
    return %arg0, %c0_i32, %c0_i32_0 : i32, i32, i32
  }
  func.func @transform_3(%arg0: i32, %arg1: i32) -> (i32, i32, i32) {
    %c0_i32 = arith.constant 0 : i32
    %c0_i32_0 = arith.constant 0 : i32
    %c0_i32_1 = arith.constant 0 : i32
    return %arg0, %c0_i32, %c0_i32_0 : i32, i32, i32
  }
  func.func @transform_4(%arg0: i32, %arg1: i32) -> (i32, i32, i32, i32) {
    %c2_i32 = arith.constant 2 : i32
    %0 = arith.muli %c2_i32, %arg1 : i32
    %c0_i32 = arith.constant 0 : i32
    %1 = arith.subi %c0_i32, %0 : i32
    %2 = arith.muli %arg0, %1 : i32
    %3 = arith.addi %arg1, %2 : i32
    %c0_i32_0 = arith.constant 0 : i32
    %c0_i32_1 = arith.constant 0 : i32
    %c0_i32_2 = arith.constant 0 : i32
    return %arg0, %3, %c0_i32_0, %c0_i32_1 : i32, i32, i32, i32
  }
}

</mosaic_0001>

<llo_original>
// kernel: bilstmp_forward.2
$region0: #{bilstmp_forward.2}
  #allocation0 [shape = 'u32[]', space=smem, size = 0x4, offset = 0x4, fixed_abs, tag = 'smem constant byte address 0x4 - core index']
  #allocation1 [shape = 'u32[144,128]{1,0:T(1,128)}', space=vmem, size = 0x12000, scoped, tag = 'internal scratch']
  %s0 = inlined_call_operand.vmem [shape: f32[64,16], index: 0, kind: input, shape index: {}]
  %s1 = inlined_call_operand.vmem [shape: f32[2,16,512], index: 1, kind: input, shape index: {}]
  %s2 = inlined_call_operand.vmem [shape: f32[2,1,512], index: 2, kind: input, shape index: {}]
  %s3 = inlined_call_operand.vmem [shape: f32[2,64,512], index: 3, kind: output, shape index: {}]
  %s4 = sld [smem:[#allocation0]]
  $region45: #{bilstmp_forward.2} parent=0
    _
  %s6 = ssub.s32 1, %s4
  %s7 = scalar_select 0, %s6, %s4
  loop: start=0, step=1, limit=4
  $region2: #{bilstmp_forward.2} parent=0 // loop_pre_header
    _
  $region3: #{bilstmp_forward.2} parent=0 // loop_header
    %s9 = sphi 0, %s13
    %p10 = scmp.ge.s32.totalorder %s9, 4
    %s16 = sphi 0, %s28
    %s17 = sphi 0, %s24
    %s18 = sphi 0, %s16
    %s19 = sphi 0, %s17
    %s20 = sphi 0, %s18
    %s21 = sphi 0, %s19
    %s31 = sphi 0, %s33
    %s34 = sphi 0, %s31
    %s35 = sphi 0, %s34
    %s51 = sphi 0, %s35
    %s57 = sphi 0, %s59
    %s60 = sphi 0, %s57
    %s61 = sphi 0, %s60
    %s77 = sphi 0, %s61
    %s83 = sphi 0, %s85
    %s86 = sphi 0, %s83
    %s87 = sphi 0, %s86
    %s103 = sphi 0, %s87
    %s111 = sphi 0, %s113
    %s114 = sphi 0, %s111
    %s115 = sphi 0, %s114
    %s131 = sphi 0, %s115
  $region4: #{bilstmp_forward.2} parent=0 // loop_header_branch
    %12 = sbr.rel (%p10) target = $region8
  $region5: #{bilstmp_forward.2} parent=0 // loop_body
    %s14 = ssub.s32 %s9, 1
    %s15 = ssub.s32 %s9, 2
    %s22 = sadd.s32 1, %s17
    %p23 = scmp.ge.s32.totalorder %s22, 1
    %s24 = scalar_select %p23, 0, %s22
    %s25 = sadd.s32 1, %s16
    %s26 = scalar_select %p23, %s25, %s16
    %p27 = scmp.ge.s32.totalorder %s26, 2
    %s28 = scalar_select %p27, 0, %s26
    %s29 = ssub.s32 %s17, %s24
    %p30 = scmp.eq.s32.totalorder %s29, 0
    %s32 = sadd.s32 %s31, 1
    %s33 = scalar_select %p30, %s31, %s32
    %p36 = pneg %p30
    %p37 = scmp.eq.s32.totalorder %s9, 1
    %p38 = por %p36, %p37
    %p39 = scmp.ne.s32.totalorder %s31, %s34
    %p40 = scmp.eq.s32.totalorder %s9, 0
    %p41 = por %p39, %p40
    %p42 = scmp.ne.s32.totalorder %s31, %s34
    %p43 = scmp.eq.s32.totalorder %s14, 1
    %p44 = por %p42, %p43
    %p45 = scmp.ne.s32.totalorder %s34, %s35
    %p46 = scmp.eq.s32.totalorder %s14, 0
    %p47 = por %p45, %p46
    %p48 = scmp.ne.s32.totalorder %s34, %s35
    %p49 = scmp.eq.s32.totalorder %s15, 1
    %p50 = por %p48, %p49
    %p52 = scmp.ne.s32.totalorder %s35, %s51
    %p53 = scmp.eq.s32.totalorder %s15, 0
    %p54 = por %p52, %p53
    %s55 = ssub.s32 %s16, %s28
    %p56 = scmp.eq.s32.totalorder %s55, 0
    %s58 = sadd.s32 %s57, 1
    %s59 = scalar_select %p56, %s57, %s58
    %p62 = pneg %p56
    %p63 = scmp.eq.s32.totalorder %s9, 1
    %p64 = por %p62, %p63
    %p65 = scmp.ne.s32.totalorder %s57, %s60
    %p66 = scmp.eq.s32.totalorder %s9, 0
    %p67 = por %p65, %p66
    %p68 = scmp.ne.s32.totalorder %s57, %s60
    %p69 = scmp.eq.s32.totalorder %s14, 1
    %p70 = por %p68, %p69
    %p71 = scmp.ne.s32.totalorder %s60, %s61
    %p72 = scmp.eq.s32.totalorder %s14, 0
    %p73 = por %p71, %p72
    %p74 = scmp.ne.s32.totalorder %s60, %s61
    %p75 = scmp.eq.s32.totalorder %s15, 1
    %p76 = por %p74, %p75
    %p78 = scmp.ne.s32.totalorder %s61, %s77
    %p79 = scmp.eq.s32.totalorder %s15, 0
    %p80 = por %p78, %p79
    %s81 = ssub.s32 %s16, %s28
    %p82 = scmp.eq.s32.totalorder %s81, 0
    %s84 = sadd.s32 %s83, 1
    %s85 = scalar_select %p82, %s83, %s84
    %p88 = pneg %p82
    %p89 = scmp.eq.s32.totalorder %s9, 1
    %p90 = por %p88, %p89
    %p91 = scmp.ne.s32.totalorder %s83, %s86
    %p92 = scmp.eq.s32.totalorder %s9, 0
    %p93 = por %p91, %p92
    %p94 = scmp.ne.s32.totalorder %s83, %s86
    %p95 = scmp.eq.s32.totalorder %s14, 1
    %p96 = por %p94, %p95
    %p97 = scmp.ne.s32.totalorder %s86, %s87
    %p98 = scmp.eq.s32.totalorder %s14, 0
    %p99 = por %p97, %p98
    %p100 = scmp.ne.s32.totalorder %s86, %s87
    %p101 = scmp.eq.s32.totalorder %s15, 1
    %p102 = por %p100, %p101
    %p104 = scmp.ne.s32.totalorder %s87, %s103
    %p105 = scmp.eq.s32.totalorder %s15, 0
    %p106 = por %p104, %p105
    %s107 = ssub.s32 %s16, %s28
    %s108 = ssub.s32 %s17, %s24
    %s109 = sor.u32 %s107, %s108
    %p110 = scmp.eq.s32.totalorder %s109, 0
    %s112 = sadd.s32 %s111, 1
    %s113 = scalar_select %p110, %s111, %s112
    %p116 = pneg %p110
    %p117 = scmp.eq.s32.totalorder %s9, 1
    %p118 = por %p116, %p117
    %p119 = scmp.ne.s32.totalorder %s111, %s114
    %p120 = scmp.eq.s32.totalorder %s9, 0
    %p121 = por %p119, %p120
    %p122 = scmp.ne.s32.totalorder %s111, %s114
    %p123 = scmp.eq.s32.totalorder %s14, 1
    %p124 = por %p122, %p123
    %p125 = scmp.ne.s32.totalorder %s114, %s115
    %p126 = scmp.eq.s32.totalorder %s14, 0
    %p127 = por %p125, %p126
    %p128 = scmp.ne.s32.totalorder %s114, %s115
    %p129 = scmp.eq.s32.totalorder %s15, 1
    %p130 = por %p128, %p129
    %p132 = scmp.ne.s32.totalorder %s115, %s131
    %p133 = scmp.eq.s32.totalorder %s15, 0
    %p134 = por %p132, %p133
    %p135 = scmp.le.s32.totalorder 1, %s9
    %p136 = scmp.lt.s32.totalorder %s9, 3
    %p137 = pnand %p135, %p136
    %p138 = pneg %p137
    // Predicated region
    $region9: #{bilstmp_forward.2} parent=5 // pred_check
      _
    $region10: #{bilstmp_forward.2} parent=5 // pred_check_branch
      %140 = sbr.rel (%p137) target = $region12
    $region11: #{bilstmp_forward.2} parent=5 // pred_region
      %s141 = ssub.s32 %s9, 1
      // Predicated region
      $region13: #{bilstmp_forward.2} parent=11 // pred_check
        %p142 = pneg %p47
      $region14: #{bilstmp_forward.2} parent=11 // pred_check_branch
        %144 = sbr.rel (%p142) target = $region16
      $region15: #{bilstmp_forward.2} parent=11 // pred_region
        %s145 = smul.u32 8, %s19
        %p146 = scmp.lt.s32.totalorder %s145, 7
        %s147 = scalar_select %p146, %s145, 7
        %s148 = smul.addr %s147, 8
        %s149 = scalar_lea.vmem %s0, %s148
        %s150 = smul.u32 8, %s19
      $region16: #{bilstmp_forward.2} parent=11 // pred_fallthru
        _
    $region12: #{bilstmp_forward.2} parent=5 // pred_fallthru
      _
    %p151 = scmp.lt.s32.totalorder %s9, 2
    // Predicated region
    $region17: #{bilstmp_forward.2} parent=5 // pred_check
      %p152 = pneg %p151
    $region18: #{bilstmp_forward.2} parent=5 // pred_check_branch
      %154 = sbr.rel (%p152) target = $region20
    $region19: #{bilstmp_forward.2} parent=5 // pred_region
      // Predicated region
      $region21: #{bilstmp_forward.2} parent=19 // pred_check
        %p155 = pneg %p67
      $region22: #{bilstmp_forward.2} parent=19 // pred_check_branch
        %157 = sbr.rel (%p155) target = $region24
      $region23: #{bilstmp_forward.2} parent=19 // pred_region
        %p158 = scmp.lt.s32.totalorder %s16, 1
        %s159 = scalar_select %p158, %s16, 1
        %s160 = smul.addr %s159, 8
        %s161 = smul.addr %s160, 8
        %s162 = scalar_lea.vmem %s1, %s161
      $region24: #{bilstmp_forward.2} parent=19 // pred_fallthru
        _
      // Predicated region
      $region25: #{bilstmp_forward.2} parent=19 // pred_check
        %p163 = pneg %p93
      $region26: #{bilstmp_forward.2} parent=19 // pred_check_branch
        %165 = sbr.rel (%p163) target = $region28
      $region27: #{bilstmp_forward.2} parent=19 // pred_region
        %p166 = scmp.lt.s32.totalorder %s16, 1
        %s167 = scalar_select %p166, %s16, 1
        %s168 = smul.addr %s167, 4
        %s169 = scalar_lea.vmem %s2, %s168
      $region28: #{bilstmp_forward.2} parent=19 // pred_fallthru
        _
    $region20: #{bilstmp_forward.2} parent=5 // pred_fallthru
      _
    %p170 = scmp.le.s32.totalorder 1, %s9
    %p171 = scmp.lt.s32.totalorder %s9, 3
    %p172 = pnand %p170, %p171
    %p173 = pneg %p172
    // Predicated region
    $region29: #{bilstmp_forward.2} parent=5 // pred_check
      _
    $region30: #{bilstmp_forward.2} parent=5 // pred_check_branch
      %175 = sbr.rel (%p172) target = $region32
    $region31: #{bilstmp_forward.2} parent=5 // pred_region
      %s176 = ssub.s32 %s9, 1
      %s177 = smul.u32 8, %s19
      %p178 = scmp.lt.s32.totalorder %s177, 7
      %s179 = scalar_select %p178, %s177, 7
      %s180 = smul.addr %s179, 8
      %s181 = scalar_lea.vmem %s0, %s180
      %p182 = pneg %p47
      %p183 = pneg %p44
      %p184 = scmp.lt.s32.totalorder %s18, 1
      %s185 = scalar_select %p184, %s18, 1
      %s186 = smul.addr %s185, 8
      %s187 = smul.addr %s186, 8
      %s188 = scalar_lea.vmem %s1, %s187
      %p189 = pneg %p73
      %p190 = pneg %p70
      %p191 = scmp.lt.s32.totalorder %s18, 1
      %s192 = scalar_select %p191, %s18, 1
      %s193 = smul.addr %s192, 4
      %s194 = scalar_lea.vmem %s2, %s193
      %p195 = pneg %p99
      %p196 = pneg %p96
      %p197 = pneg %p127
      %p198 = pneg %p124
      %s199 = smul.u32 8, %s19
      %p200 = scmp.lt.s32.totalorder %s18, 1
      %s201 = scalar_select %p200, %s18, 1
      %p202 = scmp.lt.s32.totalorder %s199, 7
      %s203 = scalar_select %p202, %s199, 7
      %s204 = smul.addr %s203, 4
      %s205 = smul.addr %s201, 32
      %s206 = sadd.s32 %s204, %s205
      %s207 = smul.addr %s206, 8
      %s208 = scalar_lea.vmem %s3, %s207
      %s209 = smul.u32 8, %s19
      %p210 = scmp.lt.s32.totalorder %s209, 7
      %s211 = scalar_select %p210, %s209, 7
      %s212 = smul.addr %s211, 8
      %s213 = scalar_lea.vmem %s0, %s212
      %s214 = smul.u32 8, %s19
      %p215 = scmp.lt.s32.totalorder %s18, 1
      %s216 = scalar_select %p215, %s18, 1
      %s217 = smul.addr %s216, 8
      %s218 = smul.addr %s217, 8
      %s219 = scalar_lea.vmem %s1, %s218
      %p220 = scmp.lt.s32.totalorder %s18, 1
      %s221 = scalar_select %p220, %s18, 1
      %s222 = smul.addr %s221, 4
      %s223 = scalar_lea.vmem %s2, %s222
      %s224 = smul.u32 8, %s19
      %p225 = scmp.lt.s32.totalorder %s18, 1
      %s226 = scalar_select %p225, %s18, 1
      %p227 = scmp.lt.s32.totalorder %s224, 7
      %s228 = scalar_select %p227, %s224, 7
      %s229 = smul.addr %s228, 4
      %s230 = smul.addr %s226, 32
      %s231 = sadd.s32 %s229, %s230
      %s232 = smul.addr %s231, 8
      %s233 = scalar_lea.vmem %s3, %s232
      %s234 = smul.u32 8, %s19
      %v235 = vld [vmem:[%s213] sm:$0xff]
      %v236 = vld [vmem:[%s213 + $0x8] sm:$0xff]
      %v237 = vld [vmem:[%s213 + $0x10] sm:$0xff]
      %v238 = vld [vmem:[%s213 + $0x18] sm:$0xff]
      %v239 = vld [vmem:[%s213 + $0x20] sm:$0xff]
      %v240 = vld [vmem:[%s213 + $0x28] sm:$0xff]
      %v241 = vld [vmem:[%s213 + $0x30] sm:$0xff]
      %v242 = vld [vmem:[%s213 + $0x38] sm:$0xff]
      %v243 = vld [vmem:[%s219] sm:$0xff]
      %v244 = vld [vmem:[%s219 + $0x8] sm:$0xff]
      %v245 = vld [vmem:[%s219 + $0x10] sm:$0xff]
      %v246 = vld [vmem:[%s219 + $0x18] sm:$0xff]
      %v247 = vld [vmem:[%s219 + $0x20] sm:$0xff]
      %v248 = vld [vmem:[%s219 + $0x28] sm:$0xff]
      %v249 = vld [vmem:[%s219 + $0x30] sm:$0xff]
      %v250 = vld [vmem:[%s219 + $0x38] sm:$0xff]
      %v251 = vld [vmem:[%s223] sm:$0xf]
      %v253 = vlaneseq
      %v254 = vshrl.u32 %v253, 7
      %v255 = vsub.s32 0, %v254
      %v256 = vrot.slane %v251, %v255
      %v257 = vlaneseq
      %v258 = vshrl.u32 %v257, 7
      %v259 = vsub.s32 1, %v258
      %v260 = vrot.slane %v251, %v259
      %v261 = vlaneseq
      %v262 = vshrl.u32 %v261, 7
      %v263 = vsub.s32 2, %v262
      %v264 = vrot.slane %v251, %v263
      %v265 = vlaneseq
      %v266 = vshrl.u32 %v265, 7
      %v267 = vsub.s32 3, %v266
      %v268 = vrot.slane %v251, %v267
      %vm273 = vcmask 130048
      %v275 = vsel %vm273, %v235, 0
      %v278 = vsel %vm273, %v236, 0
      %v281 = vsel %vm273, %v237, 0
      %v284 = vsel %vm273, %v238, 0
      %v287 = vsel %vm273, %v239, 0
      %v290 = vsel %vm273, %v240, 0
      %v293 = vsel %vm273, %v241, 0
      %v296 = vsel %vm273, %v242, 0
      %298 = vmatprep.subr.mxu0 0.0
      %299 = vmatpush1.msra.mxu0 0.0
      %300 = vmatprep.subr.mxu0 0.0
      %301 = vmatpush1.msra.mxu0 0.0
      %302 = vmatprep.subr.mxu0 0.0
      %303 = vmatpush1.msra.mxu0 0.0
      %304 = vmatprep.subr.mxu0 0.0
      %305 = vmatpush1.msra.mxu0 0.0
      %306 = vmatprep.subr.mxu0 0.0
      %307 = vmatpush1.msra.mxu0 0.0
      %308 = vmatprep.subr.mxu0 0.0
      %309 = vmatpush1.msra.mxu0 0.0
      %310 = vmatprep.subr.mxu0 0.0
      %311 = vmatpush1.msra.mxu0 0.0
      %312 = vmatprep.subr.mxu0 0.0
      %313 = vmatpush1.msra.mxu0 0.0
      %314 = vmatprep.subr.mxu0 0.0
      %315 = vmatpush1.msra.mxu0 0.0
      %316 = vmatprep.subr.mxu0 0.0
      %317 = vmatpush1.msra.mxu0 0.0
      %318 = vmatprep.subr.mxu0 0.0
      %319 = vmatpush1.msra.mxu0 0.0
      %320 = vmatprep.subr.mxu0 0.0
      %321 = vmatpush1.msra.mxu0 0.0
      %322 = vmatprep.subr.mxu0 0.0
      %323 = vmatpush1.msra.mxu0 0.0
      %324 = vmatprep.subr.mxu0 0.0
      %325 = vmatpush1.msra.mxu0 0.0
      %326 = vmatprep.subr.mxu0 %v248
      %327 = vmatpush1.msra.mxu0 %v247
      %328 = vmatprep.subr.mxu0 %v244
      %329 = vmatpush1.msra.mxu0 %v243
      %330 = vmatprep.subr.mxu0 0.0
      %331 = vmatpush2.msra.mxu0 0.0
      %332 = vmatprep.subr.mxu0 0.0
      %333 = vmatpush2.msra.mxu0 0.0
      %334 = vmatprep.subr.mxu0 0.0
      %335 = vmatpush2.msra.mxu0 0.0
      %336 = vmatprep.subr.mxu0 0.0
      %337 = vmatpush2.msra.mxu0 0.0
      %338 = vmatprep.subr.mxu0 0.0
      %339 = vmatpush2.msra.mxu0 0.0
      %340 = vmatprep.subr.mxu0 0.0
      %341 = vmatpush2.msra.mxu0 0.0
      %342 = vmatprep.subr.mxu0 0.0
      %343 = vmatpush2.msra.mxu0 0.0
      %344 = vmatprep.subr.mxu0 0.0
      %345 = vmatpush2.msra.mxu0 0.0
      %346 = vmatprep.subr.mxu0 0.0
      %347 = vmatpush2.msra.mxu0 0.0
      %348 = vmatprep.subr.mxu0 0.0
      %349 = vmatpush2.msra.mxu0 0.0
      %350 = vmatprep.subr.mxu0 0.0
      %351 = vmatpush2.msra.mxu0 0.0
      %352 = vmatprep.subr.mxu0 0.0
      %353 = vmatpush2.msra.mxu0 0.0
      %354 = vmatprep.subr.mxu0 0.0
      %355 = vmatpush2.msra.mxu0 0.0
      %356 = vmatprep.subr.mxu0 0.0
      %357 = vmatpush2.msra.mxu0 0.0
      %358 = vmatprep.subr.mxu0 0.0
      %359 = vmatpush2.msra.mxu0 0.0
      %360 = vmatprep.subr.mxu0 0.0
      %361 = vmatpush2.msra.mxu0 0.0
      %362 = vmatprep.mubr.f32.mxu0 0.0
      %363 = vmatmul.mubr.f32.gmra.mxu0 %v275
      %v364 = vpop.f32.mrf.mxu0
      %v365 = vadd.f32 %v256, %v364
      %v366 = vpop.f32.mrf.mxu0
      %v367 = vadd.f32 %v260, %v366
      %368 = vmatprep.mubr.f32.mxu0 0.0
      %369 = vmatmul.mubr.f32.gmra.mxu0 %v278
      %v370 = vpop.f32.mrf.mxu0
      %v371 = vadd.f32 %v256, %v370
      %v372 = vpop.f32.mrf.mxu0
      %v373 = vadd.f32 %v260, %v372
      %374 = vmatprep.mubr.f32.mxu0 0.0
      %375 = vmatmul.mubr.f32.gmra.mxu0 %v281
      %v376 = vpop.f32.mrf.mxu0
      %v377 = vadd.f32 %v256, %v376
      %v378 = vpop.f32.mrf.mxu0
      %v379 = vadd.f32 %v260, %v378
      %380 = vmatprep.mubr.f32.mxu0 0.0
      %381 = vmatmul.mubr.f32.gmra.mxu0 %v284
      %v382 = vpop.f32.mrf.mxu0
      %v383 = vadd.f32 %v256, %v382
      %v384 = vpop.f32.mrf.mxu0
      %v385 = vadd.f32 %v260, %v384
      %386 = vmatprep.mubr.f32.mxu0 0.0
      %387 = vmatmul.mubr.f32.gmra.mxu0 %v287
      %v388 = vpop.f32.mrf.mxu0
      %v389 = vadd.f32 %v256, %v388
      %v390 = vpop.f32.mrf.mxu0
      %v391 = vadd.f32 %v260, %v390
      %392 = vmatprep.mubr.f32.mxu0 0.0
      %393 = vmatmul.mubr.f32.gmra.mxu0 %v290
      %v394 = vpop.f32.mrf.mxu0
      %v395 = vadd.f32 %v256, %v394
      %v396 = vpop.f32.mrf.mxu0
      %v397 = vadd.f32 %v260, %v396
      %398 = vmatprep.mubr.f32.mxu0 0.0
      %399 = vmatmul.mubr.f32.gmra.mxu0 %v293
      %v400 = vpop.f32.mrf.mxu0
      %v401 = vadd.f32 %v256, %v400
      %v402 = vpop.f32.mrf.mxu0
      %v403 = vadd.f32 %v260, %v402
      %404 = vmatprep.mubr.f32.mxu0 0.0
      %405 = vmatmul.mubr.f32.gmra.mxu0 %v296
      %v406 = vpop.f32.mrf.mxu0
      %v407 = vadd.f32 %v256, %v406
      %v408 = vpop.f32.mrf.mxu0
      %v409 = vadd.f32 %v260, %v408
      %410 = vdwg.mxu0
      %411 = vmatprep.subr.mxu0 0.0
      %412 = vmatpush1.msra.mxu0 0.0
      %413 = vmatprep.subr.mxu0 0.0
      %414 = vmatpush1.msra.mxu0 0.0
      %415 = vmatprep.subr.mxu0 0.0
      %416 = vmatpush1.msra.mxu0 0.0
      %417 = vmatprep.subr.mxu0 0.0
      %418 = vmatpush1.msra.mxu0 0.0
      %419 = vmatprep.subr.mxu0 0.0
      %420 = vmatpush1.msra.mxu0 0.0
      %421 = vmatprep.subr.mxu0 0.0
      %422 = vmatpush1.msra.mxu0 0.0
      %423 = vmatprep.subr.mxu0 0.0
      %424 = vmatpush1.msra.mxu0 0.0
      %425 = vmatprep.subr.mxu0 0.0
      %426 = vmatpush1.msra.mxu0 0.0
      %427 = vmatprep.subr.mxu0 0.0
      %428 = vmatpush1.msra.mxu0 0.0
      %429 = vmatprep.subr.mxu0 0.0
      %430 = vmatpush1.msra.mxu0 0.0
      %431 = vmatprep.subr.mxu0 0.0
      %432 = vmatpush1.msra.mxu0 0.0
      %433 = vmatprep.subr.mxu0 0.0
      %434 = vmatpush1.msra.mxu0 0.0
      %435 = vmatprep.subr.mxu0 0.0
      %436 = vmatpush1.msra.mxu0 0.0
      %437 = vmatprep.subr.mxu0 0.0
      %438 = vmatpush1.msra.mxu0 0.0
      %439 = vmatprep.subr.mxu0 %v250
      %440 = vmatpush1.msra.mxu0 %v249
      %441 = vmatprep.subr.mxu0 %v246
      %442 = vmatpush1.msra.mxu0 %v245
      %443 = vmatprep.subr.mxu0 0.0
      %444 = vmatpush2.msra.mxu0 0.0
      %445 = vmatprep.subr.mxu0 0.0
      %446 = vmatpush2.msra.mxu0 0.0
      %447 = vmatprep.subr.mxu0 0.0
      %448 = vmatpush2.msra.mxu0 0.0
      %449 = vmatprep.subr.mxu0 0.0
      %450 = vmatpush2.msra.mxu0 0.0
      %451 = vmatprep.subr.mxu0 0.0
      %452 = vmatpush2.msra.mxu0 0.0
      %453 = vmatprep.subr.mxu0 0.0
      %454 = vmatpush2.msra.mxu0 0.0
      %455 = vmatprep.subr.mxu0 0.0
      %456 = vmatpush2.msra.mxu0 0.0
      %457 = vmatprep.subr.mxu0 0.0
      %458 = vmatpush2.msra.mxu0 0.0
      %459 = vmatprep.subr.mxu0 0.0
      %460 = vmatpush2.msra.mxu0 0.0
      %461 = vmatprep.subr.mxu0 0.0
      %462 = vmatpush2.msra.mxu0 0.0
      %463 = vmatprep.subr.mxu0 0.0
      %464 = vmatpush2.msra.mxu0 0.0
      %465 = vmatprep.subr.mxu0 0.0
      %466 = vmatpush2.msra.mxu0 0.0
      %467 = vmatprep.subr.mxu0 0.0
      %468 = vmatpush2.msra.mxu0 0.0
      %469 = vmatprep.subr.mxu0 0.0
      %470 = vmatpush2.msra.mxu0 0.0
      %471 = vmatprep.subr.mxu0 0.0
      %472 = vmatpush2.msra.mxu0 0.0
      %473 = vmatprep.subr.mxu0 0.0
      %474 = vmatpush2.msra.mxu0 0.0
      %475 = vmatprep.mubr.f32.mxu0 0.0
      %476 = vmatmul.mubr.f32.gmra.mxu0 %v275
      %v477 = vpop.f32.mrf.mxu0
      %v478 = vadd.f32 %v264, %v477
      %v479 = vpop.f32.mrf.mxu0
      %v480 = vadd.f32 %v268, %v479
      %481 = vmatprep.mubr.f32.mxu0 0.0
      %482 = vmatmul.mubr.f32.gmra.mxu0 %v278
      %v483 = vpop.f32.mrf.mxu0
      %v484 = vadd.f32 %v264, %v483
      %v485 = vpop.f32.mrf.mxu0
      %v486 = vadd.f32 %v268, %v485
      %487 = vmatprep.mubr.f32.mxu0 0.0
      %488 = vmatmul.mubr.f32.gmra.mxu0 %v281
      %v489 = vpop.f32.mrf.mxu0
      %v490 = vadd.f32 %v264, %v489
      %v491 = vpop.f32.mrf.mxu0
      %v492 = vadd.f32 %v268, %v491
      %493 = vmatprep.mubr.f32.mxu0 0.0
      %494 = vmatmul.mubr.f32.gmra.mxu0 %v284
      %v495 = vpop.f32.mrf.mxu0
      %v496 = vadd.f32 %v264, %v495
      %v497 = vpop.f32.mrf.mxu0
      %v498 = vadd.f32 %v268, %v497
      %499 = vmatprep.mubr.f32.mxu0 0.0
      %500 = vmatmul.mubr.f32.gmra.mxu0 %v287
      %v501 = vpop.f32.mrf.mxu0
      %v502 = vadd.f32 %v264, %v501
      %v503 = vpop.f32.mrf.mxu0
      %v504 = vadd.f32 %v268, %v503
      %505 = vmatprep.mubr.f32.mxu0 0.0
      %506 = vmatmul.mubr.f32.gmra.mxu0 %v290
      %v507 = vpop.f32.mrf.mxu0
      %v508 = vadd.f32 %v264, %v507
      %v509 = vpop.f32.mrf.mxu0
      %v510 = vadd.f32 %v268, %v509
      %511 = vmatprep.mubr.f32.mxu0 0.0
      %512 = vmatmul.mubr.f32.gmra.mxu0 %v293
      %v513 = vpop.f32.mrf.mxu0
      %v514 = vadd.f32 %v264, %v513
      %v515 = vpop.f32.mrf.mxu0
      %v516 = vadd.f32 %v268, %v515
      %517 = vmatprep.mubr.f32.mxu0 0.0
      %518 = vmatmul.mubr.f32.gmra.mxu0 %v296
      %v519 = vpop.f32.mrf.mxu0
      %v520 = vadd.f32 %v264, %v519
      %v521 = vpop.f32.mrf.mxu0
      %v522 = vadd.f32 %v268, %v521
      %523 = vdwg.mxu0
      %524 = vst [vmem:[%s233] sm:$0xff] %v365
      %525 = vst [vmem:[%s233 + $0x8] sm:$0xff] %v367
      %526 = vst [vmem:[%s233 + $0x10] sm:$0xff] %v478
      %527 = vst [vmem:[%s233 + $0x18] sm:$0xff] %v480
      %528 = vst [vmem:[%s233 + $0x20] sm:$0xff] %v371
      %529 = vst [vmem:[%s233 + $0x28] sm:$0xff] %v373
      %530 = vst [vmem:[%s233 + $0x30] sm:$0xff] %v484
      %531 = vst [vmem:[%s233 + $0x38] sm:$0xff] %v486
      %532 = vst [vmem:[%s233 + $0x40] sm:$0xff] %v377
      %533 = vst [vmem:[%s233 + $0x48] sm:$0xff] %v379
      %534 = vst [vmem:[%s233 + $0x50] sm:$0xff] %v490
      %535 = vst [vmem:[%s233 + $0x58] sm:$0xff] %v492
      %536 = vst [vmem:[%s233 + $0x60] sm:$0xff] %v383
      %537 = vst [vmem:[%s233 + $0x68] sm:$0xff] %v385
      %538 = vst [vmem:[%s233 + $0x70] sm:$0xff] %v496
      %539 = vst [vmem:[%s233 + $0x78] sm:$0xff] %v498
      %540 = vst [vmem:[%s233 + $0x80] sm:$0xff] %v389
      %541 = vst [vmem:[%s233 + $0x88] sm:$0xff] %v391
      %542 = vst [vmem:[%s233 + $0x90] sm:$0xff] %v502
      %543 = vst [vmem:[%s233 + $0x98] sm:$0xff] %v504
      %544 = vst [vmem:[%s233 + $0xa0] sm:$0xff] %v395
      %545 = vst [vmem:[%s233 + $0xa8] sm:$0xff] %v397
      %546 = vst [vmem:[%s233 + $0xb0] sm:$0xff] %v508
      %547 = vst [vmem:[%s233 + $0xb8] sm:$0xff] %v510
      %548 = vst [vmem:[%s233 + $0xc0] sm:$0xff] %v401
      %549 = vst [vmem:[%s233 + $0xc8] sm:$0xff] %v403
      %550 = vst [vmem:[%s233 + $0xd0] sm:$0xff] %v514
      %551 = vst [vmem:[%s233 + $0xd8] sm:$0xff] %v516
      %552 = vst [vmem:[%s233 + $0xe0] sm:$0xff] %v407
      %553 = vst [vmem:[%s233 + $0xe8] sm:$0xff] %v409
      %554 = vst [vmem:[%s233 + $0xf0] sm:$0xff] %v520
      %555 = vst [vmem:[%s233 + $0xf8] sm:$0xff] %v522
      %s556 = smul.u32 8, %s19
      %p557 = scmp.lt.s32.totalorder %s18, 1
      %s558 = scalar_select %p557, %s18, 1
      %p559 = scmp.lt.s32.totalorder %s556, 7
      %s560 = scalar_select %p559, %s556, 7
      %s561 = smul.addr %s560, 4
      %s562 = smul.addr %s558, 32
      %s563 = sadd.s32 %s561, %s562
      %s564 = smul.addr %s563, 8
      %s565 = scalar_lea.vmem %s3, %s564
      // Predicated region
      $region33: #{bilstmp_forward.2} parent=31 // pred_check
        %p566 = pneg %p124
      $region34: #{bilstmp_forward.2} parent=31 // pred_check_branch
        %568 = sbr.rel (%p566) target = $region36
      $region35: #{bilstmp_forward.2} parent=31 // pred_region
        %s569 = smul.u32 8, %s19
      $region36: #{bilstmp_forward.2} parent=31 // pred_fallthru
        _
    $region32: #{bilstmp_forward.2} parent=5 // pred_fallthru
      _
    %p570 = scmp.le.s32.totalorder 2, %s9
    // Predicated region
    $region37: #{bilstmp_forward.2} parent=5 // pred_check
      %p571 = pneg %p570
    $region38: #{bilstmp_forward.2} parent=5 // pred_check_branch
      %573 = sbr.rel (%p571) target = $region40
    $region39: #{bilstmp_forward.2} parent=5 // pred_region
      %s574 = ssub.s32 %s9, 2
      // Predicated region
      $region41: #{bilstmp_forward.2} parent=39 // pred_check
        %p575 = pneg %p130
      $region42: #{bilstmp_forward.2} parent=39 // pred_check_branch
        %577 = sbr.rel (%p575) target = $region44
      $region43: #{bilstmp_forward.2} parent=39 // pred_region
        %s578 = smul.u32 8, %s21
        %p579 = scmp.lt.s32.totalorder %s20, 1
        %s580 = scalar_select %p579, %s20, 1
        %p581 = scmp.lt.s32.totalorder %s578, 7
        %s582 = scalar_select %p581, %s578, 7
        %s583 = smul.addr %s582, 4
        %s584 = smul.addr %s580, 32
        %s585 = sadd.s32 %s583, %s584
        %s586 = smul.addr %s585, 8
        %s587 = scalar_lea.vmem %s3, %s586
      $region44: #{bilstmp_forward.2} parent=39 // pred_fallthru
        _
    $region40: #{bilstmp_forward.2} parent=5 // pred_fallthru
      _
  $region6: #{bilstmp_forward.2} parent=0 // loop_footer
    %s13 = sadd.s32 1, %s9
  $region7: #{bilstmp_forward.2} parent=0 // loop_footer_branch
    %8 = sbr.rel target = $region3
  $region8: #{bilstmp_forward.2} parent=0 // loop_exit
    _

// kernel: bilstmp_forward.3
$region0: #{bilstmp_forward.3}
  #allocation0 [shape = 'u32[]', space=smem, size = 0x4, offset = 0x4, fixed_abs, tag = 'smem constant byte address 0x4 - core index']
  #allocation1 [shape = 'u32[144,128]{1,0:T(1,128)}', space=vmem, size = 0x12000, scoped, tag = 'internal scratch']
  #allocation2 [shape = 'f32[8,128]{1,0:T(8,128)}', space=vmem, size = 0x1000, scoped, tag = 'scratch operand']
  #allocation3 [shape = 'f32[8,128]{1,0:T(8,128)}', space=vmem, size = 0x1000, scoped, tag = 'scratch operand']
  %s0 = inlined_call_operand.vmem [shape: f32[2,8,8,512], index: 0, kind: input, shape index: {}]
  %s1 = inlined_call_operand.vmem [shape: s32[8,1], index: 1, kind: input, shape index: {}]
  %s2 = inlined_call_operand.vmem [shape: f32[2,128,512], index: 2, kind: input, shape index: {}]
  %s3 = inlined_call_operand.vmem [shape: f32[2,128,128], index: 3, kind: input, shape index: {}]
  %s4 = inlined_call_operand.vmem [shape: f32[2,8,8,128], index: 4, kind: output, shape index: {}]
  %s5 = sld [smem:[#allocation0]]
  $region53: #{bilstmp_forward.3} parent=0
    _
  %s7 = ssub.s32 1, %s5
  %s8 = scalar_select 0, %s7, %s5
  loop: start=0, step=1, limit=4
  $region2: #{bilstmp_forward.3} parent=0 // loop_pre_header
    _
  $region3: #{bilstmp_forward.3} parent=0 // loop_header
    %s10 = sphi 0, %s14
    %p11 = scmp.ge.s32.totalorder %s10, 4
    %s17 = sphi 0, %s29
    %s18 = sphi 0, %s25
    %s19 = sphi 0, %s17
    %s20 = sphi 0, %s18
    %s21 = sphi 0, %s19
    %s22 = sphi 0, %s20
    %s42 = sphi 0, %s44
    %s45 = sphi 0, %s42
    %s46 = sphi 0, %s45
    %s62 = sphi 0, %s46
    %s66 = sphi 0, %s66
    %s68 = sphi 0, %s66
    %s69 = sphi 0, %s68
    %s83 = sphi 0, %s69
    %s89 = sphi 0, %s91
    %s92 = sphi 0, %s89
    %s93 = sphi 0, %s92
    %s109 = sphi 0, %s93
    %s115 = sphi 0, %s117
    %s118 = sphi 0, %s115
    %s119 = sphi 0, %s118
    %s135 = sphi 0, %s119
    %s151 = sphi 0, %s153
    %s154 = sphi 0, %s151
    %s155 = sphi 0, %s154
    %s171 = sphi 0, %s155
  $region4: #{bilstmp_forward.3} parent=0 // loop_header_branch
    %13 = sbr.rel (%p11) target = $region8
  $region5: #{bilstmp_forward.3} parent=0 // loop_body
    %s15 = ssub.s32 %s10, 1
    %s16 = ssub.s32 %s10, 2
    %s23 = sadd.s32 1, %s18
    %p24 = scmp.ge.s32.totalorder %s23, 1
    %s25 = scalar_select %p24, 0, %s23
    %s26 = sadd.s32 1, %s17
    %s27 = scalar_select %p24, %s26, %s17
    %p28 = scmp.ge.s32.totalorder %s27, 2
    %s29 = scalar_select %p28, 0, %s27
    %s30 = smul.u32 %s18, 2
    %s31 = ssub.s32 0, %s30
    %s32 = smul.u32 %s17, %s31
    %s33 = sadd.s32 %s18, %s32
    %s34 = smul.u32 %s25, 2
    %s35 = ssub.s32 0, %s34
    %s36 = smul.u32 %s29, %s35
    %s37 = sadd.s32 %s25, %s36
    %s38 = ssub.s32 %s17, %s29
    %s39 = ssub.s32 %s33, %s37
    %s40 = sor.u32 %s38, %s39
    %p41 = scmp.eq.s32.totalorder %s40, 0
    %s43 = sadd.s32 %s42, 1
    %s44 = scalar_select %p41, %s42, %s43
    %p47 = pneg %p41
    %p48 = scmp.eq.s32.totalorder %s10, 1
    %p49 = por %p47, %p48
    %p50 = scmp.ne.s32.totalorder %s42, %s45
    %p51 = scmp.eq.s32.totalorder %s10, 0
    %p52 = por %p50, %p51
    %p53 = scmp.ne.s32.totalorder %s42, %s45
    %p54 = scmp.eq.s32.totalorder %s15, 1
    %p55 = por %p53, %p54
    %p56 = scmp.ne.s32.totalorder %s45, %s46
    %p57 = scmp.eq.s32.totalorder %s15, 0
    %p58 = por %p56, %p57
    %p59 = scmp.ne.s32.totalorder %s45, %s46
    %p60 = scmp.eq.s32.totalorder %s16, 1
    %p61 = por %p59, %p60
    %p63 = scmp.ne.s32.totalorder %s46, %s62
    %p64 = scmp.eq.s32.totalorder %s16, 0
    %p65 = por %p63, %p64
    %s67 = sadd.s32 %s66, 1
    %p70 = scmp.eq.s32.totalorder %s10, 1
    %p71 = scmp.ne.s32.totalorder %s66, %s68
    %p72 = scmp.eq.s32.totalorder %s10, 0
    %p73 = por %p71, %p72
    %p74 = scmp.ne.s32.totalorder %s66, %s68
    %p75 = scmp.eq.s32.totalorder %s15, 1
    %p76 = por %p74, %p75
    %p77 = scmp.ne.s32.totalorder %s68, %s69
    %p78 = scmp.eq.s32.totalorder %s15, 0
    %p79 = por %p77, %p78
    %p80 = scmp.ne.s32.totalorder %s68, %s69
    %p81 = scmp.eq.s32.totalorder %s16, 1
    %p82 = por %p80, %p81
    %p84 = scmp.ne.s32.totalorder %s69, %s83
    %p85 = scmp.eq.s32.totalorder %s16, 0
    %p86 = por %p84, %p85
    %s87 = ssub.s32 %s17, %s29
    %p88 = scmp.eq.s32.totalorder %s87, 0
    %s90 = sadd.s32 %s89, 1
    %s91 = scalar_select %p88, %s89, %s90
    %p94 = pneg %p88
    %p95 = scmp.eq.s32.totalorder %s10, 1
    %p96 = por %p94, %p95
    %p97 = scmp.ne.s32.totalorder %s89, %s92
    %p98 = scmp.eq.s32.totalorder %s10, 0
    %p99 = por %p97, %p98
    %p100 = scmp.ne.s32.totalorder %s89, %s92
    %p101 = scmp.eq.s32.totalorder %s15, 1
    %p102 = por %p100, %p101
    %p103 = scmp.ne.s32.totalorder %s92, %s93
    %p104 = scmp.eq.s32.totalorder %s15, 0
    %p105 = por %p103, %p104
    %p106 = scmp.ne.s32.totalorder %s92, %s93
    %p107 = scmp.eq.s32.totalorder %s16, 1
    %p108 = por %p106, %p107
    %p110 = scmp.ne.s32.totalorder %s93, %s109
    %p111 = scmp.eq.s32.totalorder %s16, 0
    %p112 = por %p110, %p111
    %s113 = ssub.s32 %s17, %s29
    %p114 = scmp.eq.s32.totalorder %s113, 0
    %s116 = sadd.s32 %s115, 1
    %s117 = scalar_select %p114, %s115, %s116
    %p120 = pneg %p114
    %p121 = scmp.eq.s32.totalorder %s10, 1
    %p122 = por %p120, %p121
    %p123 = scmp.ne.s32.totalorder %s115, %s118
    %p124 = scmp.eq.s32.totalorder %s10, 0
    %p125 = por %p123, %p124
    %p126 = scmp.ne.s32.totalorder %s115, %s118
    %p127 = scmp.eq.s32.totalorder %s15, 1
    %p128 = por %p126, %p127
    %p129 = scmp.ne.s32.totalorder %s118, %s119
    %p130 = scmp.eq.s32.totalorder %s15, 0
    %p131 = por %p129, %p130
    %p132 = scmp.ne.s32.totalorder %s118, %s119
    %p133 = scmp.eq.s32.totalorder %s16, 1
    %p134 = por %p132, %p133
    %p136 = scmp.ne.s32.totalorder %s119, %s135
    %p137 = scmp.eq.s32.totalorder %s16, 0
    %p138 = por %p136, %p137
    %s139 = smul.u32 %s18, 2
    %s140 = ssub.s32 0, %s139
    %s141 = smul.u32 %s17, %s140
    %s142 = sadd.s32 %s18, %s141
    %s143 = smul.u32 %s25, 2
    %s144 = ssub.s32 0, %s143
    %s145 = smul.u32 %s29, %s144
    %s146 = sadd.s32 %s25, %s145
    %s147 = ssub.s32 %s17, %s29
    %s148 = ssub.s32 %s142, %s146
    %s149 = sor.u32 %s147, %s148
    %p150 = scmp.eq.s32.totalorder %s149, 0
    %s152 = sadd.s32 %s151, 1
    %s153 = scalar_select %p150, %s151, %s152
    %p156 = pneg %p150
    %p157 = scmp.eq.s32.totalorder %s10, 1
    %p158 = por %p156, %p157
    %p159 = scmp.ne.s32.totalorder %s151, %s154
    %p160 = scmp.eq.s32.totalorder %s10, 0
    %p161 = por %p159, %p160
    %p162 = scmp.ne.s32.totalorder %s151, %s154
    %p163 = scmp.eq.s32.totalorder %s15, 1
    %p164 = por %p162, %p163
    %p165 = scmp.ne.s32.totalorder %s154, %s155
    %p166 = scmp.eq.s32.totalorder %s15, 0
    %p167 = por %p165, %p166
    %p168 = scmp.ne.s32.totalorder %s154, %s155
    %p169 = scmp.eq.s32.totalorder %s16, 1
    %p170 = por %p168, %p169
    %p172 = scmp.ne.s32.totalorder %s155, %s171
    %p173 = scmp.eq.s32.totalorder %s16, 0
    %p174 = por %p172, %p173
    %p175 = scmp.le.s32.totalorder 1, %s10
    %p176 = scmp.lt.s32.totalorder %s10, 3
    %p177 = pnand %p175, %p176
    %p178 = pneg %p177
    // Predicated region
    $region9: #{bilstmp_forward.3} parent=5 // pred_check
      _
    $region10: #{bilstmp_forward.3} parent=5 // pred_check_branch
      %180 = sbr.rel (%p177) target = $region12
    $region11: #{bilstmp_forward.3} parent=5 // pred_region
      %s181 = ssub.s32 %s10, 1
      // Predicated region
      $region13: #{bilstmp_forward.3} parent=11 // pred_check
        %p182 = pneg %p79
      $region14: #{bilstmp_forward.3} parent=11 // pred_check_branch
        %184 = sbr.rel (%p182) target = $region16
      $region15: #{bilstmp_forward.3} parent=11 // pred_region
        _
      $region16: #{bilstmp_forward.3} parent=11 // pred_fallthru
        _
    $region12: #{bilstmp_forward.3} parent=5 // pred_fallthru
      _
    %p185 = scmp.lt.s32.totalorder %s10, 2
    // Predicated region
    $region17: #{bilstmp_forward.3} parent=5 // pred_check
      %p186 = pneg %p185
    $region18: #{bilstmp_forward.3} parent=5 // pred_check_branch
      %188 = sbr.rel (%p186) target = $region20
    $region19: #{bilstmp_forward.3} parent=5 // pred_region
      // Predicated region
      $region21: #{bilstmp_forward.3} parent=19 // pred_check
        %p189 = pneg %p52
      $region22: #{bilstmp_forward.3} parent=19 // pred_check_branch
        %191 = sbr.rel (%p189) target = $region24
      $region23: #{bilstmp_forward.3} parent=19 // pred_region
        %s192 = smul.u32 %s18, 2
        %s193 = ssub.s32 0, %s192
        %s194 = smul.u32 %s17, %s193
        %s195 = sadd.s32 %s18, %s194
        %s196 = smul.u32 8, %s195
        %p197 = scmp.lt.s32.totalorder %s17, 1
        %s198 = scalar_select %p197, %s17, 1
        %p199 = scmp.lt.s32.totalorder %s196, 7
        %s200 = scalar_select %p199, %s196, 7
        %s201 = smul.addr %s200, 4
        %s202 = smul.addr %s198, 32
        %s203 = sadd.s32 %s201, %s202
        %s204 = smul.addr %s203, 8
        %s205 = scalar_lea.vmem %s0, %s204
        %s206 = smul.u32 %s18, 2
        %s207 = ssub.s32 0, %s206
        %s208 = smul.u32 %s17, %s207
        %s209 = sadd.s32 %s18, %s208
        %s210 = smul.u32 8, %s209
      $region24: #{bilstmp_forward.3} parent=19 // pred_fallthru
        _
      // Predicated region
      $region25: #{bilstmp_forward.3} parent=19 // pred_check
        %p211 = pneg %p99
      $region26: #{bilstmp_forward.3} parent=19 // pred_check_branch
        %213 = sbr.rel (%p211) target = $region28
      $region27: #{bilstmp_forward.3} parent=19 // pred_region
        %p214 = scmp.lt.s32.totalorder %s17, 1
        %s215 = scalar_select %p214, %s17, 1
        %s216 = smul.addr %s215, 64
        %s217 = smul.addr %s216, 8
        %s218 = scalar_lea.vmem %s2, %s217
      $region28: #{bilstmp_forward.3} parent=19 // pred_fallthru
        _
      // Predicated region
      $region29: #{bilstmp_forward.3} parent=19 // pred_check
        %p219 = pneg %p125
      $region30: #{bilstmp_forward.3} parent=19 // pred_check_branch
        %221 = sbr.rel (%p219) target = $region32
      $region31: #{bilstmp_forward.3} parent=19 // pred_region
        %p222 = scmp.lt.s32.totalorder %s17, 1
        %s223 = scalar_select %p222, %s17, 1
        %s224 = smul.addr %s223, 16
        %s225 = smul.addr %s224, 8
        %s226 = scalar_lea.vmem %s3, %s225
      $region32: #{bilstmp_forward.3} parent=19 // pred_fallthru
        _
    $region20: #{bilstmp_forward.3} parent=5 // pred_fallthru
      _
    %p227 = scmp.le.s32.totalorder 1, %s10
    %p228 = scmp.lt.s32.totalorder %s10, 3
    %p229 = pnand %p227, %p228
    %p230 = pneg %p229
    // Predicated region
    $region33: #{bilstmp_forward.3} parent=5 // pred_check
      _
    $region34: #{bilstmp_forward.3} parent=5 // pred_check_branch
      %232 = sbr.rel (%p229) target = $region36
    $region35: #{bilstmp_forward.3} parent=5 // pred_region
      %s233 = ssub.s32 %s10, 1
      %s234 = smul.u32 %s20, 2
      %s235 = ssub.s32 0, %s234
      %s236 = smul.u32 %s19, %s235
      %s237 = sadd.s32 %s20, %s236
      %s238 = smul.u32 8, %s237
      %p239 = scmp.lt.s32.totalorder %s19, 1
      %s240 = scalar_select %p239, %s19, 1
      %p241 = scmp.lt.s32.totalorder %s238, 7
      %s242 = scalar_select %p241, %s238, 7
      %s243 = smul.addr %s242, 4
      %s244 = smul.addr %s240, 32
      %s245 = sadd.s32 %s243, %s244
      %s246 = smul.addr %s245, 8
      %s247 = scalar_lea.vmem %s0, %s246
      %p248 = pneg %p58
      %p249 = pneg %p55
      %p250 = pneg %p79
      %p251 = pneg %p76
      %p252 = scmp.lt.s32.totalorder %s19, 1
      %s253 = scalar_select %p252, %s19, 1
      %s254 = smul.addr %s253, 64
      %s255 = smul.addr %s254, 8
      %s256 = scalar_lea.vmem %s2, %s255
      %p257 = pneg %p105
      %p258 = pneg %p102
      %p259 = scmp.lt.s32.totalorder %s19, 1
      %s260 = scalar_select %p259, %s19, 1
      %s261 = smul.addr %s260, 16
      %s262 = smul.addr %s261, 8
      %s263 = scalar_lea.vmem %s3, %s262
      %p264 = pneg %p131
      %p265 = pneg %p128
      %p266 = pneg %p167
      %p267 = pneg %p164
      %s268 = smul.u32 %s20, 2
      %s269 = ssub.s32 0, %s268
      %s270 = smul.u32 %s19, %s269
      %s271 = sadd.s32 %s20, %s270
      %s272 = smul.u32 8, %s271
      %p273 = scmp.lt.s32.totalorder %s19, 1
      %s274 = scalar_select %p273, %s19, 1
      %p275 = scmp.lt.s32.totalorder %s272, 7
      %s276 = scalar_select %p275, %s272, 7
      %s277 = smul.addr %s274, 8
      %s278 = sadd.s32 %s276, %s277
      %s279 = smul.addr %s278, 8
      %s280 = scalar_lea.vmem %s4, %s279
      %s281 = smul.u32 %s20, 2
      %s282 = ssub.s32 0, %s281
      %s283 = smul.u32 %s19, %s282
      %s284 = sadd.s32 %s20, %s283
      %s285 = smul.u32 8, %s284
      %p286 = scmp.lt.s32.totalorder %s19, 1
      %s287 = scalar_select %p286, %s19, 1
      %p288 = scmp.lt.s32.totalorder %s285, 7
      %s289 = scalar_select %p288, %s285, 7
      %s290 = smul.addr %s289, 4
      %s291 = smul.addr %s287, 32
      %s292 = sadd.s32 %s290, %s291
      %s293 = smul.addr %s292, 8
      %s294 = scalar_lea.vmem %s0, %s293
      %s295 = smul.u32 %s20, 2
      %s296 = ssub.s32 0, %s295
      %s297 = smul.u32 %s19, %s296
      %s298 = sadd.s32 %s20, %s297
      %s299 = smul.u32 8, %s298
      %p300 = scmp.lt.s32.totalorder %s19, 1
      %s301 = scalar_select %p300, %s19, 1
      %s302 = smul.addr %s301, 64
      %s303 = smul.addr %s302, 8
      %s304 = scalar_lea.vmem %s2, %s303
      %p305 = scmp.lt.s32.totalorder %s19, 1
      %s306 = scalar_select %p305, %s19, 1
      %s307 = smul.addr %s306, 16
      %s308 = smul.addr %s307, 8
      %s309 = scalar_lea.vmem %s3, %s308
      %s310 = smul.u32 %s20, 2
      %s311 = ssub.s32 0, %s310
      %s312 = smul.u32 %s19, %s311
      %s313 = sadd.s32 %s20, %s312
      %s314 = smul.u32 8, %s313
      %p315 = scmp.lt.s32.totalorder %s19, 1
      %s316 = scalar_select %p315, %s19, 1
      %p317 = scmp.lt.s32.totalorder %s314, 7
      %s318 = scalar_select %p317, %s314, 7
      %s319 = smul.addr %s316, 8
      %s320 = sadd.s32 %s318, %s319
      %s321 = smul.addr %s320, 8
      %s322 = scalar_lea.vmem %s4, %s321
      %s323 = smul.u32 %s20, 2
      %s324 = ssub.s32 0, %s323
      %s325 = smul.u32 %s19, %s324
      %s326 = sadd.s32 %s20, %s325
      %s327 = smul.u32 8, %s326
      %p328 = scmp.eq.s32.totalorder %s20, 0
      // Predicated region
      $region37: #{bilstmp_forward.3} parent=35 // pred_check
        %p329 = pneg %p328
      $region38: #{bilstmp_forward.3} parent=35 // pred_check_branch
        %331 = sbr.rel (%p329) target = $region40
      $region39: #{bilstmp_forward.3} parent=35 // pred_region
        %332 = vst [vmem:[#allocation2] sm:$0xff] 0.0
        %333 = vst [vmem:[#allocation3] sm:$0xff] 0.0
      $region40: #{bilstmp_forward.3} parent=35 // pred_fallthru
        _
      %s334 = smul.u32 %s20, 2
      %s335 = ssub.s32 0, %s334
      %s336 = smul.u32 %s19, %s335
      %s337 = sadd.s32 %s20, %s336
      %v338 = vld [vmem:[%s1] sm:$0xff]
      %s339 = smul.u32 %s337, 8
      %v340 = vstv %s339
      %v341 = vsub.s32 %v338, %v340
      %v342 = vld [vmem:[#allocation2] sm:$0xff]
      %v343 = vld [vmem:[#allocation3] sm:$0xff]
      %s344 = smul.u32 %s19, 7
      %s345 = smul.u32 %s344, 4
      %s346 = smul.addr %s345, 8
      %s347 = scalar_lea.vmem %s294, %s346
      %v348 = vld [vmem:[%s347] sm:$0xff]
      %v349 = vld [vmem:[%s347 + $0x8] sm:$0xff]
      %v350 = vld [vmem:[%s347 + $0x10] sm:$0xff]
      %v351 = vld [vmem:[%s347 + $0x18] sm:$0xff]
      %v352 = vld [vmem:[%s304] sm:$0xff]
      %v353 = vld [vmem:[%s304 + $0x8] sm:$0xff]
      %v354 = vld [vmem:[%s304 + $0x10] sm:$0xff]
      %v355 = vld [vmem:[%s304 + $0x18] sm:$0xff]
      %v356 = vld [vmem:[%s304 + $0x20] sm:$0xff]
      %v357 = vld [vmem:[%s304 + $0x28] sm:$0xff]
      %v358 = vld [vmem:[%s304 + $0x30] sm:$0xff]
      %v359 = vld [vmem:[%s304 + $0x38] sm:$0xff]
      %v360 = vld [vmem:[%s304 + $0x40] sm:$0xff]
      %v361 = vld [vmem:[%s304 + $0x48] sm:$0xff]
      %v362 = vld [vmem:[%s304 + $0x50] sm:$0xff]
      %v363 = vld [vmem:[%s304 + $0x58] sm:$0xff]
      %v364 = vld [vmem:[%s304 + $0x60] sm:$0xff]
      %v365 = vld [vmem:[%s304 + $0x68] sm:$0xff]
      %v366 = vld [vmem:[%s304 + $0x70] sm:$0xff]
      %v367 = vld [vmem:[%s304 + $0x78] sm:$0xff]
      %v368 = vld [vmem:[%s304 + $0x80] sm:$0xff]
      %v369 = vld [vmem:[%s304 + $0x88] sm:$0xff]
      %v370 = vld [vmem:[%s304 + $0x90] sm:$0xff]
      %v371 = vld [vmem:[%s304 + $0x98] sm:$0xff]
      %v372 = vld [vmem:[%s304 + $0xa0] sm:$0xff]
      %v373 = vld [vmem:[%s304 + $0xa8] sm:$0xff]
      %v374 = vld [vmem:[%s304 + $0xb0] sm:$0xff]
      %v375 = vld [vmem:[%s304 + $0xb8] sm:$0xff]
      %v376 = vld [vmem:[%s304 + $0xc0] sm:$0xff]
      %v377 = vld [vmem:[%s304 + $0xc8] sm:$0xff]
      %v378 = vld [vmem:[%s304 + $0xd0] sm:$0xff]
      %v379 = vld [vmem:[%s304 + $0xd8] sm:$0xff]
      %v380 = vld [vmem:[%s304 + $0xe0] sm:$0xff]
      %v381 = vld [vmem:[%s304 + $0xe8] sm:$0xff]
      %v382 = vld [vmem:[%s304 + $0xf0] sm:$0xff]
      %v383 = vld [vmem:[%s304 + $0xf8] sm:$0xff]
      %v384 = vld [vmem:[%s304 + $0x100] sm:$0xff]
      %v385 = vld [vmem:[%s304 + $0x108] sm:$0xff]
      %v386 = vld [vmem:[%s304 + $0x110] sm:$0xff]
      %v387 = vld [vmem:[%s304 + $0x118] sm:$0xff]
      %v388 = vld [vmem:[%s304 + $0x120] sm:$0xff]
      %v389 = vld [vmem:[%s304 + $0x128] sm:$0xff]
      %v390 = vld [vmem:[%s304 + $0x130] sm:$0xff]
      %v391 = vld [vmem:[%s304 + $0x138] sm:$0xff]
      %v392 = vld [vmem:[%s304 + $0x140] sm:$0xff]
      %v393 = vld [vmem:[%s304 + $0x148] sm:$0xff]
      %v394 = vld [vmem:[%s304 + $0x150] sm:$0xff]
      %v395 = vld [vmem:[%s304 + $0x158] sm:$0xff]
      %v396 = vld [vmem:[%s304 + $0x160] sm:$0xff]
      %v397 = vld [vmem:[%s304 + $0x168] sm:$0xff]
      %v398 = vld [vmem:[%s304 + $0x170] sm:$0xff]
      %v399 = vld [vmem:[%s304 + $0x178] sm:$0xff]
      %v400 = vld [vmem:[%s304 + $0x180] sm:$0xff]
      %v401 = vld [vmem:[%s304 + $0x188] sm:$0xff]
      %v402 = vld [vmem:[%s304 + $0x190] sm:$0xff]
      %v403 = vld [vmem:[%s304 + $0x198] sm:$0xff]
      %v404 = vld [vmem:[%s304 + $0x1a0] sm:$0xff]
      %v405 = vld [vmem:[%s304 + $0x1a8] sm:$0xff]
      %v406 = vld [vmem:[%s304 + $0x1b0] sm:$0xff]
      %v407 = vld [vmem:[%s304 + $0x1b8] sm:$0xff]
      %v408 = vld [vmem:[%s304 + $0x1c0] sm:$0xff]
      %v409 = vld [vmem:[%s304 + $0x1c8] sm:$0xff]
      %v410 = vld [vmem:[%s304 + $0x1d0] sm:$0xff]
      %v411 = vld [vmem:[%s304 + $0x1d8] sm:$0xff]
      %v412 = vld [vmem:[%s304 + $0x1e0] sm:$0xff]
      %v413 = vld [vmem:[%s304 + $0x1e8] sm:$0xff]
      %v414 = vld [vmem:[%s304 + $0x1f0] sm:$0xff]
      %v415 = vld [vmem:[%s304 + $0x1f8] sm:$0xff]
      %416 = vmatprep.subr.mxu0 %v413
      %417 = vmatpush1.msra.mxu0 %v412
      %418 = vmatprep.subr.mxu0 %v409
      %419 = vmatpush1.msra.mxu0 %v408
      %420 = vmatprep.subr.mxu0 %v405
      %421 = vmatpush1.msra.mxu0 %v404
      %422 = vmatprep.subr.mxu0 %v401
      %423 = vmatpush1.msra.mxu0 %v400
      %424 = vmatprep.subr.mxu0 %v397
      %425 = vmatpush1.msra.mxu0 %v396
      %426 = vmatprep.subr.mxu0 %v393
      %427 = vmatpush1.msra.mxu0 %v392
      %428 = vmatprep.subr.mxu0 %v389
      %429 = vmatpush1.msra.mxu0 %v388
      %430 = vmatprep.subr.mxu0 %v385
      %431 = vmatpush1.msra.mxu0 %v384
      %432 = vmatprep.subr.mxu0 %v381
      %433 = vmatpush1.msra.mxu0 %v380
      %434 = vmatprep.subr.mxu0 %v377
      %435 = vmatpush1.msra.mxu0 %v376
      %436 = vmatprep.subr.mxu0 %v373
      %437 = vmatpush1.msra.mxu0 %v372
      %438 = vmatprep.subr.mxu0 %v369
      %439 = vmatpush1.msra.mxu0 %v368
      %440 = vmatprep.subr.mxu0 %v365
      %441 = vmatpush1.msra.mxu0 %v364
      %442 = vmatprep.subr.mxu0 %v361
      %443 = vmatpush1.msra.mxu0 %v360
      %444 = vmatprep.subr.mxu0 %v357
      %445 = vmatpush1.msra.mxu0 %v356
      %446 = vmatprep.subr.mxu0 %v353
      %447 = vmatpush1.msra.mxu0 %v352
      %448 = vmatprep.subr.mxu0 0.0
      %449 = vmatpush2.msra.mxu0 0.0
      %450 = vmatprep.subr.mxu0 0.0
      %451 = vmatpush2.msra.mxu0 0.0
      %452 = vmatprep.subr.mxu0 0.0
      %453 = vmatpush2.msra.mxu0 0.0
      %454 = vmatprep.subr.mxu0 0.0
      %455 = vmatpush2.msra.mxu0 0.0
      %456 = vmatprep.subr.mxu0 0.0
      %457 = vmatpush2.msra.mxu0 0.0
      %458 = vmatprep.subr.mxu0 0.0
      %459 = vmatpush2.msra.mxu0 0.0
      %460 = vmatprep.subr.mxu0 0.0
      %461 = vmatpush2.msra.mxu0 0.0
      %462 = vmatprep.subr.mxu0 0.0
      %463 = vmatpush2.msra.mxu0 0.0
      %464 = vmatprep.subr.mxu0 0.0
      %465 = vmatpush2.msra.mxu0 0.0
      %466 = vmatprep.subr.mxu0 0.0
      %467 = vmatpush2.msra.mxu0 0.0
      %468 = vmatprep.subr.mxu0 0.0
      %469 = vmatpush2.msra.mxu0 0.0
      %470 = vmatprep.subr.mxu0 0.0
      %471 = vmatpush2.msra.mxu0 0.0
      %472 = vmatprep.subr.mxu0 0.0
      %473 = vmatpush2.msra.mxu0 0.0
      %474 = vmatprep.subr.mxu0 0.0
      %475 = vmatpush2.msra.mxu0 0.0
      %476 = vmatprep.subr.mxu0 0.0
      %477 = vmatpush2.msra.mxu0 0.0
      %478 = vmatprep.subr.mxu0 0.0
      %479 = vmatpush2.msra.mxu0 0.0
      %480 = vmatprep.mubr.f32.mxu0 0.0
      %481 = vmatmul.mubr.f32.gmra.mxu0 %v342
      %v482 = vpop.f32.mrf.mxu0
      %v483 = vadd.f32 0.0, %v482
      %v484 = vpop.f32.mrf.mxu0
      %v485 = vadd.f32 0.0, %v484
      %486 = vdwg.mxu0
      %487 = vmatprep.subr.mxu0 %v415
      %488 = vmatpush1.msra.mxu0 %v414
      %489 = vmatprep.subr.mxu0 %v411
      %490 = vmatpush1.msra.mxu0 %v410
      %491 = vmatprep.subr.mxu0 %v407
      %492 = vmatpush1.msra.mxu0 %v406
      %493 = vmatprep.subr.mxu0 %v403
      %494 = vmatpush1.msra.mxu0 %v402
      %495 = vmatprep.subr.mxu0 %v399
      %496 = vmatpush1.msra.mxu0 %v398
      %497 = vmatprep.subr.mxu0 %v395
      %498 = vmatpush1.msra.mxu0 %v394
      %499 = vmatprep.subr.mxu0 %v391
      %500 = vmatpush1.msra.mxu0 %v390
      %501 = vmatprep.subr.mxu0 %v387
      %502 = vmatpush1.msra.mxu0 %v386
      %503 = vmatprep.subr.mxu0 %v383
      %504 = vmatpush1.msra.mxu0 %v382
      %505 = vmatprep.subr.mxu0 %v379
      %506 = vmatpush1.msra.mxu0 %v378
      %507 = vmatprep.subr.mxu0 %v375
      %508 = vmatpush1.msra.mxu0 %v374
      %509 = vmatprep.subr.mxu0 %v371
      %510 = vmatpush1.msra.mxu0 %v370
      %511 = vmatprep.subr.mxu0 %v367
      %512 = vmatpush1.msra.mxu0 %v366
      %513 = vmatprep.subr.mxu0 %v363
      %514 = vmatpush1.msra.mxu0 %v362
      %515 = vmatprep.subr.mxu0 %v359
      %516 = vmatpush1.msra.mxu0 %v358
      %517 = vmatprep.subr.mxu0 %v355
      %518 = vmatpush1.msra.mxu0 %v354
      %519 = vmatprep.subr.mxu0 0.0
      %520 = vmatpush2.msra.mxu0 0.0
      %521 = vmatprep.subr.mxu0 0.0
      %522 = vmatpush2.msra.mxu0 0.0
      %523 = vmatprep.subr.mxu0 0.0
      %524 = vmatpush2.msra.mxu0 0.0
      %525 = vmatprep.subr.mxu0 0.0
      %526 = vmatpush2.msra.mxu0 0.0
      %527 = vmatprep.subr.mxu0 0.0
      %528 = vmatpush2.msra.mxu0 0.0
      %529 = vmatprep.subr.mxu0 0.0
      %530 = vmatpush2.msra.mxu0 0.0
      %531 = vmatprep.subr.mxu0 0.0
      %532 = vmatpush2.msra.mxu0 0.0
      %533 = vmatprep.subr.mxu0 0.0
      %534 = vmatpush2.msra.mxu0 0.0
      %535 = vmatprep.subr.mxu0 0.0
      %536 = vmatpush2.msra.mxu0 0.0
      %537 = vmatprep.subr.mxu0 0.0
      %538 = vmatpush2.msra.mxu0 0.0
      %539 = vmatprep.subr.mxu0 0.0
      %540 = vmatpush2.msra.mxu0 0.0
      %541 = vmatprep.subr.mxu0 0.0
      %542 = vmatpush2.msra.mxu0 0.0
      %543 = vmatprep.subr.mxu0 0.0
      %544 = vmatpush2.msra.mxu0 0.0
      %545 = vmatprep.subr.mxu0 0.0
      %546 = vmatpush2.msra.mxu0 0.0
      %547 = vmatprep.subr.mxu0 0.0
      %548 = vmatpush2.msra.mxu0 0.0
      %549 = vmatprep.subr.mxu0 0.0
      %550 = vmatpush2.msra.mxu0 0.0
      %551 = vmatprep.mubr.f32.mxu0 0.0
      %552 = vmatmul.mubr.f32.gmra.mxu0 %v342
      %v553 = vpop.f32.mrf.mxu0
      %v554 = vadd.f32 0.0, %v553
      %v555 = vpop.f32.mrf.mxu0
      %v556 = vadd.f32 0.0, %v555
      %557 = vdwg.mxu0
      %v558 = vadd.f32 %v348, %v483
      %v559 = vadd.f32 %v349, %v485
      %v560 = vadd.f32 %v350, %v554
      %v561 = vadd.f32 %v351, %v556
      %v562 = vxor.u32 %v558, 2147483648
      %v563 = vmul.f32 %v562, 1.442695
      %v564 = vpow.pop %v563
      %v565 = vadd.f32 %v564, 1.0
      %v566 = vrcp.pop %v565
      %v567 = vmul.f32 1.0, %v566
      %v568 = vxor.u32 %v559, 2147483648
      %v569 = vmul.f32 %v568, 1.442695
      %v570 = vpow.pop %v569
      %v571 = vadd.f32 %v570, 1.0
      %v572 = vrcp.pop %v571
      %v573 = vmul.f32 1.0, %v572
      %v574 = vtanh.pop %v560
      %v575 = vxor.u32 %v561, 2147483648
      %v576 = vmul.f32 %v575, 1.442695
      %v577 = vpow.pop %v576
      %v578 = vadd.f32 %v577, 1.0
      %v579 = vrcp.pop %v578
      %v580 = vmul.f32 1.0, %v579
      %v581 = vmul.f32 %v573, %v343
      %v582 = vmul.f32 %v567, %v574
      %v583 = vadd.f32 %v581, %v582
      %v584 = vtanh.pop %v583
      %v585 = vmul.f32 %v580, %v584
      %v586 = vstv %s344
      %vm587 = vcmp.lt.s32.totalorder %v586, %v341
      %v588 = vsel %vm587, 1, 0
      %589 = vset.pattern.permute.xlu0 0
      %590 = vperm.xlu0 %589, %v588
      %v591 = vpop.permute.xlu0 %590
      %vm592 = vcmp.eq.s32.totalorder %v591, 1
      %v593 = vsel %vm592, %v585, 0.0
      %v594 = vld [vmem:[%s309] sm:$0xff]
      %v595 = vld [vmem:[%s309 + $0x8] sm:$0xff]
      %v596 = vld [vmem:[%s309 + $0x10] sm:$0xff]
      %v597 = vld [vmem:[%s309 + $0x18] sm:$0xff]
      %v598 = vld [vmem:[%s309 + $0x20] sm:$0xff]
      %v599 = vld [vmem:[%s309 + $0x28] sm:$0xff]
      %v600 = vld [vmem:[%s309 + $0x30] sm:$0xff]
      %v601 = vld [vmem:[%s309 + $0x38] sm:$0xff]
      %v602 = vld [vmem:[%s309 + $0x40] sm:$0xff]
      %v603 = vld [vmem:[%s309 + $0x48] sm:$0xff]
      %v604 = vld [vmem:[%s309 + $0x50] sm:$0xff]
      %v605 = vld [vmem:[%s309 + $0x58] sm:$0xff]
      %v606 = vld [vmem:[%s309 + $0x60] sm:$0xff]
      %v607 = vld [vmem:[%s309 + $0x68] sm:$0xff]
      %v608 = vld [vmem:[%s309 + $0x70] sm:$0xff]
      %v609 = vld [vmem:[%s309 + $0x78] sm:$0xff]
      %610 = vmatprep.subr.mxu0 0.0
      %611 = vmatpush1.msra.mxu0 %v609
      %612 = vmatprep.subr.mxu0 0.0
      %613 = vmatpush1.msra.mxu0 %v608
      %614 = vmatprep.subr.mxu0 0.0
      %615 = vmatpush1.msra.mxu0 %v607
      %616 = vmatprep.subr.mxu0 0.0
      %617 = vmatpush1.msra.mxu0 %v606
      %618 = vmatprep.subr.mxu0 0.0
      %619 = vmatpush1.msra.mxu0 %v605
      %620 = vmatprep.subr.mxu0 0.0
      %621 = vmatpush1.msra.mxu0 %v604
      %622 = vmatprep.subr.mxu0 0.0
      %623 = vmatpush1.msra.mxu0 %v603
      %624 = vmatprep.subr.mxu0 0.0
      %625 = vmatpush1.msra.mxu0 %v602
      %626 = vmatprep.subr.mxu0 0.0
      %627 = vmatpush1.msra.mxu0 %v601
      %628 = vmatprep.subr.mxu0 0.0
      %629 = vmatpush1.msra.mxu0 %v600
      %630 = vmatprep.subr.mxu0 0.0
      %631 = vmatpush1.msra.mxu0 %v599
      %632 = vmatprep.subr.mxu0 0.0
      %633 = vmatpush1.msra.mxu0 %v598
      %634 = vmatprep.subr.mxu0 0.0
      %635 = vmatpush1.msra.mxu0 %v597
      %636 = vmatprep.subr.mxu0 0.0
      %637 = vmatpush1.msra.mxu0 %v596
      %638 = vmatprep.subr.mxu0 0.0
      %639 = vmatpush1.msra.mxu0 %v595
      %640 = vmatprep.subr.mxu0 0.0
      %641 = vmatpush1.msra.mxu0 %v594
      %642 = vmatprep.subr.mxu0 0.0
      %643 = vmatpush2.msra.mxu0 0.0
      %644 = vmatprep.subr.mxu0 0.0
      %645 = vmatpush2.msra.mxu0 0.0
      %646 = vmatprep.subr.mxu0 0.0
      %647 = vmatpush2.msra.mxu0 0.0
      %648 = vmatprep.subr.mxu0 0.0
      %649 = vmatpush2.msra.mxu0 0.0
      %650 = vmatprep.subr.mxu0 0.0
      %651 = vmatpush2.msra.mxu0 0.0
      %652 = vmatprep.subr.mxu0 0.0
      %653 = vmatpush2.msra.mxu0 0.0
      %654 = vmatprep.subr.mxu0 0.0
      %655 = vmatpush2.msra.mxu0 0.0
      %656 = vmatprep.subr.mxu0 0.0
      %657 = vmatpush2.msra.mxu0 0.0
      %658 = vmatprep.subr.mxu0 0.0
      %659 = vmatpush2.msra.mxu0 0.0
      %660 = vmatprep.subr.mxu0 0.0
      %661 = vmatpush2.msra.mxu0 0.0
      %662 = vmatprep.subr.mxu0 0.0
      %663 = vmatpush2.msra.mxu0 0.0
      %664 = vmatprep.subr.mxu0 0.0
      %665 = vmatpush2.msra.mxu0 0.0
      %666 = vmatprep.subr.mxu0 0.0
      %667 = vmatpush2.msra.mxu0 0.0
      %668 = vmatprep.subr.mxu0 0.0
      %669 = vmatpush2.msra.mxu0 0.0
      %670 = vmatprep.subr.mxu0 0.0
      %671 = vmatpush2.msra.mxu0 0.0
      %672 = vmatprep.subr.mxu0 0.0
      %673 = vmatpush2.msra.mxu0 0.0
      %674 = vmatprep.mubr.f32.mxu0 0.0
      %675 = vmatmul.mubr.f32.gmra.mxu0 %v593
      %v676 = vpop.f32.mrf.mxu0
      %v677 = vadd.f32 0.0, %v676
      %v678 = vpop.f32.mrf.mxu0
      %679 = vdwg.mxu0
      %s680 = smul.u32 %s344, 8
      %s681 = scalar_lea.vmem %s322, %s680
      %682 = vst [vmem:[%s681] sm:$0xff] %v677
      %v683 = vsel %vm592, %v585, %v342
      %v684 = vsel %vm592, %v583, %v343
      %s685 = smul.u32 %s19, 5
      %s686 = sadd.s32 %s685, 1
      %s687 = smul.u32 %s686, 4
      %s688 = smul.addr %s687, 8
      %s689 = scalar_lea.vmem %s294, %s688
      %v690 = vld [vmem:[%s689] sm:$0xff]
      %v691 = vld [vmem:[%s689 + $0x8] sm:$0xff]
      %v692 = vld [vmem:[%s689 + $0x10] sm:$0xff]
      %v693 = vld [vmem:[%s689 + $0x18] sm:$0xff]
      %v694 = vld [vmem:[%s304] sm:$0xff]
      %v695 = vld [vmem:[%s304 + $0x8] sm:$0xff]
      %v696 = vld [vmem:[%s304 + $0x10] sm:$0xff]
      %v697 = vld [vmem:[%s304 + $0x18] sm:$0xff]
      %v698 = vld [vmem:[%s304 + $0x20] sm:$0xff]
      %v699 = vld [vmem:[%s304 + $0x28] sm:$0xff]
      %v700 = vld [vmem:[%s304 + $0x30] sm:$0xff]
      %v701 = vld [vmem:[%s304 + $0x38] sm:$0xff]
      %v702 = vld [vmem:[%s304 + $0x40] sm:$0xff]
      %v703 = vld [vmem:[%s304 + $0x48] sm:$0xff]
      %v704 = vld [vmem:[%s304 + $0x50] sm:$0xff]
      %v705 = vld [vmem:[%s304 + $0x58] sm:$0xff]
      %v706 = vld [vmem:[%s304 + $0x60] sm:$0xff]
      %v707 = vld [vmem:[%s304 + $0x68] sm:$0xff]
      %v708 = vld [vmem:[%s304 + $0x70] sm:$0xff]
      %v709 = vld [vmem:[%s304 + $0x78] sm:$0xff]
      %v710 = vld [vmem:[%s304 + $0x80] sm:$0xff]
      %v711 = vld [vmem:[%s304 + $0x88] sm:$0xff]
      %v712 = vld [vmem:[%s304 + $0x90] sm:$0xff]
      %v713 = vld [vmem:[%s304 + $0x98] sm:$0xff]
      %v714 = vld [vmem:[%s304 + $0xa0] sm:$0xff]
      %v715 = vld [vmem:[%s304 + $0xa8] sm:$0xff]
      %v716 = vld [vmem:[%s304 + $0xb0] sm:$0xff]
      %v717 = vld [vmem:[%s304 + $0xb8] sm:$0xff]
      %v718 = vld [vmem:[%s304 + $0xc0] sm:$0xff]
      %v719 = vld [vmem:[%s304 + $0xc8] sm:$0xff]
      %v720 = vld [vmem:[%s304 + $0xd0] sm:$0xff]
      %v721 = vld [vmem:[%s304 + $0xd8] sm:$0xff]
      %v722 = vld [vmem:[%s304 + $0xe0] sm:$0xff]
      %v723 = vld [vmem:[%s304 + $0xe8] sm:$0xff]
      %v724 = vld [vmem:[%s304 + $0xf0] sm:$0xff]
      %v725 = vld [vmem:[%s304 + $0xf8] sm:$0xff]
      %v726 = vld [vmem:[%s304 + $0x100] sm:$0xff]
      %v727 = vld [vmem:[%s304 + $0x108] sm:$0xff]
      %v728 = vld [vmem:[%s304 + $0x110] sm:$0xff]
      %v729 = vld [vmem:[%s304 + $0x118] sm:$0xff]
      %v730 = vld [vmem:[%s304 + $0x120] sm:$0xff]
      %v731 = vld [vmem:[%s304 + $0x128] sm:$0xff]
      %v732 = vld [vmem:[%s304 + $0x130] sm:$0xff]
      %v733 = vld [vmem:[%s304 + $0x138] sm:$0xff]
      %v734 = vld [vmem:[%s304 + $0x140] sm:$0xff]
      %v735 = vld [vmem:[%s304 + $0x148] sm:$0xff]
      %v736 = vld [vmem:[%s304 + $0x150] sm:$0xff]
      %v737 = vld [vmem:[%s304 + $0x158] sm:$0xff]
      %v738 = vld [vmem:[%s304 + $0x160] sm:$0xff]
      %v739 = vld [vmem:[%s304 + $0x168] sm:$0xff]
      %v740 = vld [vmem:[%s304 + $0x170] sm:$0xff]
      %v741 = vld [vmem:[%s304 + $0x178] sm:$0xff]
      %v742 = vld [vmem:[%s304 + $0x180] sm:$0xff]
      %v743 = vld [vmem:[%s304 + $0x188] sm:$0xff]
      %v744 = vld [vmem:[%s304 + $0x190] sm:$0xff]
      %v745 = vld [vmem:[%s304 + $0x198] sm:$0xff]
      %v746 = vld [vmem:[%s304 + $0x1a0] sm:$0xff]
      %v747 = vld [vmem:[%s304 + $0x1a8] sm:$0xff]
      %v748 = vld [vmem:[%s304 + $0x1b0] sm:$0xff]
      %v749 = vld [vmem:[%s304 + $0x1b8] sm:$0xff]
      %v750 = vld [vmem:[%s304 + $0x1c0] sm:$0xff]
      %v751 = vld [vmem:[%s304 + $0x1c8] sm:$0xff]
      %v752 = vld [vmem:[%s304 + $0x1d0] sm:$0xff]
      %v753 = vld [vmem:[%s304 + $0x1d8] sm:$0xff]
      %v754 = vld [vmem:[%s304 + $0x1e0] sm:$0xff]
      %v755 = vld [vmem:[%s304 + $0x1e8] sm:$0xff]
      %v756 = vld [vmem:[%s304 + $0x1f0] sm:$0xff]
      %v757 = vld [vmem:[%s304 + $0x1f8] sm:$0xff]
      %758 = vmatprep.subr.mxu0 %v755
      %759 = vmatpush1.msra.mxu0 %v754
      %760 = vmatprep.subr.mxu0 %v751
      %761 = vmatpush1.msra.mxu0 %v750
      %762 = vmatprep.subr.mxu0 %v747
      %763 = vmatpush1.msra.mxu0 %v746
      %764 = vmatprep.subr.mxu0 %v743
      %765 = vmatpush1.msra.mxu0 %v742
      %766 = vmatprep.subr.mxu0 %v739
      %767 = vmatpush1.msra.mxu0 %v738
      %768 = vmatprep.subr.mxu0 %v735
      %769 = vmatpush1.msra.mxu0 %v734
      %770 = vmatprep.subr.mxu0 %v731
      %771 = vmatpush1.msra.mxu0 %v730
      %772 = vmatprep.subr.mxu0 %v727
      %773 = vmatpush1.msra.mxu0 %v726
      %774 = vmatprep.subr.mxu0 %v723
      %775 = vmatpush1.msra.mxu0 %v722
      %776 = vmatprep.subr.mxu0 %v719
      %777 = vmatpush1.msra.mxu0 %v718
      %778 = vmatprep.subr.mxu0 %v715
      %779 = vmatpush1.msra.mxu0 %v714
      %780 = vmatprep.subr.mxu0 %v711
      %781 = vmatpush1.msra.mxu0 %v710
      %782 = vmatprep.subr.mxu0 %v707
      %783 = vmatpush1.msra.mxu0 %v706
      %784 = vmatprep.subr.mxu0 %v703
      %785 = vmatpush1.msra.mxu0 %v702
      %786 = vmatprep.subr.mxu0 %v699
      %787 = vmatpush1.msra.mxu0 %v698
      %788 = vmatprep.subr.mxu0 %v695
      %789 = vmatpush1.msra.mxu0 %v694
      %790 = vmatprep.subr.mxu0 0.0
      %791 = vmatpush2.msra.mxu0 0.0
      %792 = vmatprep.subr.mxu0 0.0
      %793 = vmatpush2.msra.mxu0 0.0
      %794 = vmatprep.subr.mxu0 0.0
      %795 = vmatpush2.msra.mxu0 0.0
      %796 = vmatprep.subr.mxu0 0.0
      %797 = vmatpush2.msra.mxu0 0.0
      %798 = vmatprep.subr.mxu0 0.0
      %799 = vmatpush2.msra.mxu0 0.0
      %800 = vmatprep.subr.mxu0 0.0
      %801 = vmatpush2.msra.mxu0 0.0
      %802 = vmatprep.subr.mxu0 0.0
      %803 = vmatpush2.msra.mxu0 0.0
      %804 = vmatprep.subr.mxu0 0.0
      %805 = vmatpush2.msra.mxu0 0.0
      %806 = vmatprep.subr.mxu0 0.0
      %807 = vmatpush2.msra.mxu0 0.0
      %808 = vmatprep.subr.mxu0 0.0
      %809 = vmatpush2.msra.mxu0 0.0
      %810 = vmatprep.subr.mxu0 0.0
      %811 = vmatpush2.msra.mxu0 0.0
      %812 = vmatprep.subr.mxu0 0.0
      %813 = vmatpush2.msra.mxu0 0.0
      %814 = vmatprep.subr.mxu0 0.0
      %815 = vmatpush2.msra.mxu0 0.0
      %816 = vmatprep.subr.mxu0 0.0
      %817 = vmatpush2.msra.mxu0 0.0
      %818 = vmatprep.subr.mxu0 0.0
      %819 = vmatpush2.msra.mxu0 0.0
      %820 = vmatprep.subr.mxu0 0.0
      %821 = vmatpush2.msra.mxu0 0.0
      %822 = vmatprep.mubr.f32.mxu0 0.0
      %823 = vmatmul.mubr.f32.gmra.mxu0 %v683
      %v824 = vpop.f32.mrf.mxu0
      %v825 = vadd.f32 0.0, %v824
      %v826 = vpop.f32.mrf.mxu0
      %v827 = vadd.f32 0.0, %v826
      %828 = vdwg.mxu0
      %829 = vmatprep.subr.mxu0 %v757
      %830 = vmatpush1.msra.mxu0 %v756
      %831 = vmatprep.subr.mxu0 %v753
      %832 = vmatpush1.msra.mxu0 %v752
      %833 = vmatprep.subr.mxu0 %v749
      %834 = vmatpush1.msra.mxu0 %v748
      %835 = vmatprep.subr.mxu0 %v745
      %836 = vmatpush1.msra.mxu0 %v744
      %837 = vmatprep.subr.mxu0 %v741
      %838 = vmatpush1.msra.mxu0 %v740
      %839 = vmatprep.subr.mxu0 %v737
      %840 = vmatpush1.msra.mxu0 %v736
      %841 = vmatprep.subr.mxu0 %v733
      %842 = vmatpush1.msra.mxu0 %v732
      %843 = vmatprep.subr.mxu0 %v729
      %844 = vmatpush1.msra.mxu0 %v728
      %845 = vmatprep.subr.mxu0 %v725
      %846 = vmatpush1.msra.mxu0 %v724
      %847 = vmatprep.subr.mxu0 %v721
      %848 = vmatpush1.msra.mxu0 %v720
      %849 = vmatprep.subr.mxu0 %v717
      %850 = vmatpush1.msra.mxu0 %v716
      %851 = vmatprep.subr.mxu0 %v713
      %852 = vmatpush1.msra.mxu0 %v712
      %853 = vmatprep.subr.mxu0 %v709
      %854 = vmatpush1.msra.mxu0 %v708
      %855 = vmatprep.subr.mxu0 %v705
      %856 = vmatpush1.msra.mxu0 %v704
      %857 = vmatprep.subr.mxu0 %v701
      %858 = vmatpush1.msra.mxu0 %v700
      %859 = vmatprep.subr.mxu0 %v697
      %860 = vmatpush1.msra.mxu0 %v696
      %861 = vmatprep.subr.mxu0 0.0
      %862 = vmatpush2.msra.mxu0 0.0
      %863 = vmatprep.subr.mxu0 0.0
      %864 = vmatpush2.msra.mxu0 0.0
      %865 = vmatprep.subr.mxu0 0.0
      %866 = vmatpush2.msra.mxu0 0.0
      %867 = vmatprep.subr.mxu0 0.0
      %868 = vmatpush2.msra.mxu0 0.0
      %869 = vmatprep.subr.mxu0 0.0
      %870 = vmatpush2.msra.mxu0 0.0
      %871 = vmatprep.subr.mxu0 0.0
      %872 = vmatpush2.msra.mxu0 0.0
      %873 = vmatprep.subr.mxu0 0.0
      %874 = vmatpush2.msra.mxu0 0.0
      %875 = vmatprep.subr.mxu0 0.0
      %876 = vmatpush2.msra.mxu0 0.0
      %877 = vmatprep.subr.mxu0 0.0
      %878 = vmatpush2.msra.mxu0 0.0
      %879 = vmatprep.subr.mxu0 0.0
      %880 = vmatpush2.msra.mxu0 0.0
      %881 = vmatprep.subr.mxu0 0.0
      %882 = vmatpush2.msra.mxu0 0.0
      %883 = vmatprep.subr.mxu0 0.0
      %884 = vmatpush2.msra.mxu0 0.0
      %885 = vmatprep.subr.mxu0 0.0
      %886 = vmatpush2.msra.mxu0 0.0
      %887 = vmatprep.subr.mxu0 0.0
      %888 = vmatpush2.msra.mxu0 0.0
      %889 = vmatprep.subr.mxu0 0.0
      %890 = vmatpush2.msra.mxu0 0.0
      %891 = vmatprep.subr.mxu0 0.0
      %892 = vmatpush2.msra.mxu0 0.0
      %893 = vmatprep.mubr.f32.mxu0 0.0
      %894 = vmatmul.mubr.f32.gmra.mxu0 %v683
      %v895 = vpop.f32.mrf.mxu0
      %v896 = vadd.f32 0.0, %v895
      %v897 = vpop.f32.mrf.mxu0
      %v898 = vadd.f32 0.0, %v897
      %899 = vdwg.mxu0
      %v900 = vadd.f32 %v690, %v825
      %v901 = vadd.f32 %v691, %v827
      %v902 = vadd.f32 %v692, %v896
      %v903 = vadd.f32 %v693, %v898
      %v904 = vxor.u32 %v900, 2147483648
      %v905 = vmul.f32 %v904, 1.442695
      %v906 = vpow.pop %v905
      %v907 = vadd.f32 %v906, 1.0
      %v908 = vrcp.pop %v907
      %v909 = vmul.f32 1.0, %v908
      %v910 = vxor.u32 %v901, 2147483648
      %v911 = vmul.f32 %v910, 1.442695
      %v912 = vpow.pop %v911
      %v913 = vadd.f32 %v912, 1.0
      %v914 = vrcp.pop %v913
      %v915 = vmul.f32 1.0, %v914
      %v916 = vtanh.pop %v902
      %v917 = vxor.u32 %v903, 2147483648
      %v918 = vmul.f32 %v917, 1.442695
      %v919 = vpow.pop %v918
      %v920 = vadd.f32 %v919, 1.0
      %v921 = vrcp.pop %v920
      %v922 = vmul.f32 1.0, %v921
      %v923 = vmul.f32 %v915, %v684
      %v924 = vmul.f32 %v909, %v916
      %v925 = vadd.f32 %v923, %v924
      %v926 = vtanh.pop %v925
      %v927 = vmul.f32 %v922, %v926
      %v928 = vstv %s686
      %vm929 = vcmp.lt.s32.totalorder %v928, %v341
      %v930 = vsel %vm929, 1, 0
      %931 = vset.pattern.permute.xlu0 0
      %932 = vperm.xlu0 %931, %v930
      %v933 = vpop.permute.xlu0 %932
      %vm934 = vcmp.eq.s32.totalorder %v933, 1
      %v935 = vsel %vm934, %v927, 0.0
      %v936 = vld [vmem:[%s309] sm:$0xff]
      %v937 = vld [vmem:[%s309 + $0x8] sm:$0xff]
      %v938 = vld [vmem:[%s309 + $0x10] sm:$0xff]
      %v939 = vld [vmem:[%s309 + $0x18] sm:$0xff]
      %v940 = vld [vmem:[%s309 + $0x20] sm:$0xff]
      %v941 = vld [vmem:[%s309 + $0x28] sm:$0xff]
      %v942 = vld [vmem:[%s309 + $0x30] sm:$0xff]
      %v943 = vld [vmem:[%s309 + $0x38] sm:$0xff]
      %v944 = vld [vmem:[%s309 + $0x40] sm:$0xff]
      %v945 = vld [vmem:[%s309 + $0x48] sm:$0xff]
      %v946 = vld [vmem:[%s309 + $0x50] sm:$0xff]
      %v947 = vld [vmem:[%s309 + $0x58] sm:$0xff]
      %v948 = vld [vmem:[%s309 + $0x60] sm:$0xff]
      %v949 = vld [vmem:[%s309 + $0x68] sm:$0xff]
      %v950 = vld [vmem:[%s309 + $0x70] sm:$0xff]
      %v951 = vld [vmem:[%s309 + $0x78] sm:$0xff]
      %952 = vmatprep.subr.mxu0 0.0
      %953 = vmatpush1.msra.mxu0 %v951
      %954 = vmatprep.subr.mxu0 0.0
      %955 = vmatpush1.msra.mxu0 %v950
      %956 = vmatprep.subr.mxu0 0.0
      %957 = vmatpush1.msra.mxu0 %v949
      %958 = vmatprep.subr.mxu0 0.0
      %959 = vmatpush1.msra.mxu0 %v948
      %960 = vmatprep.subr.mxu0 0.0
      %961 = vmatpush1.msra.mxu0 %v947
      %962 = vmatprep.subr.mxu0 0.0
      %963 = vmatpush1.msra.mxu0 %v946
      %964 = vmatprep.subr.mxu0 0.0
      %965 = vmatpush1.msra.mxu0 %v945
      %966 = vmatprep.subr.mxu0 0.0
      %967 = vmatpush1.msra.mxu0 %v944
      %968 = vmatprep.subr.mxu0 0.0
      %969 = vmatpush1.msra.mxu0 %v943
      %970 = vmatprep.subr.mxu0 0.0
      %971 = vmatpush1.msra.mxu0 %v942
      %972 = vmatprep.subr.mxu0 0.0
      %973 = vmatpush1.msra.mxu0 %v941
      %974 = vmatprep.subr.mxu0 0.0
      %975 = vmatpush1.msra.mxu0 %v940
      %976 = vmatprep.subr.mxu0 0.0
      %977 = vmatpush1.msra.mxu0 %v939
      %978 = vmatprep.subr.mxu0 0.0
      %979 = vmatpush1.msra.mxu0 %v938
      %980 = vmatprep.subr.mxu0 0.0
      %981 = vmatpush1.msra.mxu0 %v937
      %982 = vmatprep.subr.mxu0 0.0
      %983 = vmatpush1.msra.mxu0 %v936
      %984 = vmatprep.subr.mxu0 0.0
      %985 = vmatpush2.msra.mxu0 0.0
      %986 = vmatprep.subr.mxu0 0.0
      %987 = vmatpush2.msra.mxu0 0.0
      %988 = vmatprep.subr.mxu0 0.0
      %989 = vmatpush2.msra.mxu0 0.0
      %990 = vmatprep.subr.mxu0 0.0
      %991 = vmatpush2.msra.mxu0 0.0
      %992 = vmatprep.subr.mxu0 0.0
      %993 = vmatpush2.msra.mxu0 0.0
      %994 = vmatprep.subr.mxu0 0.0
      %995 = vmatpush2.msra.mxu0 0.0
      %996 = vmatprep.subr.mxu0 0.0
      %997 = vmatpush2.msra.mxu0 0.0
      %998 = vmatprep.subr.mxu0 0.0
      %999 = vmatpush2.msra.mxu0 0.0
      %1000 = vmatprep.subr.mxu0 0.0
      %1001 = vmatpush2.msra.mxu0 0.0
      %1002 = vmatprep.subr.mxu0 0.0
      %1003 = vmatpush2.msra.mxu0 0.0
      %1004 = vmatprep.subr.mxu0 0.0
      %1005 = vmatpush2.msra.mxu0 0.0
      %1006 = vmatprep.subr.mxu0 0.0
      %1007 = vmatpush2.msra.mxu0 0.0
      %1008 = vmatprep.subr.mxu0 0.0
      %1009 = vmatpush2.msra.mxu0 0.0
      %1010 = vmatprep.subr.mxu0 0.0
      %1011 = vmatpush2.msra.mxu0 0.0
      %1012 = vmatprep.subr.mxu0 0.0
      %1013 = vmatpush2.msra.mxu0 0.0
      %1014 = vmatprep.subr.mxu0 0.0
      %1015 = vmatpush2.msra.mxu0 0.0
      %1016 = vmatprep.mubr.f32.mxu0 0.0
      %1017 = vmatmul.mubr.f32.gmra.mxu0 %v935
      %v1018 = vpop.f32.mrf.mxu0
      %v1019 = vadd.f32 0.0, %v1018
      %v1020 = vpop.f32.mrf.mxu0
      %1021 = vdwg.mxu0
      %s1022 = smul.u32 %s686, 8
      %s1023 = scalar_lea.vmem %s322, %s1022
      %1024 = vst [vmem:[%s1023] sm:$0xff] %v1019
      %v1025 = vsel %vm934, %v927, %v683
      %v1026 = vsel %vm934, %v925, %v684
      %s1027 = smul.u32 %s19, 3
      %s1028 = sadd.s32 %s1027, 2
      %s1029 = smul.u32 %s1028, 4
      %s1030 = smul.addr %s1029, 8
      %s1031 = scalar_lea.vmem %s294, %s1030
      %v1032 = vld [vmem:[%s1031] sm:$0xff]
      %v1033 = vld [vmem:[%s1031 + $0x8] sm:$0xff]
      %v1034 = vld [vmem:[%s1031 + $0x10] sm:$0xff]
      %v1035 = vld [vmem:[%s1031 + $0x18] sm:$0xff]
      %v1036 = vld [vmem:[%s304] sm:$0xff]
      %v1037 = vld [vmem:[%s304 + $0x8] sm:$0xff]
      %v1038 = vld [vmem:[%s304 + $0x10] sm:$0xff]
      %v1039 = vld [vmem:[%s304 + $0x18] sm:$0xff]
      %v1040 = vld [vmem:[%s304 + $0x20] sm:$0xff]
      %v1041 = vld [vmem:[%s304 + $0x28] sm:$0xff]
      %v1042 = vld [vmem:[%s304 + $0x30] sm:$0xff]
      %v1043 = vld [vmem:[%s304 + $0x38] sm:$0xff]
      %v1044 = vld [vmem:[%s304 + $0x40] sm:$0xff]
      %v1045 = vld [vmem:[%s304 + $0x48] sm:$0xff]
      %v1046 = vld [vmem:[%s304 + $0x50] sm:$0xff]
      %v1047 = vld [vmem:[%s304 + $0x58] sm:$0xff]
      %v1048 = vld [vmem:[%s304 + $0x60] sm:$0xff]
      %v1049 = vld [vmem:[%s304 + $0x68] sm:$0xff]
      %v1050 = vld [vmem:[%s304 + $0x70] sm:$0xff]
      %v1051 = vld [vmem:[%s304 + $0x78] sm:$0xff]
      %v1052 = vld [vmem:[%s304 + $0x80] sm:$0xff]
      %v1053 = vld [vmem:[%s304 + $0x88] sm:$0xff]
      %v1054 = vld [vmem:[%s304 + $0x90] sm:$0xff]
      %v1055 = vld [vmem:[%s304 + $0x98] sm:$0xff]
      %v1056 = vld [vmem:[%s304 + $0xa0] sm:$0xff]
      %v1057 = vld [vmem:[%s304 + $0xa8] sm:$0xff]
      %v1058 = vld [vmem:[%s304 + $0xb0] sm:$0xff]
      %v1059 = vld [vmem:[%s304 + $0xb8] sm:$0xff]
      %v1060 = vld [vmem:[%s304 + $0xc0] sm:$0xff]
      %v1061 = vld [vmem:[%s304 + $0xc8] sm:$0xff]
      %v1062 = vld [vmem:[%s304 + $0xd0] sm:$0xff]
      %v1063 = vld [vmem:[%s304 + $0xd8] sm:$0xff]
      %v1064 = vld [vmem:[%s304 + $0xe0] sm:$0xff]
      %v1065 = vld [vmem:[%s304 + $0xe8] sm:$0xff]
      %v1066 = vld [vmem:[%s304 + $0xf0] sm:$0xff]
      %v1067 = vld [vmem:[%s304 + $0xf8] sm:$0xff]
      %v1068 = vld [vmem:[%s304 + $0x100] sm:$0xff]
      %v1069 = vld [vmem:[%s304 + $0x108] sm:$0xff]
      %v1070 = vld [vmem:[%s304 + $0x110] sm:$0xff]
      %v1071 = vld [vmem:[%s304 + $0x118] sm:$0xff]
      %v1072 = vld [vmem:[%s304 + $0x120] sm:$0xff]
      %v1073 = vld [vmem:[%s304 + $0x128] sm:$0xff]
      %v1074 = vld [vmem:[%s304 + $0x130] sm:$0xff]
      %v1075 = vld [vmem:[%s304 + $0x138] sm:$0xff]
      %v1076 = vld [vmem:[%s304 + $0x140] sm:$0xff]
      %v1077 = vld [vmem:[%s304 + $0x148] sm:$0xff]
      %v1078 = vld [vmem:[%s304 + $0x150] sm:$0xff]
      %v1079 = vld [vmem:[%s304 + $0x158] sm:$0xff]
      %v1080 = vld [vmem:[%s304 + $0x160] sm:$0xff]
      %v1081 = vld [vmem:[%s304 + $0x168] sm:$0xff]
      %v1082 = vld [vmem:[%s304 + $0x170] sm:$0xff]
      %v1083 = vld [vmem:[%s304 + $0x178] sm:$0xff]
      %v1084 = vld [vmem:[%s304 + $0x180] sm:$0xff]
      %v1085 = vld [vmem:[%s304 + $0x188] sm:$0xff]
      %v1086 = vld [vmem:[%s304 + $0x190] sm:$0xff]
      %v1087 = vld [vmem:[%s304 + $0x198] sm:$0xff]
      %v1088 = vld [vmem:[%s304 + $0x1a0] sm:$0xff]
      %v1089 = vld [vmem:[%s304 + $0x1a8] sm:$0xff]
      %v1090 = vld [vmem:[%s304 + $0x1b0] sm:$0xff]
      %v1091 = vld [vmem:[%s304 + $0x1b8] sm:$0xff]
      %v1092 = vld [vmem:[%s304 + $0x1c0] sm:$0xff]
      %v1093 = vld [vmem:[%s304 + $0x1c8] sm:$0xff]
      %v1094 = vld [vmem:[%s304 + $0x1d0] sm:$0xff]
      %v1095 = vld [vmem:[%s304 + $0x1d8] sm:$0xff]
      %v1096 = vld [vmem:[%s304 + $0x1e0] sm:$0xff]
      %v1097 = vld [vmem:[%s304 + $0x1e8] sm:$0xff]
      %v1098 = vld [vmem:[%s304 + $0x1f0] sm:$0xff]
      %v1099 = vld [vmem:[%s304 + $0x1f8] sm:$0xff]
      %1100 = vmatprep.subr.mxu0 %v1097
      %1101 = vmatpush1.msra.mxu0 %v1096
      %1102 = vmatprep.subr.mxu0 %v1093
      %1103 = vmatpush1.msra.mxu0 %v1092
      %1104 = vmatprep.subr.mxu0 %v1089
      %1105 = vmatpush1.msra.mxu0 %v1088
      %1106 = vmatprep.subr.mxu0 %v1085
      %1107 = vmatpush1.msra.mxu0 %v1084
      %1108 = vmatprep.subr.mxu0 %v1081
      %1109 = vmatpush1.msra.mxu0 %v1080
      %1110 = vmatprep.subr.mxu0 %v1077
      %1111 = vmatpush1.msra.mxu0 %v1076
      %1112 = vmatprep.subr.mxu0 %v1073
      %1113 = vmatpush1.msra.mxu0 %v1072
      %1114 = vmatprep.subr.mxu0 %v1069
      %1115 = vmatpush1.msra.mxu0 %v1068
      %1116 = vmatprep.subr.mxu0 %v1065
      %1117 = vmatpush1.msra.mxu0 %v1064
      %1118 = vmatprep.subr.mxu0 %v1061
      %1119 = vmatpush1.msra.mxu0 %v1060
      %1120 = vmatprep.subr.mxu0 %v1057
      %1121 = vmatpush1.msra.mxu0 %v1056
      %1122 = vmatprep.subr.mxu0 %v1053
      %1123 = vmatpush1.msra.mxu0 %v1052
      %1124 = vmatprep.subr.mxu0 %v1049
      %1125 = vmatpush1.msra.mxu0 %v1048
      %1126 = vmatprep.subr.mxu0 %v1045
      %1127 = vmatpush1.msra.mxu0 %v1044
      %1128 = vmatprep.subr.mxu0 %v1041
      %1129 = vmatpush1.msra.mxu0 %v1040
      %1130 = vmatprep.subr.mxu0 %v1037
      %1131 = vmatpush1.msra.mxu0 %v1036
      %1132 = vmatprep.subr.mxu0 0.0
      %1133 = vmatpush2.msra.mxu0 0.0
      %1134 = vmatprep.subr.mxu0 0.0
      %1135 = vmatpush2.msra.mxu0 0.0
      %1136 = vmatprep.subr.mxu0 0.0
      %1137 = vmatpush2.msra.mxu0 0.0
      %1138 = vmatprep.subr.mxu0 0.0
      %1139 = vmatpush2.msra.mxu0 0.0
      %1140 = vmatprep.subr.mxu0 0.0
      %1141 = vmatpush2.msra.mxu0 0.0
      %1142 = vmatprep.subr.mxu0 0.0
      %1143 = vmatpush2.msra.mxu0 0.0
      %1144 = vmatprep.subr.mxu0 0.0
      %1145 = vmatpush2.msra.mxu0 0.0
      %1146 = vmatprep.subr.mxu0 0.0
      %1147 = vmatpush2.msra.mxu0 0.0
      %1148 = vmatprep.subr.mxu0 0.0
      %1149 = vmatpush2.msra.mxu0 0.0
      %1150 = vmatprep.subr.mxu0 0.0
      %1151 = vmatpush2.msra.mxu0 0.0
      %1152 = vmatprep.subr.mxu0 0.0
      %1153 = vmatpush2.msra.mxu0 0.0
      %1154 = vmatprep.subr.mxu0 0.0
      %1155 = vmatpush2.msra.mxu0 0.0
      %1156 = vmatprep.subr.mxu0 0.0
      %1157 = vmatpush2.msra.mxu0 0.0
      %1158 = vmatprep.subr.mxu0 0.0
      %1159 = vmatpush2.msra.mxu0 0.0
      %1160 = vmatprep.subr.mxu0 0.0
      %1161 = vmatpush2.msra.mxu0 0.0
      %1162 = vmatprep.subr.mxu0 0.0
      %1163 = vmatpush2.msra.mxu0 0.0
      %1164 = vmatprep.mubr.f32.mxu0 0.0
      %1165 = vmatmul.mubr.f32.gmra.mxu0 %v1025
      %v1166 = vpop.f32.mrf.mxu0
      %v1167 = vadd.f32 0.0, %v1166
      %v1168 = vpop.f32.mrf.mxu0
      %v1169 = vadd.f32 0.0, %v1168
      %1170 = vdwg.mxu0
      %1171 = vmatprep.subr.mxu0 %v1099
      %1172 = vmatpush1.msra.mxu0 %v1098
      %1173 = vmatprep.subr.mxu0 %v1095
      %1174 = vmatpush1.msra.mxu0 %v1094
      %1175 = vmatprep.subr.mxu0 %v1091
      %1176 = vmatpush1.msra.mxu0 %v1090
      %1177 = vmatprep.subr.mxu0 %v1087
      %1178 = vmatpush1.msra.mxu0 %v1086
      %1179 = vmatprep.subr.mxu0 %v1083
      %1180 = vmatpush1.msra.mxu0 %v1082
      %1181 = vmatprep.subr.mxu0 %v1079
      %1182 = vmatpush1.msra.mxu0 %v1078
      %1183 = vmatprep.subr.mxu0 %v1075
      %1184 = vmatpush1.msra.mxu0 %v1074
      %1185 = vmatprep.subr.mxu0 %v1071
      %1186 = vmatpush1.msra.mxu0 %v1070
      %1187 = vmatprep.subr.mxu0 %v1067
      %1188 = vmatpush1.msra.mxu0 %v1066
      %1189 = vmatprep.subr.mxu0 %v1063
      %1190 = vmatpush1.msra.mxu0 %v1062
      %1191 = vmatprep.subr.mxu0 %v1059
      %1192 = vmatpush1.msra.mxu0 %v1058
      %1193 = vmatprep.subr.mxu0 %v1055
      %1194 = vmatpush1.msra.mxu0 %v1054
      %1195 = vmatprep.subr.mxu0 %v1051
      %1196 = vmatpush1.msra.mxu0 %v1050
      %1197 = vmatprep.subr.mxu0 %v1047
      %1198 = vmatpush1.msra.mxu0 %v1046
      %1199 = vmatprep.subr.mxu0 %v1043
      %1200 = vmatpush1.msra.mxu0 %v1042
      %1201 = vmatprep.subr.mxu0 %v1039
      %1202 = vmatpush1.msra.mxu0 %v1038
      %1203 = vmatprep.subr.mxu0 0.0
      %1204 = vmatpush2.msra.mxu0 0.0
      %1205 = vmatprep.subr.mxu0 0.0
      %1206 = vmatpush2.msra.mxu0 0.0
      %1207 = vmatprep.subr.mxu0 0.0
      %1208 = vmatpush2.msra.mxu0 0.0
      %1209 = vmatprep.subr.mxu0 0.0
      %1210 = vmatpush2.msra.mxu0 0.0
      %1211 = vmatprep.subr.mxu0 0.0
      %1212 = vmatpush2.msra.mxu0 0.0
      %1213 = vmatprep.subr.mxu0 0.0
      %1214 = vmatpush2.msra.mxu0 0.0
      %1215 = vmatprep.subr.mxu0 0.0
      %1216 = vmatpush2.msra.mxu0 0.0
      %1217 = vmatprep.subr.mxu0 0.0
      %1218 = vmatpush2.msra.mxu0 0.0
      %1219 = vmatprep.subr.mxu0 0.0
      %1220 = vmatpush2.msra.mxu0 0.0
      %1221 = vmatprep.subr.mxu0 0.0
      %1222 = vmatpush2.msra.mxu0 0.0
      %1223 = vmatprep.subr.mxu0 0.0
      %1224 = vmatpush2.msra.mxu0 0.0
      %1225 = vmatprep.subr.mxu0 0.0
      %1226 = vmatpush2.msra.mxu0 0.0
      %1227 = vmatprep.subr.mxu0 0.0
      %1228 = vmatpush2.msra.mxu0 0.0
      %1229 = vmatprep.subr.mxu0 0.0
      %1230 = vmatpush2.msra.mxu0 0.0
      %1231 = vmatprep.subr.mxu0 0.0
      %1232 = vmatpush2.msra.mxu0 0.0
      %1233 = vmatprep.subr.mxu0 0.0
      %1234 = vmatpush2.msra.mxu0 0.0
      %1235 = vmatprep.mubr.f32.mxu0 0.0
      %1236 = vmatmul.mubr.f32.gmra.mxu0 %v1025
      %v1237 = vpop.f32.mrf.mxu0
      %v1238 = vadd.f32 0.0, %v1237
      %v1239 = vpop.f32.mrf.mxu0
      %v1240 = vadd.f32 0.0, %v1239
      %1241 = vdwg.mxu0
      %v1242 = vadd.f32 %v1032, %v1167
      %v1243 = vadd.f32 %v1033, %v1169
      %v1244 = vadd.f32 %v1034, %v1238
      %v1245 = vadd.f32 %v1035, %v1240
      %v1246 = vxor.u32 %v1242, 2147483648
      %v1247 = vmul.f32 %v1246, 1.442695
      %v1248 = vpow.pop %v1247
      %v1249 = vadd.f32 %v1248, 1.0
      %v1250 = vrcp.pop %v1249
      %v1251 = vmul.f32 1.0, %v1250
      %v1252 = vxor.u32 %v1243, 2147483648
      %v1253 = vmul.f32 %v1252, 1.442695
      %v1254 = vpow.pop %v1253
      %v1255 = vadd.f32 %v1254, 1.0
      %v1256 = vrcp.pop %v1255
      %v1257 = vmul.f32 1.0, %v1256
      %v1258 = vtanh.pop %v1244
      %v1259 = vxor.u32 %v1245, 2147483648
      %v1260 = vmul.f32 %v1259, 1.442695
      %v1261 = vpow.pop %v1260
      %v1262 = vadd.f32 %v1261, 1.0
      %v1263 = vrcp.pop %v1262
      %v1264 = vmul.f32 1.0, %v1263
      %v1265 = vmul.f32 %v1257, %v1026
      %v1266 = vmul.f32 %v1251, %v1258
      %v1267 = vadd.f32 %v1265, %v1266
      %v1268 = vtanh.pop %v1267
      %v1269 = vmul.f32 %v1264, %v1268
      %v1270 = vstv %s1028
      %vm1271 = vcmp.lt.s32.totalorder %v1270, %v341
      %v1272 = vsel %vm1271, 1, 0
      %1273 = vset.pattern.permute.xlu0 0
      %1274 = vperm.xlu0 %1273, %v1272
      %v1275 = vpop.permute.xlu0 %1274
      %vm1276 = vcmp.eq.s32.totalorder %v1275, 1
      %v1277 = vsel %vm1276, %v1269, 0.0
      %v1278 = vld [vmem:[%s309] sm:$0xff]
      %v1279 = vld [vmem:[%s309 + $0x8] sm:$0xff]
      %v1280 = vld [vmem:[%s309 + $0x10] sm:$0xff]
      %v1281 = vld [vmem:[%s309 + $0x18] sm:$0xff]
      %v1282 = vld [vmem:[%s309 + $0x20] sm:$0xff]
      %v1283 = vld [vmem:[%s309 + $0x28] sm:$0xff]
      %v1284 = vld [vmem:[%s309 + $0x30] sm:$0xff]
      %v1285 = vld [vmem:[%s309 + $0x38] sm:$0xff]
      %v1286 = vld [vmem:[%s309 + $0x40] sm:$0xff]
      %v1287 = vld [vmem:[%s309 + $0x48] sm:$0xff]
      %v1288 = vld [vmem:[%s309 + $0x50] sm:$0xff]
      %v1289 = vld [vmem:[%s309 + $0x58] sm:$0xff]
      %v1290 = vld [vmem:[%s309 + $0x60] sm:$0xff]
      %v1291 = vld [vmem:[%s309 + $0x68] sm:$0xff]
      %v1292 = vld [vmem:[%s309 + $0x70] sm:$0xff]
      %v1293 = vld [vmem:[%s309 + $0x78] sm:$0xff]
      %1294 = vmatprep.subr.mxu0 0.0
      %1295 = vmatpush1.msra.mxu0 %v1293
      %1296 = vmatprep.subr.mxu0 0.0
      %1297 = vmatpush1.msra.mxu0 %v1292
      %1298 = vmatprep.subr.mxu0 0.0
      %1299 = vmatpush1.msra.mxu0 %v1291
      %1300 = vmatprep.subr.mxu0 0.0
      %1301 = vmatpush1.msra.mxu0 %v1290
      %1302 = vmatprep.subr.mxu0 0.0
      %1303 = vmatpush1.msra.mxu0 %v1289
      %1304 = vmatprep.subr.mxu0 0.0
      %1305 = vmatpush1.msra.mxu0 %v1288
      %1306 = vmatprep.subr.mxu0 0.0
      %1307 = vmatpush1.msra.mxu0 %v1287
      %1308 = vmatprep.subr.mxu0 0.0
      %1309 = vmatpush1.msra.mxu0 %v1286
      %1310 = vmatprep.subr.mxu0 0.0
      %1311 = vmatpush1.msra.mxu0 %v1285
      %1312 = vmatprep.subr.mxu0 0.0
      %1313 = vmatpush1.msra.mxu0 %v1284
      %1314 = vmatprep.subr.mxu0 0.0
      %1315 = vmatpush1.msra.mxu0 %v1283
      %1316 = vmatprep.subr.mxu0 0.0
      %1317 = vmatpush1.msra.mxu0 %v1282
      %1318 = vmatprep.subr.mxu0 0.0
      %1319 = vmatpush1.msra.mxu0 %v1281
      %1320 = vmatprep.subr.mxu0 0.0
      %1321 = vmatpush1.msra.mxu0 %v1280
      %1322 = vmatprep.subr.mxu0 0.0
      %1323 = vmatpush1.msra.mxu0 %v1279
      %1324 = vmatprep.subr.mxu0 0.0
      %1325 = vmatpush1.msra.mxu0 %v1278
      %1326 = vmatprep.subr.mxu0 0.0
      %1327 = vmatpush2.msra.mxu0 0.0
      %1328 = vmatprep.subr.mxu0 0.0
      %1329 = vmatpush2.msra.mxu0 0.0
      %1330 = vmatprep.subr.mxu0 0.0
      %1331 = vmatpush2.msra.mxu0 0.0
      %1332 = vmatprep.subr.mxu0 0.0
      %1333 = vmatpush2.msra.mxu0 0.0
      %1334 = vmatprep.subr.mxu0 0.0
      %1335 = vmatpush2.msra.mxu0 0.0
      %1336 = vmatprep.subr.mxu0 0.0
      %1337 = vmatpush2.msra.mxu0 0.0
      %1338 = vmatprep.subr.mxu0 0.0
      %1339 = vmatpush2.msra.mxu0 0.0
      %1340 = vmatprep.subr.mxu0 0.0
      %1341 = vmatpush2.msra.mxu0 0.0
      %1342 = vmatprep.subr.mxu0 0.0
      %1343 = vmatpush2.msra.mxu0 0.0
      %1344 = vmatprep.subr.mxu0 0.0
      %1345 = vmatpush2.msra.mxu0 0.0
      %1346 = vmatprep.subr.mxu0 0.0
      %1347 = vmatpush2.msra.mxu0 0.0
      %1348 = vmatprep.subr.mxu0 0.0
      %1349 = vmatpush2.msra.mxu0 0.0
      %1350 = vmatprep.subr.mxu0 0.0
      %1351 = vmatpush2.msra.mxu0 0.0
      %1352 = vmatprep.subr.mxu0 0.0
      %1353 = vmatpush2.msra.mxu0 0.0
      %1354 = vmatprep.subr.mxu0 0.0
      %1355 = vmatpush2.msra.mxu0 0.0
      %1356 = vmatprep.subr.mxu0 0.0
      %1357 = vmatpush2.msra.mxu0 0.0
      %1358 = vmatprep.mubr.f32.mxu0 0.0
      %1359 = vmatmul.mubr.f32.gmra.mxu0 %v1277
      %v1360 = vpop.f32.mrf.mxu0
      %v1361 = vadd.f32 0.0, %v1360
      %v1362 = vpop.f32.mrf.mxu0
      %1363 = vdwg.mxu0
      %s1364 = smul.u32 %s1028, 8
      %s1365 = scalar_lea.vmem %s322, %s1364
      %1366 = vst [vmem:[%s1365] sm:$0xff] %v1361
      %v1367 = vsel %vm1276, %v1269, %v1025
      %v1368 = vsel %vm1276, %v1267, %v1026
      %s1369 = sadd.s32 %s19, 3
      %s1370 = smul.u32 %s1369, 4
      %s1371 = smul.addr %s1370, 8
      %s1372 = scalar_lea.vmem %s294, %s1371
      %v1373 = vld [vmem:[%s1372] sm:$0xff]
      %v1374 = vld [vmem:[%s1372 + $0x8] sm:$0xff]
      %v1375 = vld [vmem:[%s1372 + $0x10] sm:$0xff]
      %v1376 = vld [vmem:[%s1372 + $0x18] sm:$0xff]
      %v1377 = vld [vmem:[%s304] sm:$0xff]
      %v1378 = vld [vmem:[%s304 + $0x8] sm:$0xff]
      %v1379 = vld [vmem:[%s304 + $0x10] sm:$0xff]
      %v1380 = vld [vmem:[%s304 + $0x18] sm:$0xff]
      %v1381 = vld [vmem:[%s304 + $0x20] sm:$0xff]
      %v1382 = vld [vmem:[%s304 + $0x28] sm:$0xff]
      %v1383 = vld [vmem:[%s304 + $0x30] sm:$0xff]
      %v1384 = vld [vmem:[%s304 + $0x38] sm:$0xff]
      %v1385 = vld [vmem:[%s304 + $0x40] sm:$0xff]
      %v1386 = vld [vmem:[%s304 + $0x48] sm:$0xff]
      %v1387 = vld [vmem:[%s304 + $0x50] sm:$0xff]
      %v1388 = vld [vmem:[%s304 + $0x58] sm:$0xff]
      %v1389 = vld [vmem:[%s304 + $0x60] sm:$0xff]
      %v1390 = vld [vmem:[%s304 + $0x68] sm:$0xff]
      %v1391 = vld [vmem:[%s304 + $0x70] sm:$0xff]
      %v1392 = vld [vmem:[%s304 + $0x78] sm:$0xff]
      %v1393 = vld [vmem:[%s304 + $0x80] sm:$0xff]
      %v1394 = vld [vmem:[%s304 + $0x88] sm:$0xff]
      %v1395 = vld [vmem:[%s304 + $0x90] sm:$0xff]
      %v1396 = vld [vmem:[%s304 + $0x98] sm:$0xff]
      %v1397 = vld [vmem:[%s304 + $0xa0] sm:$0xff]
      %v1398 = vld [vmem:[%s304 + $0xa8] sm:$0xff]
      %v1399 = vld [vmem:[%s304 + $0xb0] sm:$0xff]
      %v1400 = vld [vmem:[%s304 + $0xb8] sm:$0xff]
      %v1401 = vld [vmem:[%s304 + $0xc0] sm:$0xff]
      %v1402 = vld [vmem:[%s304 + $0xc8] sm:$0xff]
      %v1403 = vld [vmem:[%s304 + $0xd0] sm:$0xff]
      %v1404 = vld [vmem:[%s304 + $0xd8] sm:$0xff]
      %v1405 = vld [vmem:[%s304 + $0xe0] sm:$0xff]
      %v1406 = vld [vmem:[%s304 + $0xe8] sm:$0xff]
      %v1407 = vld [vmem:[%s304 + $0xf0] sm:$0xff]
      %v1408 = vld [vmem:[%s304 + $0xf8] sm:$0xff]
      %v1409 = vld [vmem:[%s304 + $0x100] sm:$0xff]
      %v1410 = vld [vmem:[%s304 + $0x108] sm:$0xff]
      %v1411 = vld [vmem:[%s304 + $0x110] sm:$0xff]
      %v1412 = vld [vmem:[%s304 + $0x118] sm:$0xff]
      %v1413 = vld [vmem:[%s304 + $0x120] sm:$0xff]
      %v1414 = vld [vmem:[%s304 + $0x128] sm:$0xff]
      %v1415 = vld [vmem:[%s304 + $0x130] sm:$0xff]
      %v1416 = vld [vmem:[%s304 + $0x138] sm:$0xff]
      %v1417 = vld [vmem:[%s304 + $0x140] sm:$0xff]
      %v1418 = vld [vmem:[%s304 + $0x148] sm:$0xff]
      %v1419 = vld [vmem:[%s304 + $0x150] sm:$0xff]
      %v1420 = vld [vmem:[%s304 + $0x158] sm:$0xff]
      %v1421 = vld [vmem:[%s304 + $0x160] sm:$0xff]
      %v1422 = vld [vmem:[%s304 + $0x168] sm:$0xff]
      %v1423 = vld [vmem:[%s304 + $0x170] sm:$0xff]
      %v1424 = vld [vmem:[%s304 + $0x178] sm:$0xff]
      %v1425 = vld [vmem:[%s304 + $0x180] sm:$0xff]
      %v1426 = vld [vmem:[%s304 + $0x188] sm:$0xff]
      %v1427 = vld [vmem:[%s304 + $0x190] sm:$0xff]
      %v1428 = vld [vmem:[%s304 + $0x198] sm:$0xff]
      %v1429 = vld [vmem:[%s304 + $0x1a0] sm:$0xff]
      %v1430 = vld [vmem:[%s304 + $0x1a8] sm:$0xff]
      %v1431 = vld [vmem:[%s304 + $0x1b0] sm:$0xff]
      %v1432 = vld [vmem:[%s304 + $0x1b8] sm:$0xff]
      %v1433 = vld [vmem:[%s304 + $0x1c0] sm:$0xff]
      %v1434 = vld [vmem:[%s304 + $0x1c8] sm:$0xff]
      %v1435 = vld [vmem:[%s304 + $0x1d0] sm:$0xff]
      %v1436 = vld [vmem:[%s304 + $0x1d8] sm:$0xff]
      %v1437 = vld [vmem:[%s304 + $0x1e0] sm:$0xff]
      %v1438 = vld [vmem:[%s304 + $0x1e8] sm:$0xff]
      %v1439 = vld [vmem:[%s304 + $0x1f0] sm:$0xff]
      %v1440 = vld [vmem:[%s304 + $0x1f8] sm:$0xff]
      %1441 = vmatprep.subr.mxu0 %v1438
      %1442 = vmatpush1.msra.mxu0 %v1437
      %1443 = vmatprep.subr.mxu0 %v1434
      %1444 = vmatpush1.msra.mxu0 %v1433
      %1445 = vmatprep.subr.mxu0 %v1430
      %1446 = vmatpush1.msra.mxu0 %v1429
      %1447 = vmatprep.subr.mxu0 %v1426
      %1448 = vmatpush1.msra.mxu0 %v1425
      %1449 = vmatprep.subr.mxu0 %v1422
      %1450 = vmatpush1.msra.mxu0 %v1421
      %1451 = vmatprep.subr.mxu0 %v1418
      %1452 = vmatpush1.msra.mxu0 %v1417
      %1453 = vmatprep.subr.mxu0 %v1414
      %1454 = vmatpush1.msra.mxu0 %v1413
      %1455 = vmatprep.subr.mxu0 %v1410
      %1456 = vmatpush1.msra.mxu0 %v1409
      %1457 = vmatprep.subr.mxu0 %v1406
      %1458 = vmatpush1.msra.mxu0 %v1405
      %1459 = vmatprep.subr.mxu0 %v1402
      %1460 = vmatpush1.msra.mxu0 %v1401
      %1461 = vmatprep.subr.mxu0 %v1398
      %1462 = vmatpush1.msra.mxu0 %v1397
      %1463 = vmatprep.subr.mxu0 %v1394
      %1464 = vmatpush1.msra.mxu0 %v1393
      %1465 = vmatprep.subr.mxu0 %v1390
      %1466 = vmatpush1.msra.mxu0 %v1389
      %1467 = vmatprep.subr.mxu0 %v1386
      %1468 = vmatpush1.msra.mxu0 %v1385
      %1469 = vmatprep.subr.mxu0 %v1382
      %1470 = vmatpush1.msra.mxu0 %v1381
      %1471 = vmatprep.subr.mxu0 %v1378
      %1472 = vmatpush1.msra.mxu0 %v1377
      %1473 = vmatprep.subr.mxu0 0.0
      %1474 = vmatpush2.msra.mxu0 0.0
      %1475 = vmatprep.subr.mxu0 0.0
      %1476 = vmatpush2.msra.mxu0 0.0
      %1477 = vmatprep.subr.mxu0 0.0
      %1478 = vmatpush2.msra.mxu0 0.0
      %1479 = vmatprep.subr.mxu0 0.0
      %1480 = vmatpush2.msra.mxu0 0.0
      %1481 = vmatprep.subr.mxu0 0.0
      %1482 = vmatpush2.msra.mxu0 0.0
      %1483 = vmatprep.subr.mxu0 0.0
      %1484 = vmatpush2.msra.mxu0 0.0
      %1485 = vmatprep.subr.mxu0 0.0
      %1486 = vmatpush2.msra.mxu0 0.0
      %1487 = vmatprep.subr.mxu0 0.0
      %1488 = vmatpush2.msra.mxu0 0.0
      %1489 = vmatprep.subr.mxu0 0.0
      %1490 = vmatpush2.msra.mxu0 0.0
      %1491 = vmatprep.subr.mxu0 0.0
      %1492 = vmatpush2.msra.mxu0 0.0
      %1493 = vmatprep.subr.mxu0 0.0
      %1494 = vmatpush2.msra.mxu0 0.0
      %1495 = vmatprep.subr.mxu0 0.0
      %1496 = vmatpush2.msra.mxu0 0.0
      %1497 = vmatprep.subr.mxu0 0.0
      %1498 = vmatpush2.msra.mxu0 0.0
      %1499 = vmatprep.subr.mxu0 0.0
      %1500 = vmatpush2.msra.mxu0 0.0
      %1501 = vmatprep.subr.mxu0 0.0
      %1502 = vmatpush2.msra.mxu0 0.0
      %1503 = vmatprep.subr.mxu0 0.0
      %1504 = vmatpush2.msra.mxu0 0.0
      %1505 = vmatprep.mubr.f32.mxu0 0.0
      %1506 = vmatmul.mubr.f32.gmra.mxu0 %v1367
      %v1507 = vpop.f32.mrf.mxu0
      %v1508 = vadd.f32 0.0, %v1507
      %v1509 = vpop.f32.mrf.mxu0
      %v1510 = vadd.f32 0.0, %v1509
      %1511 = vdwg.mxu0
      %1512 = vmatprep.subr.mxu0 %v1440
      %1513 = vmatpush1.msra.mxu0 %v1439
      %1514 = vmatprep.subr.mxu0 %v1436
      %1515 = vmatpush1.msra.mxu0 %v1435
      %1516 = vmatprep.subr.mxu0 %v1432
      %1517 = vmatpush1.msra.mxu0 %v1431
      %1518 = vmatprep.subr.mxu0 %v1428
      %1519 = vmatpush1.msra.mxu0 %v1427
      %1520 = vmatprep.subr.mxu0 %v1424
      %1521 = vmatpush1.msra.mxu0 %v1423
      %1522 = vmatprep.subr.mxu0 %v1420
      %1523 = vmatpush1.msra.mxu0 %v1419
      %1524 = vmatprep.subr.mxu0 %v1416
      %1525 = vmatpush1.msra.mxu0 %v1415
      %1526 = vmatprep.subr.mxu0 %v1412
      %1527 = vmatpush1.msra.mxu0 %v1411
      %1528 = vmatprep.subr.mxu0 %v1408
      %1529 = vmatpush1.msra.mxu0 %v1407
      %1530 = vmatprep.subr.mxu0 %v1404
      %1531 = vmatpush1.msra.mxu0 %v1403
      %1532 = vmatprep.subr.mxu0 %v1400
      %1533 = vmatpush1.msra.mxu0 %v1399
      %1534 = vmatprep.subr.mxu0 %v1396
      %1535 = vmatpush1.msra.mxu0 %v1395
      %1536 = vmatprep.subr.mxu0 %v1392
      %1537 = vmatpush1.msra.mxu0 %v1391
      %1538 = vmatprep.subr.mxu0 %v1388
      %1539 = vmatpush1.msra.mxu0 %v1387
      %1540 = vmatprep.subr.mxu0 %v1384
      %1541 = vmatpush1.msra.mxu0 %v1383
      %1542 = vmatprep.subr.mxu0 %v1380
      %1543 = vmatpush1.msra.mxu0 %v1379
      %1544 = vmatprep.subr.mxu0 0.0
      %1545 = vmatpush2.msra.mxu0 0.0
      %1546 = vmatprep.subr.mxu0 0.0
      %1547 = vmatpush2.msra.mxu0 0.0
      %1548 = vmatprep.subr.mxu0 0.0
      %1549 = vmatpush2.msra.mxu0 0.0
      %1550 = vmatprep.subr.mxu0 0.0
      %1551 = vmatpush2.msra.mxu0 0.0
      %1552 = vmatprep.subr.mxu0 0.0
      %1553 = vmatpush2.msra.mxu0 0.0
      %1554 = vmatprep.subr.mxu0 0.0
      %1555 = vmatpush2.msra.mxu0 0.0
      %1556 = vmatprep.subr.mxu0 0.0
      %1557 = vmatpush2.msra.mxu0 0.0
      %1558 = vmatprep.subr.mxu0 0.0
      %1559 = vmatpush2.msra.mxu0 0.0
      %1560 = vmatprep.subr.mxu0 0.0
      %1561 = vmatpush2.msra.mxu0 0.0
      %1562 = vmatprep.subr.mxu0 0.0
      %1563 = vmatpush2.msra.mxu0 0.0
      %1564 = vmatprep.subr.mxu0 0.0
      %1565 = vmatpush2.msra.mxu0 0.0
      %1566 = vmatprep.subr.mxu0 0.0
      %1567 = vmatpush2.msra.mxu0 0.0
      %1568 = vmatprep.subr.mxu0 0.0
      %1569 = vmatpush2.msra.mxu0 0.0
      %1570 = vmatprep.subr.mxu0 0.0
      %1571 = vmatpush2.msra.mxu0 0.0
      %1572 = vmatprep.subr.mxu0 0.0
      %1573 = vmatpush2.msra.mxu0 0.0
      %1574 = vmatprep.subr.mxu0 0.0
      %1575 = vmatpush2.msra.mxu0 0.0
      %1576 = vmatprep.mubr.f32.mxu0 0.0
      %1577 = vmatmul.mubr.f32.gmra.mxu0 %v1367
      %v1578 = vpop.f32.mrf.mxu0
      %v1579 = vadd.f32 0.0, %v1578
      %v1580 = vpop.f32.mrf.mxu0
      %v1581 = vadd.f32 0.0, %v1580
      %1582 = vdwg.mxu0
      %v1583 = vadd.f32 %v1373, %v1508
      %v1584 = vadd.f32 %v1374, %v1510
      %v1585 = vadd.f32 %v1375, %v1579
      %v1586 = vadd.f32 %v1376, %v1581
      %v1587 = vxor.u32 %v1583, 2147483648
      %v1588 = vmul.f32 %v1587, 1.442695
      %v1589 = vpow.pop %v1588
      %v1590 = vadd.f32 %v1589, 1.0
      %v1591 = vrcp.pop %v1590
      %v1592 = vmul.f32 1.0, %v1591
      %v1593 = vxor.u32 %v1584, 2147483648
      %v1594 = vmul.f32 %v1593, 1.442695
      %v1595 = vpow.pop %v1594
      %v1596 = vadd.f32 %v1595, 1.0
      %v1597 = vrcp.pop %v1596
      %v1598 = vmul.f32 1.0, %v1597
      %v1599 = vtanh.pop %v1585
      %v1600 = vxor.u32 %v1586, 2147483648
      %v1601 = vmul.f32 %v1600, 1.442695
      %v1602 = vpow.pop %v1601
      %v1603 = vadd.f32 %v1602, 1.0
      %v1604 = vrcp.pop %v1603
      %v1605 = vmul.f32 1.0, %v1604
      %v1606 = vmul.f32 %v1598, %v1368
      %v1607 = vmul.f32 %v1592, %v1599
      %v1608 = vadd.f32 %v1606, %v1607
      %v1609 = vtanh.pop %v1608
      %v1610 = vmul.f32 %v1605, %v1609
      %v1611 = vstv %s1369
      %vm1612 = vcmp.lt.s32.totalorder %v1611, %v341
      %v1613 = vsel %vm1612, 1, 0
      %1614 = vset.pattern.permute.xlu0 0
      %1615 = vperm.xlu0 %1614, %v1613
      %v1616 = vpop.permute.xlu0 %1615
      %vm1617 = vcmp.eq.s32.totalorder %v1616, 1
      %v1618 = vsel %vm1617, %v1610, 0.0
      %v1619 = vld [vmem:[%s309] sm:$0xff]
      %v1620 = vld [vmem:[%s309 + $0x8] sm:$0xff]
      %v1621 = vld [vmem:[%s309 + $0x10] sm:$0xff]
      %v1622 = vld [vmem:[%s309 + $0x18] sm:$0xff]
      %v1623 = vld [vmem:[%s309 + $0x20] sm:$0xff]
      %v1624 = vld [vmem:[%s309 + $0x28] sm:$0xff]
      %v1625 = vld [vmem:[%s309 + $0x30] sm:$0xff]
      %v1626 = vld [vmem:[%s309 + $0x38] sm:$0xff]
      %v1627 = vld [vmem:[%s309 + $0x40] sm:$0xff]
      %v1628 = vld [vmem:[%s309 + $0x48] sm:$0xff]
      %v1629 = vld [vmem:[%s309 + $0x50] sm:$0xff]
      %v1630 = vld [vmem:[%s309 + $0x58] sm:$0xff]
      %v1631 = vld [vmem:[%s309 + $0x60] sm:$0xff]
      %v1632 = vld [vmem:[%s309 + $0x68] sm:$0xff]
      %v1633 = vld [vmem:[%s309 + $0x70] sm:$0xff]
      %v1634 = vld [vmem:[%s309 + $0x78] sm:$0xff]
      %1635 = vmatprep.subr.mxu0 0.0
      %1636 = vmatpush1.msra.mxu0 %v1634
      %1637 = vmatprep.subr.mxu0 0.0
      %1638 = vmatpush1.msra.mxu0 %v1633
      %1639 = vmatprep.subr.mxu0 0.0
      %1640 = vmatpush1.msra.mxu0 %v1632
      %1641 = vmatprep.subr.mxu0 0.0
      %1642 = vmatpush1.msra.mxu0 %v1631
      %1643 = vmatprep.subr.mxu0 0.0
      %1644 = vmatpush1.msra.mxu0 %v1630
      %1645 = vmatprep.subr.mxu0 0.0
      %1646 = vmatpush1.msra.mxu0 %v1629
      %1647 = vmatprep.subr.mxu0 0.0
      %1648 = vmatpush1.msra.mxu0 %v1628
      %1649 = vmatprep.subr.mxu0 0.0
      %1650 = vmatpush1.msra.mxu0 %v1627
      %1651 = vmatprep.subr.mxu0 0.0
      %1652 = vmatpush1.msra.mxu0 %v1626
      %1653 = vmatprep.subr.mxu0 0.0
      %1654 = vmatpush1.msra.mxu0 %v1625
      %1655 = vmatprep.subr.mxu0 0.0
      %1656 = vmatpush1.msra.mxu0 %v1624
      %1657 = vmatprep.subr.mxu0 0.0
      %1658 = vmatpush1.msra.mxu0 %v1623
      %1659 = vmatprep.subr.mxu0 0.0
      %1660 = vmatpush1.msra.mxu0 %v1622
      %1661 = vmatprep.subr.mxu0 0.0
      %1662 = vmatpush1.msra.mxu0 %v1621
      %1663 = vmatprep.subr.mxu0 0.0
      %1664 = vmatpush1.msra.mxu0 %v1620
      %1665 = vmatprep.subr.mxu0 0.0
      %1666 = vmatpush1.msra.mxu0 %v1619
      %1667 = vmatprep.subr.mxu0 0.0
      %1668 = vmatpush2.msra.mxu0 0.0
      %1669 = vmatprep.subr.mxu0 0.0
      %1670 = vmatpush2.msra.mxu0 0.0
      %1671 = vmatprep.subr.mxu0 0.0
      %1672 = vmatpush2.msra.mxu0 0.0
      %1673 = vmatprep.subr.mxu0 0.0
      %1674 = vmatpush2.msra.mxu0 0.0
      %1675 = vmatprep.subr.mxu0 0.0
      %1676 = vmatpush2.msra.mxu0 0.0
      %1677 = vmatprep.subr.mxu0 0.0
      %1678 = vmatpush2.msra.mxu0 0.0
      %1679 = vmatprep.subr.mxu0 0.0
      %1680 = vmatpush2.msra.mxu0 0.0
      %1681 = vmatprep.subr.mxu0 0.0
      %1682 = vmatpush2.msra.mxu0 0.0
      %1683 = vmatprep.subr.mxu0 0.0
      %1684 = vmatpush2.msra.mxu0 0.0
      %1685 = vmatprep.subr.mxu0 0.0
      %1686 = vmatpush2.msra.mxu0 0.0
      %1687 = vmatprep.subr.mxu0 0.0
      %1688 = vmatpush2.msra.mxu0 0.0
      %1689 = vmatprep.subr.mxu0 0.0
      %1690 = vmatpush2.msra.mxu0 0.0
      %1691 = vmatprep.subr.mxu0 0.0
      %1692 = vmatpush2.msra.mxu0 0.0
      %1693 = vmatprep.subr.mxu0 0.0
      %1694 = vmatpush2.msra.mxu0 0.0
      %1695 = vmatprep.subr.mxu0 0.0
      %1696 = vmatpush2.msra.mxu0 0.0
      %1697 = vmatprep.subr.mxu0 0.0
      %1698 = vmatpush2.msra.mxu0 0.0
      %1699 = vmatprep.mubr.f32.mxu0 0.0
      %1700 = vmatmul.mubr.f32.gmra.mxu0 %v1618
      %v1701 = vpop.f32.mrf.mxu0
      %v1702 = vadd.f32 0.0, %v1701
      %v1703 = vpop.f32.mrf.mxu0
      %1704 = vdwg.mxu0
      %s1705 = smul.u32 %s1369, 8
      %s1706 = scalar_lea.vmem %s322, %s1705
      %1707 = vst [vmem:[%s1706] sm:$0xff] %v1702
      %v1708 = vsel %vm1617, %v1610, %v1367
      %v1709 = vsel %vm1617, %v1608, %v1368
      %s1710 = ssub.s32 4, %s19
      %s1711 = smul.u32 %s1710, 4
      %s1712 = smul.addr %s1711, 8
      %s1713 = scalar_lea.vmem %s294, %s1712
      %v1714 = vld [vmem:[%s1713] sm:$0xff]
      %v1715 = vld [vmem:[%s1713 + $0x8] sm:$0xff]
      %v1716 = vld [vmem:[%s1713 + $0x10] sm:$0xff]
      %v1717 = vld [vmem:[%s1713 + $0x18] sm:$0xff]
      %v1718 = vld [vmem:[%s304] sm:$0xff]
      %v1719 = vld [vmem:[%s304 + $0x8] sm:$0xff]
      %v1720 = vld [vmem:[%s304 + $0x10] sm:$0xff]
      %v1721 = vld [vmem:[%s304 + $0x18] sm:$0xff]
      %v1722 = vld [vmem:[%s304 + $0x20] sm:$0xff]
      %v1723 = vld [vmem:[%s304 + $0x28] sm:$0xff]
      %v1724 = vld [vmem:[%s304 + $0x30] sm:$0xff]
      %v1725 = vld [vmem:[%s304 + $0x38] sm:$0xff]
      %v1726 = vld [vmem:[%s304 + $0x40] sm:$0xff]
      %v1727 = vld [vmem:[%s304 + $0x48] sm:$0xff]
      %v1728 = vld [vmem:[%s304 + $0x50] sm:$0xff]
      %v1729 = vld [vmem:[%s304 + $0x58] sm:$0xff]
      %v1730 = vld [vmem:[%s304 + $0x60] sm:$0xff]
      %v1731 = vld [vmem:[%s304 + $0x68] sm:$0xff]
      %v1732 = vld [vmem:[%s304 + $0x70] sm:$0xff]
      %v1733 = vld [vmem:[%s304 + $0x78] sm:$0xff]
      %v1734 = vld [vmem:[%s304 + $0x80] sm:$0xff]
      %v1735 = vld [vmem:[%s304 + $0x88] sm:$0xff]
      %v1736 = vld [vmem:[%s304 + $0x90] sm:$0xff]
      %v1737 = vld [vmem:[%s304 + $0x98] sm:$0xff]
      %v1738 = vld [vmem:[%s304 + $0xa0] sm:$0xff]
      %v1739 = vld [vmem:[%s304 + $0xa8] sm:$0xff]
      %v1740 = vld [vmem:[%s304 + $0xb0] sm:$0xff]
      %v1741 = vld [vmem:[%s304 + $0xb8] sm:$0xff]
      %v1742 = vld [vmem:[%s304 + $0xc0] sm:$0xff]
      %v1743 = vld [vmem:[%s304 + $0xc8] sm:$0xff]
      %v1744 = vld [vmem:[%s304 + $0xd0] sm:$0xff]
      %v1745 = vld [vmem:[%s304 + $0xd8] sm:$0xff]
      %v1746 = vld [vmem:[%s304 + $0xe0] sm:$0xff]
      %v1747 = vld [vmem:[%s304 + $0xe8] sm:$0xff]
      %v1748 = vld [vmem:[%s304 + $0xf0] sm:$0xff]
      %v1749 = vld [vmem:[%s304 + $0xf8] sm:$0xff]
      %v1750 = vld [vmem:[%s304 + $0x100] sm:$0xff]
      %v1751 = vld [vmem:[%s304 + $0x108] sm:$0xff]
      %v1752 = vld [vmem:[%s304 + $0x110] sm:$0xff]
      %v1753 = vld [vmem:[%s304 + $0x118] sm:$0xff]
      %v1754 = vld [vmem:[%s304 + $0x120] sm:$0xff]
      %v1755 = vld [vmem:[%s304 + $0x128] sm:$0xff]
      %v1756 = vld [vmem:[%s304 + $0x130] sm:$0xff]
      %v1757 = vld [vmem:[%s304 + $0x138] sm:$0xff]
      %v1758 = vld [vmem:[%s304 + $0x140] sm:$0xff]
      %v1759 = vld [vmem:[%s304 + $0x148] sm:$0xff]
      %v1760 = vld [vmem:[%s304 + $0x150] sm:$0xff]
      %v1761 = vld [vmem:[%s304 + $0x158] sm:$0xff]
      %v1762 = vld [vmem:[%s304 + $0x160] sm:$0xff]
      %v1763 = vld [vmem:[%s304 + $0x168] sm:$0xff]
      %v1764 = vld [vmem:[%s304 + $0x170] sm:$0xff]
      %v1765 = vld [vmem:[%s304 + $0x178] sm:$0xff]
      %v1766 = vld [vmem:[%s304 + $0x180] sm:$0xff]
      %v1767 = vld [vmem:[%s304 + $0x188] sm:$0xff]
      %v1768 = vld [vmem:[%s304 + $0x190] sm:$0xff]
      %v1769 = vld [vmem:[%s304 + $0x198] sm:$0xff]
      %v1770 = vld [vmem:[%s304 + $0x1a0] sm:$0xff]
      %v1771 = vld [vmem:[%s304 + $0x1a8] sm:$0xff]
      %v1772 = vld [vmem:[%s304 + $0x1b0] sm:$0xff]
      %v1773 = vld [vmem:[%s304 + $0x1b8] sm:$0xff]
      %v1774 = vld [vmem:[%s304 + $0x1c0] sm:$0xff]
      %v1775 = vld [vmem:[%s304 + $0x1c8] sm:$0xff]
      %v1776 = vld [vmem:[%s304 + $0x1d0] sm:$0xff]
      %v1777 = vld [vmem:[%s304 + $0x1d8] sm:$0xff]
      %v1778 = vld [vmem:[%s304 + $0x1e0] sm:$0xff]
      %v1779 = vld [vmem:[%s304 + $0x1e8] sm:$0xff]
      %v1780 = vld [vmem:[%s304 + $0x1f0] sm:$0xff]
      %v1781 = vld [vmem:[%s304 + $0x1f8] sm:$0xff]
      %1782 = vmatprep.subr.mxu0 %v1779
      %1783 = vmatpush1.msra.mxu0 %v1778
      %1784 = vmatprep.subr.mxu0 %v1775
      %1785 = vmatpush1.msra.mxu0 %v1774
      %1786 = vmatprep.subr.mxu0 %v1771
      %1787 = vmatpush1.msra.mxu0 %v1770
      %1788 = vmatprep.subr.mxu0 %v1767
      %1789 = vmatpush1.msra.mxu0 %v1766
      %1790 = vmatprep.subr.mxu0 %v1763
      %1791 = vmatpush1.msra.mxu0 %v1762
      %1792 = vmatprep.subr.mxu0 %v1759
      %1793 = vmatpush1.msra.mxu0 %v1758
      %1794 = vmatprep.subr.mxu0 %v1755
      %1795 = vmatpush1.msra.mxu0 %v1754
      %1796 = vmatprep.subr.mxu0 %v1751
      %1797 = vmatpush1.msra.mxu0 %v1750
      %1798 = vmatprep.subr.mxu0 %v1747
      %1799 = vmatpush1.msra.mxu0 %v1746
      %1800 = vmatprep.subr.mxu0 %v1743
      %1801 = vmatpush1.msra.mxu0 %v1742
      %1802 = vmatprep.subr.mxu0 %v1739
      %1803 = vmatpush1.msra.mxu0 %v1738
      %1804 = vmatprep.subr.mxu0 %v1735
      %1805 = vmatpush1.msra.mxu0 %v1734
      %1806 = vmatprep.subr.mxu0 %v1731
      %1807 = vmatpush1.msra.mxu0 %v1730
      %1808 = vmatprep.subr.mxu0 %v1727
      %1809 = vmatpush1.msra.mxu0 %v1726
      %1810 = vmatprep.subr.mxu0 %v1723
      %1811 = vmatpush1.msra.mxu0 %v1722
      %1812 = vmatprep.subr.mxu0 %v1719
      %1813 = vmatpush1.msra.mxu0 %v1718
      %1814 = vmatprep.subr.mxu0 0.0
      %1815 = vmatpush2.msra.mxu0 0.0
      %1816 = vmatprep.subr.mxu0 0.0
      %1817 = vmatpush2.msra.mxu0 0.0
      %1818 = vmatprep.subr.mxu0 0.0
      %1819 = vmatpush2.msra.mxu0 0.0
      %1820 = vmatprep.subr.mxu0 0.0
      %1821 = vmatpush2.msra.mxu0 0.0
      %1822 = vmatprep.subr.mxu0 0.0
      %1823 = vmatpush2.msra.mxu0 0.0
      %1824 = vmatprep.subr.mxu0 0.0
      %1825 = vmatpush2.msra.mxu0 0.0
      %1826 = vmatprep.subr.mxu0 0.0
      %1827 = vmatpush2.msra.mxu0 0.0
      %1828 = vmatprep.subr.mxu0 0.0
      %1829 = vmatpush2.msra.mxu0 0.0
      %1830 = vmatprep.subr.mxu0 0.0
      %1831 = vmatpush2.msra.mxu0 0.0
      %1832 = vmatprep.subr.mxu0 0.0
      %1833 = vmatpush2.msra.mxu0 0.0
      %1834 = vmatprep.subr.mxu0 0.0
      %1835 = vmatpush2.msra.mxu0 0.0
      %1836 = vmatprep.subr.mxu0 0.0
      %1837 = vmatpush2.msra.mxu0 0.0
      %1838 = vmatprep.subr.mxu0 0.0
      %1839 = vmatpush2.msra.mxu0 0.0
      %1840 = vmatprep.subr.mxu0 0.0
      %1841 = vmatpush2.msra.mxu0 0.0
      %1842 = vmatprep.subr.mxu0 0.0
      %1843 = vmatpush2.msra.mxu0 0.0
      %1844 = vmatprep.subr.mxu0 0.0
      %1845 = vmatpush2.msra.mxu0 0.0
      %1846 = vmatprep.mubr.f32.mxu0 0.0
      %1847 = vmatmul.mubr.f32.gmra.mxu0 %v1708
      %v1848 = vpop.f32.mrf.mxu0
      %v1849 = vadd.f32 0.0, %v1848
      %v1850 = vpop.f32.mrf.mxu0
      %v1851 = vadd.f32 0.0, %v1850
      %1852 = vdwg.mxu0
      %1853 = vmatprep.subr.mxu0 %v1781
      %1854 = vmatpush1.msra.mxu0 %v1780
      %1855 = vmatprep.subr.mxu0 %v1777
      %1856 = vmatpush1.msra.mxu0 %v1776
      %1857 = vmatprep.subr.mxu0 %v1773
      %1858 = vmatpush1.msra.mxu0 %v1772
      %1859 = vmatprep.subr.mxu0 %v1769
      %1860 = vmatpush1.msra.mxu0 %v1768
      %1861 = vmatprep.subr.mxu0 %v1765
      %1862 = vmatpush1.msra.mxu0 %v1764
      %1863 = vmatprep.subr.mxu0 %v1761
      %1864 = vmatpush1.msra.mxu0 %v1760
      %1865 = vmatprep.subr.mxu0 %v1757
      %1866 = vmatpush1.msra.mxu0 %v1756
      %1867 = vmatprep.subr.mxu0 %v1753
      %1868 = vmatpush1.msra.mxu0 %v1752
      %1869 = vmatprep.subr.mxu0 %v1749
      %1870 = vmatpush1.msra.mxu0 %v1748
      %1871 = vmatprep.subr.mxu0 %v1745
      %1872 = vmatpush1.msra.mxu0 %v1744
      %1873 = vmatprep.subr.mxu0 %v1741
      %1874 = vmatpush1.msra.mxu0 %v1740
      %1875 = vmatprep.subr.mxu0 %v1737
      %1876 = vmatpush1.msra.mxu0 %v1736
      %1877 = vmatprep.subr.mxu0 %v1733
      %1878 = vmatpush1.msra.mxu0 %v1732
      %1879 = vmatprep.subr.mxu0 %v1729
      %1880 = vmatpush1.msra.mxu0 %v1728
      %1881 = vmatprep.subr.mxu0 %v1725
      %1882 = vmatpush1.msra.mxu0 %v1724
      %1883 = vmatprep.subr.mxu0 %v1721
      %1884 = vmatpush1.msra.mxu0 %v1720
      %1885 = vmatprep.subr.mxu0 0.0
      %1886 = vmatpush2.msra.mxu0 0.0
      %1887 = vmatprep.subr.mxu0 0.0
      %1888 = vmatpush2.msra.mxu0 0.0
      %1889 = vmatprep.subr.mxu0 0.0
      %1890 = vmatpush2.msra.mxu0 0.0
      %1891 = vmatprep.subr.mxu0 0.0
      %1892 = vmatpush2.msra.mxu0 0.0
      %1893 = vmatprep.subr.mxu0 0.0
      %1894 = vmatpush2.msra.mxu0 0.0
      %1895 = vmatprep.subr.mxu0 0.0
      %1896 = vmatpush2.msra.mxu0 0.0
      %1897 = vmatprep.subr.mxu0 0.0
      %1898 = vmatpush2.msra.mxu0 0.0
      %1899 = vmatprep.subr.mxu0 0.0
      %1900 = vmatpush2.msra.mxu0 0.0
      %1901 = vmatprep.subr.mxu0 0.0
      %1902 = vmatpush2.msra.mxu0 0.0
      %1903 = vmatprep.subr.mxu0 0.0
      %1904 = vmatpush2.msra.mxu0 0.0
      %1905 = vmatprep.subr.mxu0 0.0
      %1906 = vmatpush2.msra.mxu0 0.0
      %1907 = vmatprep.subr.mxu0 0.0
      %1908 = vmatpush2.msra.mxu0 0.0
      %1909 = vmatprep.subr.mxu0 0.0
      %1910 = vmatpush2.msra.mxu0 0.0
      %1911 = vmatprep.subr.mxu0 0.0
      %1912 = vmatpush2.msra.mxu0 0.0
      %1913 = vmatprep.subr.mxu0 0.0
      %1914 = vmatpush2.msra.mxu0 0.0
      %1915 = vmatprep.subr.mxu0 0.0
      %1916 = vmatpush2.msra.mxu0 0.0
      %1917 = vmatprep.mubr.f32.mxu0 0.0
      %1918 = vmatmul.mubr.f32.gmra.mxu0 %v1708
      %v1919 = vpop.f32.mrf.mxu0
      %v1920 = vadd.f32 0.0, %v1919
      %v1921 = vpop.f32.mrf.mxu0
      %v1922 = vadd.f32 0.0, %v1921
      %1923 = vdwg.mxu0
      %v1924 = vadd.f32 %v1714, %v1849
      %v1925 = vadd.f32 %v1715, %v1851
      %v1926 = vadd.f32 %v1716, %v1920
      %v1927 = vadd.f32 %v1717, %v1922
      %v1928 = vxor.u32 %v1924, 2147483648
      %v1929 = vmul.f32 %v1928, 1.442695
      %v1930 = vpow.pop %v1929
      %v1931 = vadd.f32 %v1930, 1.0
      %v1932 = vrcp.pop %v1931
      %v1933 = vmul.f32 1.0, %v1932
      %v1934 = vxor.u32 %v1925, 2147483648
      %v1935 = vmul.f32 %v1934, 1.442695
      %v1936 = vpow.pop %v1935
      %v1937 = vadd.f32 %v1936, 1.0
      %v1938 = vrcp.pop %v1937
      %v1939 = vmul.f32 1.0, %v1938
      %v1940 = vtanh.pop %v1926
      %v1941 = vxor.u32 %v1927, 2147483648
      %v1942 = vmul.f32 %v1941, 1.442695
      %v1943 = vpow.pop %v1942
      %v1944 = vadd.f32 %v1943, 1.0
      %v1945 = vrcp.pop %v1944
      %v1946 = vmul.f32 1.0, %v1945
      %v1947 = vmul.f32 %v1939, %v1709
      %v1948 = vmul.f32 %v1933, %v1940
      %v1949 = vadd.f32 %v1947, %v1948
      %v1950 = vtanh.pop %v1949
      %v1951 = vmul.f32 %v1946, %v1950
      %v1952 = vstv %s1710
      %vm1953 = vcmp.lt.s32.totalorder %v1952, %v341
      %v1954 = vsel %vm1953, 1, 0
      %1955 = vset.pattern.permute.xlu0 0
      %1956 = vperm.xlu0 %1955, %v1954
      %v1957 = vpop.permute.xlu0 %1956
      %vm1958 = vcmp.eq.s32.totalorder %v1957, 1
      %v1959 = vsel %vm1958, %v1951, 0.0
      %v1960 = vld [vmem:[%s309] sm:$0xff]
      %v1961 = vld [vmem:[%s309 + $0x8] sm:$0xff]
      %v1962 = vld [vmem:[%s309 + $0x10] sm:$0xff]
      %v1963 = vld [vmem:[%s309 + $0x18] sm:$0xff]
      %v1964 = vld [vmem:[%s309 + $0x20] sm:$0xff]
      %v1965 = vld [vmem:[%s309 + $0x28] sm:$0xff]
      %v1966 = vld [vmem:[%s309 + $0x30] sm:$0xff]
      %v1967 = vld [vmem:[%s309 + $0x38] sm:$0xff]
      %v1968 = vld [vmem:[%s309 + $0x40] sm:$0xff]
      %v1969 = vld [vmem:[%s309 + $0x48] sm:$0xff]
      %v1970 = vld [vmem:[%s309 + $0x50] sm:$0xff]
      %v1971 = vld [vmem:[%s309 + $0x58] sm:$0xff]
      %v1972 = vld [vmem:[%s309 + $0x60] sm:$0xff]
      %v1973 = vld [vmem:[%s309 + $0x68] sm:$0xff]
      %v1974 = vld [vmem:[%s309 + $0x70] sm:$0xff]
      %v1975 = vld [vmem:[%s309 + $0x78] sm:$0xff]
      %1976 = vmatprep.subr.mxu0 0.0
      %1977 = vmatpush1.msra.mxu0 %v1975
      %1978 = vmatprep.subr.mxu0 0.0
      %1979 = vmatpush1.msra.mxu0 %v1974
      %1980 = vmatprep.subr.mxu0 0.0
      %1981 = vmatpush1.msra.mxu0 %v1973
      %1982 = vmatprep.subr.mxu0 0.0
      %1983 = vmatpush1.msra.mxu0 %v1972
      %1984 = vmatprep.subr.mxu0 0.0
      %1985 = vmatpush1.msra.mxu0 %v1971
      %1986 = vmatprep.subr.mxu0 0.0
      %1987 = vmatpush1.msra.mxu0 %v1970
      %1988 = vmatprep.subr.mxu0 0.0
      %1989 = vmatpush1.msra.mxu0 %v1969
      %1990 = vmatprep.subr.mxu0 0.0
      %1991 = vmatpush1.msra.mxu0 %v1968
      %1992 = vmatprep.subr.mxu0 0.0
      %1993 = vmatpush1.msra.mxu0 %v1967
      %1994 = vmatprep.subr.mxu0 0.0
      %1995 = vmatpush1.msra.mxu0 %v1966
      %1996 = vmatprep.subr.mxu0 0.0
      %1997 = vmatpush1.msra.mxu0 %v1965
      %1998 = vmatprep.subr.mxu0 0.0
      %1999 = vmatpush1.msra.mxu0 %v1964
      %2000 = vmatprep.subr.mxu0 0.0
      %2001 = vmatpush1.msra.mxu0 %v1963
      %2002 = vmatprep.subr.mxu0 0.0
      %2003 = vmatpush1.msra.mxu0 %v1962
      %2004 = vmatprep.subr.mxu0 0.0
      %2005 = vmatpush1.msra.mxu0 %v1961
      %2006 = vmatprep.subr.mxu0 0.0
      %2007 = vmatpush1.msra.mxu0 %v1960
      %2008 = vmatprep.subr.mxu0 0.0
      %2009 = vmatpush2.msra.mxu0 0.0
      %2010 = vmatprep.subr.mxu0 0.0
      %2011 = vmatpush2.msra.mxu0 0.0
      %2012 = vmatprep.subr.mxu0 0.0
      %2013 = vmatpush2.msra.mxu0 0.0
      %2014 = vmatprep.subr.mxu0 0.0
      %2015 = vmatpush2.msra.mxu0 0.0
      %2016 = vmatprep.subr.mxu0 0.0
      %2017 = vmatpush2.msra.mxu0 0.0
      %2018 = vmatprep.subr.mxu0 0.0
      %2019 = vmatpush2.msra.mxu0 0.0
      %2020 = vmatprep.subr.mxu0 0.0
      %2021 = vmatpush2.msra.mxu0 0.0
      %2022 = vmatprep.subr.mxu0 0.0
      %2023 = vmatpush2.msra.mxu0 0.0
      %2024 = vmatprep.subr.mxu0 0.0
      %2025 = vmatpush2.msra.mxu0 0.0
      %2026 = vmatprep.subr.mxu0 0.0
      %2027 = vmatpush2.msra.mxu0 0.0
      %2028 = vmatprep.subr.mxu0 0.0
      %2029 = vmatpush2.msra.mxu0 0.0
      %2030 = vmatprep.subr.mxu0 0.0
      %2031 = vmatpush2.msra.mxu0 0.0
      %2032 = vmatprep.subr.mxu0 0.0
      %2033 = vmatpush2.msra.mxu0 0.0
      %2034 = vmatprep.subr.mxu0 0.0
      %2035 = vmatpush2.msra.mxu0 0.0
      %2036 = vmatprep.subr.mxu0 0.0
      %2037 = vmatpush2.msra.mxu0 0.0
      %2038 = vmatprep.subr.mxu0 0.0
      %2039 = vmatpush2.msra.mxu0 0.0
      %2040 = vmatprep.mubr.f32.mxu0 0.0
      %2041 = vmatmul.mubr.f32.gmra.mxu0 %v1959
      %v2042 = vpop.f32.mrf.mxu0
      %v2043 = vadd.f32 0.0, %v2042
      %v2044 = vpop.f32.mrf.mxu0
      %2045 = vdwg.mxu0
      %s2046 = smul.u32 %s1710, 8
      %s2047 = scalar_lea.vmem %s322, %s2046
      %2048 = vst [vmem:[%s2047] sm:$0xff] %v2043
      %v2049 = vsel %vm1958, %v1951, %v1708
      %v2050 = vsel %vm1958, %v1949, %v1709
      %s2051 = smul.u32 %s19, 4294967293
      %s2052 = sadd.s32 %s2051, 5
      %s2053 = smul.u32 %s2052, 4
      %s2054 = smul.addr %s2053, 8
      %s2055 = scalar_lea.vmem %s294, %s2054
      %v2056 = vld [vmem:[%s2055] sm:$0xff]
      %v2057 = vld [vmem:[%s2055 + $0x8] sm:$0xff]
      %v2058 = vld [vmem:[%s2055 + $0x10] sm:$0xff]
      %v2059 = vld [vmem:[%s2055 + $0x18] sm:$0xff]
      %v2060 = vld [vmem:[%s304] sm:$0xff]
      %v2061 = vld [vmem:[%s304 + $0x8] sm:$0xff]
      %v2062 = vld [vmem:[%s304 + $0x10] sm:$0xff]
      %v2063 = vld [vmem:[%s304 + $0x18] sm:$0xff]
      %v2064 = vld [vmem:[%s304 + $0x20] sm:$0xff]
      %v2065 = vld [vmem:[%s304 + $0x28] sm:$0xff]
      %v2066 = vld [vmem:[%s304 + $0x30] sm:$0xff]
      %v2067 = vld [vmem:[%s304 + $0x38] sm:$0xff]
      %v2068 = vld [vmem:[%s304 + $0x40] sm:$0xff]
      %v2069 = vld [vmem:[%s304 + $0x48] sm:$0xff]
      %v2070 = vld [vmem:[%s304 + $0x50] sm:$0xff]
      %v2071 = vld [vmem:[%s304 + $0x58] sm:$0xff]
      %v2072 = vld [vmem:[%s304 + $0x60] sm:$0xff]
      %v2073 = vld [vmem:[%s304 + $0x68] sm:$0xff]
      %v2074 = vld [vmem:[%s304 + $0x70] sm:$0xff]
      %v2075 = vld [vmem:[%s304 + $0x78] sm:$0xff]
      %v2076 = vld [vmem:[%s304 + $0x80] sm:$0xff]
      %v2077 = vld [vmem:[%s304 + $0x88] sm:$0xff]
      %v2078 = vld [vmem:[%s304 + $0x90] sm:$0xff]
      %v2079 = vld [vmem:[%s304 + $0x98] sm:$0xff]
      %v2080 = vld [vmem:[%s304 + $0xa0] sm:$0xff]
      %v2081 = vld [vmem:[%s304 + $0xa8] sm:$0xff]
      %v2082 = vld [vmem:[%s304 + $0xb0] sm:$0xff]
      %v2083 = vld [vmem:[%s304 + $0xb8] sm:$0xff]
      %v2084 = vld [vmem:[%s304 + $0xc0] sm:$0xff]
      %v2085 = vld [vmem:[%s304 + $0xc8] sm:$0xff]
      %v2086 = vld [vmem:[%s304 + $0xd0] sm:$0xff]
      %v2087 = vld [vmem:[%s304 + $0xd8] sm:$0xff]
      %v2088 = vld [vmem:[%s304 + $0xe0] sm:$0xff]
      %v2089 = vld [vmem:[%s304 + $0xe8] sm:$0xff]
      %v2090 = vld [vmem:[%s304 + $0xf0] sm:$0xff]
      %v2091 = vld [vmem:[%s304 + $0xf8] sm:$0xff]
      %v2092 = vld [vmem:[%s304 + $0x100] sm:$0xff]
      %v2093 = vld [vmem:[%s304 + $0x108] sm:$0xff]
      %v2094 = vld [vmem:[%s304 + $0x110] sm:$0xff]
      %v2095 = vld [vmem:[%s304 + $0x118] sm:$0xff]
      %v2096 = vld [vmem:[%s304 + $0x120] sm:$0xff]
      %v2097 = vld [vmem:[%s304 + $0x128] sm:$0xff]
      %v2098 = vld [vmem:[%s304 + $0x130] sm:$0xff]
      %v2099 = vld [vmem:[%s304 + $0x138] sm:$0xff]
      %v2100 = vld [vmem:[%s304 + $0x140] sm:$0xff]
      %v2101 = vld [vmem:[%s304 + $0x148] sm:$0xff]
      %v2102 = vld [vmem:[%s304 + $0x150] sm:$0xff]
      %v2103 = vld [vmem:[%s304 + $0x158] sm:$0xff]
      %v2104 = vld [vmem:[%s304 + $0x160] sm:$0xff]
      %v2105 = vld [vmem:[%s304 + $0x168] sm:$0xff]
      %v2106 = vld [vmem:[%s304 + $0x170] sm:$0xff]
      %v2107 = vld [vmem:[%s304 + $0x178] sm:$0xff]
      %v2108 = vld [vmem:[%s304 + $0x180] sm:$0xff]
      %v2109 = vld [vmem:[%s304 + $0x188] sm:$0xff]
      %v2110 = vld [vmem:[%s304 + $0x190] sm:$0xff]
      %v2111 = vld [vmem:[%s304 + $0x198] sm:$0xff]
      %v2112 = vld [vmem:[%s304 + $0x1a0] sm:$0xff]
      %v2113 = vld [vmem:[%s304 + $0x1a8] sm:$0xff]
      %v2114 = vld [vmem:[%s304 + $0x1b0] sm:$0xff]
      %v2115 = vld [vmem:[%s304 + $0x1b8] sm:$0xff]
      %v2116 = vld [vmem:[%s304 + $0x1c0] sm:$0xff]
      %v2117 = vld [vmem:[%s304 + $0x1c8] sm:$0xff]
      %v2118 = vld [vmem:[%s304 + $0x1d0] sm:$0xff]
      %v2119 = vld [vmem:[%s304 + $0x1d8] sm:$0xff]
      %v2120 = vld [vmem:[%s304 + $0x1e0] sm:$0xff]
      %v2121 = vld [vmem:[%s304 + $0x1e8] sm:$0xff]
      %v2122 = vld [vmem:[%s304 + $0x1f0] sm:$0xff]
      %v2123 = vld [vmem:[%s304 + $0x1f8] sm:$0xff]
      %2124 = vmatprep.subr.mxu0 %v2121
      %2125 = vmatpush1.msra.mxu0 %v2120
      %2126 = vmatprep.subr.mxu0 %v2117
      %2127 = vmatpush1.msra.mxu0 %v2116
      %2128 = vmatprep.subr.mxu0 %v2113
      %2129 = vmatpush1.msra.mxu0 %v2112
      %2130 = vmatprep.subr.mxu0 %v2109
      %2131 = vmatpush1.msra.mxu0 %v2108
      %2132 = vmatprep.subr.mxu0 %v2105
      %2133 = vmatpush1.msra.mxu0 %v2104
      %2134 = vmatprep.subr.mxu0 %v2101
      %2135 = vmatpush1.msra.mxu0 %v2100
      %2136 = vmatprep.subr.mxu0 %v2097
      %2137 = vmatpush1.msra.mxu0 %v2096
      %2138 = vmatprep.subr.mxu0 %v2093
      %2139 = vmatpush1.msra.mxu0 %v2092
      %2140 = vmatprep.subr.mxu0 %v2089
      %2141 = vmatpush1.msra.mxu0 %v2088
      %2142 = vmatprep.subr.mxu0 %v2085
      %2143 = vmatpush1.msra.mxu0 %v2084
      %2144 = vmatprep.subr.mxu0 %v2081
      %2145 = vmatpush1.msra.mxu0 %v2080
      %2146 = vmatprep.subr.mxu0 %v2077
      %2147 = vmatpush1.msra.mxu0 %v2076
      %2148 = vmatprep.subr.mxu0 %v2073
      %2149 = vmatpush1.msra.mxu0 %v2072
      %2150 = vmatprep.subr.mxu0 %v2069
      %2151 = vmatpush1.msra.mxu0 %v2068
      %2152 = vmatprep.subr.mxu0 %v2065
      %2153 = vmatpush1.msra.mxu0 %v2064
      %2154 = vmatprep.subr.mxu0 %v2061
      %2155 = vmatpush1.msra.mxu0 %v2060
      %2156 = vmatprep.subr.mxu0 0.0
      %2157 = vmatpush2.msra.mxu0 0.0
      %2158 = vmatprep.subr.mxu0 0.0
      %2159 = vmatpush2.msra.mxu0 0.0
      %2160 = vmatprep.subr.mxu0 0.0
      %2161 = vmatpush2.msra.mxu0 0.0
      %2162 = vmatprep.subr.mxu0 0.0
      %2163 = vmatpush2.msra.mxu0 0.0
      %2164 = vmatprep.subr.mxu0 0.0
      %2165 = vmatpush2.msra.mxu0 0.0
      %2166 = vmatprep.subr.mxu0 0.0
      %2167 = vmatpush2.msra.mxu0 0.0
      %2168 = vmatprep.subr.mxu0 0.0
      %2169 = vmatpush2.msra.mxu0 0.0
      %2170 = vmatprep.subr.mxu0 0.0
      %2171 = vmatpush2.msra.mxu0 0.0
      %2172 = vmatprep.subr.mxu0 0.0
      %2173 = vmatpush2.msra.mxu0 0.0
      %2174 = vmatprep.subr.mxu0 0.0
      %2175 = vmatpush2.msra.mxu0 0.0
      %2176 = vmatprep.subr.mxu0 0.0
      %2177 = vmatpush2.msra.mxu0 0.0
      %2178 = vmatprep.subr.mxu0 0.0
      %2179 = vmatpush2.msra.mxu0 0.0
      %2180 = vmatprep.subr.mxu0 0.0
      %2181 = vmatpush2.msra.mxu0 0.0
      %2182 = vmatprep.subr.mxu0 0.0
      %2183 = vmatpush2.msra.mxu0 0.0
      %2184 = vmatprep.subr.mxu0 0.0
      %2185 = vmatpush2.msra.mxu0 0.0
      %2186 = vmatprep.subr.mxu0 0.0
      %2187 = vmatpush2.msra.mxu0 0.0
      %2188 = vmatprep.mubr.f32.mxu0 0.0
      %2189 = vmatmul.mubr.f32.gmra.mxu0 %v2049
      %v2190 = vpop.f32.mrf.mxu0
      %v2191 = vadd.f32 0.0, %v2190
      %v2192 = vpop.f32.mrf.mxu0
      %v2193 = vadd.f32 0.0, %v2192
      %2194 = vdwg.mxu0
      %2195 = vmatprep.subr.mxu0 %v2123
      %2196 = vmatpush1.msra.mxu0 %v2122
      %2197 = vmatprep.subr.mxu0 %v2119
      %2198 = vmatpush1.msra.mxu0 %v2118
      %2199 = vmatprep.subr.mxu0 %v2115
      %2200 = vmatpush1.msra.mxu0 %v2114
      %2201 = vmatprep.subr.mxu0 %v2111
      %2202 = vmatpush1.msra.mxu0 %v2110
      %2203 = vmatprep.subr.mxu0 %v2107
      %2204 = vmatpush1.msra.mxu0 %v2106
      %2205 = vmatprep.subr.mxu0 %v2103
      %2206 = vmatpush1.msra.mxu0 %v2102
      %2207 = vmatprep.subr.mxu0 %v2099
      %2208 = vmatpush1.msra.mxu0 %v2098
      %2209 = vmatprep.subr.mxu0 %v2095
      %2210 = vmatpush1.msra.mxu0 %v2094
      %2211 = vmatprep.subr.mxu0 %v2091
      %2212 = vmatpush1.msra.mxu0 %v2090
      %2213 = vmatprep.subr.mxu0 %v2087
      %2214 = vmatpush1.msra.mxu0 %v2086
      %2215 = vmatprep.subr.mxu0 %v2083
      %2216 = vmatpush1.msra.mxu0 %v2082
      %2217 = vmatprep.subr.mxu0 %v2079
      %2218 = vmatpush1.msra.mxu0 %v2078
      %2219 = vmatprep.subr.mxu0 %v2075
      %2220 = vmatpush1.msra.mxu0 %v2074
      %2221 = vmatprep.subr.mxu0 %v2071
      %2222 = vmatpush1.msra.mxu0 %v2070
      %2223 = vmatprep.subr.mxu0 %v2067
      %2224 = vmatpush1.msra.mxu0 %v2066
      %2225 = vmatprep.subr.mxu0 %v2063
      %2226 = vmatpush1.msra.mxu0 %v2062
      %2227 = vmatprep.subr.mxu0 0.0
      %2228 = vmatpush2.msra.mxu0 0.0
      %2229 = vmatprep.subr.mxu0 0.0
      %2230 = vmatpush2.msra.mxu0 0.0
      %2231 = vmatprep.subr.mxu0 0.0
      %2232 = vmatpush2.msra.mxu0 0.0
      %2233 = vmatprep.subr.mxu0 0.0
      %2234 = vmatpush2.msra.mxu0 0.0
      %2235 = vmatprep.subr.mxu0 0.0
      %2236 = vmatpush2.msra.mxu0 0.0
      %2237 = vmatprep.subr.mxu0 0.0
      %2238 = vmatpush2.msra.mxu0 0.0
      %2239 = vmatprep.subr.mxu0 0.0
      %2240 = vmatpush2.msra.mxu0 0.0
      %2241 = vmatprep.subr.mxu0 0.0
      %2242 = vmatpush2.msra.mxu0 0.0
      %2243 = vmatprep.subr.mxu0 0.0
      %2244 = vmatpush2.msra.mxu0 0.0
      %2245 = vmatprep.subr.mxu0 0.0
      %2246 = vmatpush2.msra.mxu0 0.0
      %2247 = vmatprep.subr.mxu0 0.0
      %2248 = vmatpush2.msra.mxu0 0.0
      %2249 = vmatprep.subr.mxu0 0.0
      %2250 = vmatpush2.msra.mxu0 0.0
      %2251 = vmatprep.subr.mxu0 0.0
      %2252 = vmatpush2.msra.mxu0 0.0
      %2253 = vmatprep.subr.mxu0 0.0
      %2254 = vmatpush2.msra.mxu0 0.0
      %2255 = vmatprep.subr.mxu0 0.0
      %2256 = vmatpush2.msra.mxu0 0.0
      %2257 = vmatprep.subr.mxu0 0.0
      %2258 = vmatpush2.msra.mxu0 0.0
      %2259 = vmatprep.mubr.f32.mxu0 0.0
      %2260 = vmatmul.mubr.f32.gmra.mxu0 %v2049
      %v2261 = vpop.f32.mrf.mxu0
      %v2262 = vadd.f32 0.0, %v2261
      %v2263 = vpop.f32.mrf.mxu0
      %v2264 = vadd.f32 0.0, %v2263
      %2265 = vdwg.mxu0
      %v2266 = vadd.f32 %v2056, %v2191
      %v2267 = vadd.f32 %v2057, %v2193
      %v2268 = vadd.f32 %v2058, %v2262
      %v2269 = vadd.f32 %v2059, %v2264
      %v2270 = vxor.u32 %v2266, 2147483648
      %v2271 = vmul.f32 %v2270, 1.442695
      %v2272 = vpow.pop %v2271
      %v2273 = vadd.f32 %v2272, 1.0
      %v2274 = vrcp.pop %v2273
      %v2275 = vmul.f32 1.0, %v2274
      %v2276 = vxor.u32 %v2267, 2147483648
      %v2277 = vmul.f32 %v2276, 1.442695
      %v2278 = vpow.pop %v2277
      %v2279 = vadd.f32 %v2278, 1.0
      %v2280 = vrcp.pop %v2279
      %v2281 = vmul.f32 1.0, %v2280
      %v2282 = vtanh.pop %v2268
      %v2283 = vxor.u32 %v2269, 2147483648
      %v2284 = vmul.f32 %v2283, 1.442695
      %v2285 = vpow.pop %v2284
      %v2286 = vadd.f32 %v2285, 1.0
      %v2287 = vrcp.pop %v2286
      %v2288 = vmul.f32 1.0, %v2287
      %v2289 = vmul.f32 %v2281, %v2050
      %v2290 = vmul.f32 %v2275, %v2282
      %v2291 = vadd.f32 %v2289, %v2290
      %v2292 = vtanh.pop %v2291
      %v2293 = vmul.f32 %v2288, %v2292
      %v2294 = vstv %s2052
      %vm2295 = vcmp.lt.s32.totalorder %v2294, %v341
      %v2296 = vsel %vm2295, 1, 0
      %2297 = vset.pattern.permute.xlu0 0
      %2298 = vperm.xlu0 %2297, %v2296
      %v2299 = vpop.permute.xlu0 %2298
      %vm2300 = vcmp.eq.s32.totalorder %v2299, 1
      %v2301 = vsel %vm2300, %v2293, 0.0
      %v2302 = vld [vmem:[%s309] sm:$0xff]
      %v2303 = vld [vmem:[%s309 + $0x8] sm:$0xff]
      %v2304 = vld [vmem:[%s309 + $0x10] sm:$0xff]
      %v2305 = vld [vmem:[%s309 + $0x18] sm:$0xff]
      %v2306 = vld [vmem:[%s309 + $0x20] sm:$0xff]
      %v2307 = vld [vmem:[%s309 + $0x28] sm:$0xff]
      %v2308 = vld [vmem:[%s309 + $0x30] sm:$0xff]
      %v2309 = vld [vmem:[%s309 + $0x38] sm:$0xff]
      %v2310 = vld [vmem:[%s309 + $0x40] sm:$0xff]
      %v2311 = vld [vmem:[%s309 + $0x48] sm:$0xff]
      %v2312 = vld [vmem:[%s309 + $0x50] sm:$0xff]
      %v2313 = vld [vmem:[%s309 + $0x58] sm:$0xff]
      %v2314 = vld [vmem:[%s309 + $0x60] sm:$0xff]
      %v2315 = vld [vmem:[%s309 + $0x68] sm:$0xff]
      %v2316 = vld [vmem:[%s309 + $0x70] sm:$0xff]
      %v2317 = vld [vmem:[%s309 + $0x78] sm:$0xff]
      %2318 = vmatprep.subr.mxu0 0.0
      %2319 = vmatpush1.msra.mxu0 %v2317
      %2320 = vmatprep.subr.mxu0 0.0
      %2321 = vmatpush1.msra.mxu0 %v2316
      %2322 = vmatprep.subr.mxu0 0.0
      %2323 = vmatpush1.msra.mxu0 %v2315
      %2324 = vmatprep.subr.mxu0 0.0
      %2325 = vmatpush1.msra.mxu0 %v2314
      %2326 = vmatprep.subr.mxu0 0.0
      %2327 = vmatpush1.msra.mxu0 %v2313
      %2328 = vmatprep.subr.mxu0 0.0
      %2329 = vmatpush1.msra.mxu0 %v2312
      %2330 = vmatprep.subr.mxu0 0.0
      %2331 = vmatpush1.msra.mxu0 %v2311
      %2332 = vmatprep.subr.mxu0 0.0
      %2333 = vmatpush1.msra.mxu0 %v2310
      %2334 = vmatprep.subr.mxu0 0.0
      %2335 = vmatpush1.msra.mxu0 %v2309
      %2336 = vmatprep.subr.mxu0 0.0
      %2337 = vmatpush1.msra.mxu0 %v2308
      %2338 = vmatprep.subr.mxu0 0.0
      %2339 = vmatpush1.msra.mxu0 %v2307
      %2340 = vmatprep.subr.mxu0 0.0
      %2341 = vmatpush1.msra.mxu0 %v2306
      %2342 = vmatprep.subr.mxu0 0.0
      %2343 = vmatpush1.msra.mxu0 %v2305
      %2344 = vmatprep.subr.mxu0 0.0
      %2345 = vmatpush1.msra.mxu0 %v2304
      %2346 = vmatprep.subr.mxu0 0.0
      %2347 = vmatpush1.msra.mxu0 %v2303
      %2348 = vmatprep.subr.mxu0 0.0
      %2349 = vmatpush1.msra.mxu0 %v2302
      %2350 = vmatprep.subr.mxu0 0.0
      %2351 = vmatpush2.msra.mxu0 0.0
      %2352 = vmatprep.subr.mxu0 0.0
      %2353 = vmatpush2.msra.mxu0 0.0
      %2354 = vmatprep.subr.mxu0 0.0
      %2355 = vmatpush2.msra.mxu0 0.0
      %2356 = vmatprep.subr.mxu0 0.0
      %2357 = vmatpush2.msra.mxu0 0.0
      %2358 = vmatprep.subr.mxu0 0.0
      %2359 = vmatpush2.msra.mxu0 0.0
      %2360 = vmatprep.subr.mxu0 0.0
      %2361 = vmatpush2.msra.mxu0 0.0
      %2362 = vmatprep.subr.mxu0 0.0
      %2363 = vmatpush2.msra.mxu0 0.0
      %2364 = vmatprep.subr.mxu0 0.0
      %2365 = vmatpush2.msra.mxu0 0.0
      %2366 = vmatprep.subr.mxu0 0.0
      %2367 = vmatpush2.msra.mxu0 0.0
      %2368 = vmatprep.subr.mxu0 0.0
      %2369 = vmatpush2.msra.mxu0 0.0
      %2370 = vmatprep.subr.mxu0 0.0
      %2371 = vmatpush2.msra.mxu0 0.0
      %2372 = vmatprep.subr.mxu0 0.0
      %2373 = vmatpush2.msra.mxu0 0.0
      %2374 = vmatprep.subr.mxu0 0.0
      %2375 = vmatpush2.msra.mxu0 0.0
      %2376 = vmatprep.subr.mxu0 0.0
      %2377 = vmatpush2.msra.mxu0 0.0
      %2378 = vmatprep.subr.mxu0 0.0
      %2379 = vmatpush2.msra.mxu0 0.0
      %2380 = vmatprep.subr.mxu0 0.0
      %2381 = vmatpush2.msra.mxu0 0.0
      %2382 = vmatprep.mubr.f32.mxu0 0.0
      %2383 = vmatmul.mubr.f32.gmra.mxu0 %v2301
      %v2384 = vpop.f32.mrf.mxu0
      %v2385 = vadd.f32 0.0, %v2384
      %v2386 = vpop.f32.mrf.mxu0
      %2387 = vdwg.mxu0
      %s2388 = smul.u32 %s2052, 8
      %s2389 = scalar_lea.vmem %s322, %s2388
      %2390 = vst [vmem:[%s2389] sm:$0xff] %v2385
      %v2391 = vsel %vm2300, %v2293, %v2049
      %v2392 = vsel %vm2300, %v2291, %v2050
      %s2393 = smul.u32 %s19, 4294967291
      %s2394 = sadd.s32 %s2393, 6
      %s2395 = smul.u32 %s2394, 4
      %s2396 = smul.addr %s2395, 8
      %s2397 = scalar_lea.vmem %s294, %s2396
      %v2398 = vld [vmem:[%s2397] sm:$0xff]
      %v2399 = vld [vmem:[%s2397 + $0x8] sm:$0xff]
      %v2400 = vld [vmem:[%s2397 + $0x10] sm:$0xff]
      %v2401 = vld [vmem:[%s2397 + $0x18] sm:$0xff]
      %v2402 = vld [vmem:[%s304] sm:$0xff]
      %v2403 = vld [vmem:[%s304 + $0x8] sm:$0xff]
      %v2404 = vld [vmem:[%s304 + $0x10] sm:$0xff]
      %v2405 = vld [vmem:[%s304 + $0x18] sm:$0xff]
      %v2406 = vld [vmem:[%s304 + $0x20] sm:$0xff]
      %v2407 = vld [vmem:[%s304 + $0x28] sm:$0xff]
      %v2408 = vld [vmem:[%s304 + $0x30] sm:$0xff]
      %v2409 = vld [vmem:[%s304 + $0x38] sm:$0xff]
      %v2410 = vld [vmem:[%s304 + $0x40] sm:$0xff]
      %v2411 = vld [vmem:[%s304 + $0x48] sm:$0xff]
      %v2412 = vld [vmem:[%s304 + $0x50] sm:$0xff]
      %v2413 = vld [vmem:[%s304 + $0x58] sm:$0xff]
      %v2414 = vld [vmem:[%s304 + $0x60] sm:$0xff]
      %v2415 = vld [vmem:[%s304 + $0x68] sm:$0xff]
      %v2416 = vld [vmem:[%s304 + $0x70] sm:$0xff]
      %v2417 = vld [vmem:[%s304 + $0x78] sm:$0xff]
      %v2418 = vld [vmem:[%s304 + $0x80] sm:$0xff]
      %v2419 = vld [vmem:[%s304 + $0x88] sm:$0xff]
      %v2420 = vld [vmem:[%s304 + $0x90] sm:$0xff]
      %v2421 = vld [vmem:[%s304 + $0x98] sm:$0xff]
      %v2422 = vld [vmem:[%s304 + $0xa0] sm:$0xff]
      %v2423 = vld [vmem:[%s304 + $0xa8] sm:$0xff]
      %v2424 = vld [vmem:[%s304 + $0xb0] sm:$0xff]
      %v2425 = vld [vmem:[%s304 + $0xb8] sm:$0xff]
      %v2426 = vld [vmem:[%s304 + $0xc0] sm:$0xff]
      %v2427 = vld [vmem:[%s304 + $0xc8] sm:$0xff]
      %v2428 = vld [vmem:[%s304 + $0xd0] sm:$0xff]
      %v2429 = vld [vmem:[%s304 + $0xd8] sm:$0xff]
      %v2430 = vld [vmem:[%s304 + $0xe0] sm:$0xff]
      %v2431 = vld [vmem:[%s304 + $0xe8] sm:$0xff]
      %v2432 = vld [vmem:[%s304 + $0xf0] sm:$0xff]
      %v2433 = vld [vmem:[%s304 + $0xf8] sm:$0xff]
      %v2434 = vld [vmem:[%s304 + $0x100] sm:$0xff]
      %v2435 = vld [vmem:[%s304 + $0x108] sm:$0xff]
      %v2436 = vld [vmem:[%s304 + $0x110] sm:$0xff]
      %v2437 = vld [vmem:[%s304 + $0x118] sm:$0xff]
      %v2438 = vld [vmem:[%s304 + $0x120] sm:$0xff]
      %v2439 = vld [vmem:[%s304 + $0x128] sm:$0xff]
      %v2440 = vld [vmem:[%s304 + $0x130] sm:$0xff]
      %v2441 = vld [vmem:[%s304 + $0x138] sm:$0xff]
      %v2442 = vld [vmem:[%s304 + $0x140] sm:$0xff]
      %v2443 = vld [vmem:[%s304 + $0x148] sm:$0xff]
      %v2444 = vld [vmem:[%s304 + $0x150] sm:$0xff]
      %v2445 = vld [vmem:[%s304 + $0x158] sm:$0xff]
      %v2446 = vld [vmem:[%s304 + $0x160] sm:$0xff]
      %v2447 = vld [vmem:[%s304 + $0x168] sm:$0xff]
      %v2448 = vld [vmem:[%s304 + $0x170] sm:$0xff]
      %v2449 = vld [vmem:[%s304 + $0x178] sm:$0xff]
      %v2450 = vld [vmem:[%s304 + $0x180] sm:$0xff]
      %v2451 = vld [vmem:[%s304 + $0x188] sm:$0xff]
      %v2452 = vld [vmem:[%s304 + $0x190] sm:$0xff]
      %v2453 = vld [vmem:[%s304 + $0x198] sm:$0xff]
      %v2454 = vld [vmem:[%s304 + $0x1a0] sm:$0xff]
      %v2455 = vld [vmem:[%s304 + $0x1a8] sm:$0xff]
      %v2456 = vld [vmem:[%s304 + $0x1b0] sm:$0xff]
      %v2457 = vld [vmem:[%s304 + $0x1b8] sm:$0xff]
      %v2458 = vld [vmem:[%s304 + $0x1c0] sm:$0xff]
      %v2459 = vld [vmem:[%s304 + $0x1c8] sm:$0xff]
      %v2460 = vld [vmem:[%s304 + $0x1d0] sm:$0xff]
      %v2461 = vld [vmem:[%s304 + $0x1d8] sm:$0xff]
      %v2462 = vld [vmem:[%s304 + $0x1e0] sm:$0xff]
      %v2463 = vld [vmem:[%s304 + $0x1e8] sm:$0xff]
      %v2464 = vld [vmem:[%s304 + $0x1f0] sm:$0xff]
      %v2465 = vld [vmem:[%s304 + $0x1f8] sm:$0xff]
      %2466 = vmatprep.subr.mxu0 %v2463
      %2467 = vmatpush1.msra.mxu0 %v2462
      %2468 = vmatprep.subr.mxu0 %v2459
      %2469 = vmatpush1.msra.mxu0 %v2458
      %2470 = vmatprep.subr.mxu0 %v2455
      %2471 = vmatpush1.msra.mxu0 %v2454
      %2472 = vmatprep.subr.mxu0 %v2451
      %2473 = vmatpush1.msra.mxu0 %v2450
      %2474 = vmatprep.subr.mxu0 %v2447
      %2475 = vmatpush1.msra.mxu0 %v2446
      %2476 = vmatprep.subr.mxu0 %v2443
      %2477 = vmatpush1.msra.mxu0 %v2442
      %2478 = vmatprep.subr.mxu0 %v2439
      %2479 = vmatpush1.msra.mxu0 %v2438
      %2480 = vmatprep.subr.mxu0 %v2435
      %2481 = vmatpush1.msra.mxu0 %v2434
      %2482 = vmatprep.subr.mxu0 %v2431
      %2483 = vmatpush1.msra.mxu0 %v2430
      %2484 = vmatprep.subr.mxu0 %v2427
      %2485 = vmatpush1.msra.mxu0 %v2426
      %2486 = vmatprep.subr.mxu0 %v2423
      %2487 = vmatpush1.msra.mxu0 %v2422
      %2488 = vmatprep.subr.mxu0 %v2419
      %2489 = vmatpush1.msra.mxu0 %v2418
      %2490 = vmatprep.subr.mxu0 %v2415
      %2491 = vmatpush1.msra.mxu0 %v2414
      %2492 = vmatprep.subr.mxu0 %v2411
      %2493 = vmatpush1.msra.mxu0 %v2410
      %2494 = vmatprep.subr.mxu0 %v2407
      %2495 = vmatpush1.msra.mxu0 %v2406
      %2496 = vmatprep.subr.mxu0 %v2403
      %2497 = vmatpush1.msra.mxu0 %v2402
      %2498 = vmatprep.subr.mxu0 0.0
      %2499 = vmatpush2.msra.mxu0 0.0
      %2500 = vmatprep.subr.mxu0 0.0
      %2501 = vmatpush2.msra.mxu0 0.0
      %2502 = vmatprep.subr.mxu0 0.0
      %2503 = vmatpush2.msra.mxu0 0.0
      %2504 = vmatprep.subr.mxu0 0.0
      %2505 = vmatpush2.msra.mxu0 0.0
      %2506 = vmatprep.subr.mxu0 0.0
      %2507 = vmatpush2.msra.mxu0 0.0
      %2508 = vmatprep.subr.mxu0 0.0
      %2509 = vmatpush2.msra.mxu0 0.0
      %2510 = vmatprep.subr.mxu0 0.0
      %2511 = vmatpush2.msra.mxu0 0.0
      %2512 = vmatprep.subr.mxu0 0.0
      %2513 = vmatpush2.msra.mxu0 0.0
      %2514 = vmatprep.subr.mxu0 0.0
      %2515 = vmatpush2.msra.mxu0 0.0
      %2516 = vmatprep.subr.mxu0 0.0
      %2517 = vmatpush2.msra.mxu0 0.0
      %2518 = vmatprep.subr.mxu0 0.0
      %2519 = vmatpush2.msra.mxu0 0.0
      %2520 = vmatprep.subr.mxu0 0.0
      %2521 = vmatpush2.msra.mxu0 0.0
      %2522 = vmatprep.subr.mxu0 0.0
      %2523 = vmatpush2.msra.mxu0 0.0
      %2524 = vmatprep.subr.mxu0 0.0
      %2525 = vmatpush2.msra.mxu0 0.0
      %2526 = vmatprep.subr.mxu0 0.0
      %2527 = vmatpush2.msra.mxu0 0.0
      %2528 = vmatprep.subr.mxu0 0.0
      %2529 = vmatpush2.msra.mxu0 0.0
      %2530 = vmatprep.mubr.f32.mxu0 0.0
      %2531 = vmatmul.mubr.f32.gmra.mxu0 %v2391
      %v2532 = vpop.f32.mrf.mxu0
      %v2533 = vadd.f32 0.0, %v2532
      %v2534 = vpop.f32.mrf.mxu0
      %v2535 = vadd.f32 0.0, %v2534
      %2536 = vdwg.mxu0
      %2537 = vmatprep.subr.mxu0 %v2465
      %2538 = vmatpush1.msra.mxu0 %v2464
      %2539 = vmatprep.subr.mxu0 %v2461
      %2540 = vmatpush1.msra.mxu0 %v2460
      %2541 = vmatprep.subr.mxu0 %v2457
      %2542 = vmatpush1.msra.mxu0 %v2456
      %2543 = vmatprep.subr.mxu0 %v2453
      %2544 = vmatpush1.msra.mxu0 %v2452
      %2545 = vmatprep.subr.mxu0 %v2449
      %2546 = vmatpush1.msra.mxu0 %v2448
      %2547 = vmatprep.subr.mxu0 %v2445
      %2548 = vmatpush1.msra.mxu0 %v2444
      %2549 = vmatprep.subr.mxu0 %v2441
      %2550 = vmatpush1.msra.mxu0 %v2440
      %2551 = vmatprep.subr.mxu0 %v2437
      %2552 = vmatpush1.msra.mxu0 %v2436
      %2553 = vmatprep.subr.mxu0 %v2433
      %2554 = vmatpush1.msra.mxu0 %v2432
      %2555 = vmatprep.subr.mxu0 %v2429
      %2556 = vmatpush1.msra.mxu0 %v2428
      %2557 = vmatprep.subr.mxu0 %v2425
      %2558 = vmatpush1.msra.mxu0 %v2424
      %2559 = vmatprep.subr.mxu0 %v2421
      %2560 = vmatpush1.msra.mxu0 %v2420
      %2561 = vmatprep.subr.mxu0 %v2417
      %2562 = vmatpush1.msra.mxu0 %v2416
      %2563 = vmatprep.subr.mxu0 %v2413
      %2564 = vmatpush1.msra.mxu0 %v2412
      %2565 = vmatprep.subr.mxu0 %v2409
      %2566 = vmatpush1.msra.mxu0 %v2408
      %2567 = vmatprep.subr.mxu0 %v2405
      %2568 = vmatpush1.msra.mxu0 %v2404
      %2569 = vmatprep.subr.mxu0 0.0
      %2570 = vmatpush2.msra.mxu0 0.0
      %2571 = vmatprep.subr.mxu0 0.0
      %2572 = vmatpush2.msra.mxu0 0.0
      %2573 = vmatprep.subr.mxu0 0.0
      %2574 = vmatpush2.msra.mxu0 0.0
      %2575 = vmatprep.subr.mxu0 0.0
      %2576 = vmatpush2.msra.mxu0 0.0
      %2577 = vmatprep.subr.mxu0 0.0
      %2578 = vmatpush2.msra.mxu0 0.0
      %2579 = vmatprep.subr.mxu0 0.0
      %2580 = vmatpush2.msra.mxu0 0.0
      %2581 = vmatprep.subr.mxu0 0.0
      %2582 = vmatpush2.msra.mxu0 0.0
      %2583 = vmatprep.subr.mxu0 0.0
      %2584 = vmatpush2.msra.mxu0 0.0
      %2585 = vmatprep.subr.mxu0 0.0
      %2586 = vmatpush2.msra.mxu0 0.0
      %2587 = vmatprep.subr.mxu0 0.0
      %2588 = vmatpush2.msra.mxu0 0.0
      %2589 = vmatprep.subr.mxu0 0.0
      %2590 = vmatpush2.msra.mxu0 0.0
      %2591 = vmatprep.subr.mxu0 0.0
      %2592 = vmatpush2.msra.mxu0 0.0
      %2593 = vmatprep.subr.mxu0 0.0
      %2594 = vmatpush2.msra.mxu0 0.0
      %2595 = vmatprep.subr.mxu0 0.0
      %2596 = vmatpush2.msra.mxu0 0.0
      %2597 = vmatprep.subr.mxu0 0.0
      %2598 = vmatpush2.msra.mxu0 0.0
      %2599 = vmatprep.subr.mxu0 0.0
      %2600 = vmatpush2.msra.mxu0 0.0
      %2601 = vmatprep.mubr.f32.mxu0 0.0
      %2602 = vmatmul.mubr.f32.gmra.mxu0 %v2391
      %v2603 = vpop.f32.mrf.mxu0
      %v2604 = vadd.f32 0.0, %v2603
      %v2605 = vpop.f32.mrf.mxu0
      %v2606 = vadd.f32 0.0, %v2605
      %2607 = vdwg.mxu0
      %v2608 = vadd.f32 %v2398, %v2533
      %v2609 = vadd.f32 %v2399, %v2535
      %v2610 = vadd.f32 %v2400, %v2604
      %v2611 = vadd.f32 %v2401, %v2606
      %v2612 = vxor.u32 %v2608, 2147483648
      %v2613 = vmul.f32 %v2612, 1.442695
      %v2614 = vpow.pop %v2613
      %v2615 = vadd.f32 %v2614, 1.0
      %v2616 = vrcp.pop %v2615
      %v2617 = vmul.f32 1.0, %v2616
      %v2618 = vxor.u32 %v2609, 2147483648
      %v2619 = vmul.f32 %v2618, 1.442695
      %v2620 = vpow.pop %v2619
      %v2621 = vadd.f32 %v2620, 1.0
      %v2622 = vrcp.pop %v2621
      %v2623 = vmul.f32 1.0, %v2622
      %v2624 = vtanh.pop %v2610
      %v2625 = vxor.u32 %v2611, 2147483648
      %v2626 = vmul.f32 %v2625, 1.442695
      %v2627 = vpow.pop %v2626
      %v2628 = vadd.f32 %v2627, 1.0
      %v2629 = vrcp.pop %v2628
      %v2630 = vmul.f32 1.0, %v2629
      %v2631 = vmul.f32 %v2623, %v2392
      %v2632 = vmul.f32 %v2617, %v2624
      %v2633 = vadd.f32 %v2631, %v2632
      %v2634 = vtanh.pop %v2633
      %v2635 = vmul.f32 %v2630, %v2634
      %v2636 = vstv %s2394
      %vm2637 = vcmp.lt.s32.totalorder %v2636, %v341
      %v2638 = vsel %vm2637, 1, 0
      %2639 = vset.pattern.permute.xlu0 0
      %2640 = vperm.xlu0 %2639, %v2638
      %v2641 = vpop.permute.xlu0 %2640
      %vm2642 = vcmp.eq.s32.totalorder %v2641, 1
      %v2643 = vsel %vm2642, %v2635, 0.0
      %v2644 = vld [vmem:[%s309] sm:$0xff]
      %v2645 = vld [vmem:[%s309 + $0x8] sm:$0xff]
      %v2646 = vld [vmem:[%s309 + $0x10] sm:$0xff]
      %v2647 = vld [vmem:[%s309 + $0x18] sm:$0xff]
      %v2648 = vld [vmem:[%s309 + $0x20] sm:$0xff]
      %v2649 = vld [vmem:[%s309 + $0x28] sm:$0xff]
      %v2650 = vld [vmem:[%s309 + $0x30] sm:$0xff]
      %v2651 = vld [vmem:[%s309 + $0x38] sm:$0xff]
      %v2652 = vld [vmem:[%s309 + $0x40] sm:$0xff]
      %v2653 = vld [vmem:[%s309 + $0x48] sm:$0xff]
      %v2654 = vld [vmem:[%s309 + $0x50] sm:$0xff]
      %v2655 = vld [vmem:[%s309 + $0x58] sm:$0xff]
      %v2656 = vld [vmem:[%s309 + $0x60] sm:$0xff]
      %v2657 = vld [vmem:[%s309 + $0x68] sm:$0xff]
      %v2658 = vld [vmem:[%s309 + $0x70] sm:$0xff]
      %v2659 = vld [vmem:[%s309 + $0x78] sm:$0xff]
      %2660 = vmatprep.subr.mxu0 0.0
      %2661 = vmatpush1.msra.mxu0 %v2659
      %2662 = vmatprep.subr.mxu0 0.0
      %2663 = vmatpush1.msra.mxu0 %v2658
      %2664 = vmatprep.subr.mxu0 0.0
      %2665 = vmatpush1.msra.mxu0 %v2657
      %2666 = vmatprep.subr.mxu0 0.0
      %2667 = vmatpush1.msra.mxu0 %v2656
      %2668 = vmatprep.subr.mxu0 0.0
      %2669 = vmatpush1.msra.mxu0 %v2655
      %2670 = vmatprep.subr.mxu0 0.0
      %2671 = vmatpush1.msra.mxu0 %v2654
      %2672 = vmatprep.subr.mxu0 0.0
      %2673 = vmatpush1.msra.mxu0 %v2653
      %2674 = vmatprep.subr.mxu0 0.0
      %2675 = vmatpush1.msra.mxu0 %v2652
      %2676 = vmatprep.subr.mxu0 0.0
      %2677 = vmatpush1.msra.mxu0 %v2651
      %2678 = vmatprep.subr.mxu0 0.0
      %2679 = vmatpush1.msra.mxu0 %v2650
      %2680 = vmatprep.subr.mxu0 0.0
      %2681 = vmatpush1.msra.mxu0 %v2649
      %2682 = vmatprep.subr.mxu0 0.0
      %2683 = vmatpush1.msra.mxu0 %v2648
      %2684 = vmatprep.subr.mxu0 0.0
      %2685 = vmatpush1.msra.mxu0 %v2647
      %2686 = vmatprep.subr.mxu0 0.0
      %2687 = vmatpush1.msra.mxu0 %v2646
      %2688 = vmatprep.subr.mxu0 0.0
      %2689 = vmatpush1.msra.mxu0 %v2645
      %2690 = vmatprep.subr.mxu0 0.0
      %2691 = vmatpush1.msra.mxu0 %v2644
      %2692 = vmatprep.subr.mxu0 0.0
      %2693 = vmatpush2.msra.mxu0 0.0
      %2694 = vmatprep.subr.mxu0 0.0
      %2695 = vmatpush2.msra.mxu0 0.0
      %2696 = vmatprep.subr.mxu0 0.0
      %2697 = vmatpush2.msra.mxu0 0.0
      %2698 = vmatprep.subr.mxu0 0.0
      %2699 = vmatpush2.msra.mxu0 0.0
      %2700 = vmatprep.subr.mxu0 0.0
      %2701 = vmatpush2.msra.mxu0 0.0
      %2702 = vmatprep.subr.mxu0 0.0
      %2703 = vmatpush2.msra.mxu0 0.0
      %2704 = vmatprep.subr.mxu0 0.0
      %2705 = vmatpush2.msra.mxu0 0.0
      %2706 = vmatprep.subr.mxu0 0.0
      %2707 = vmatpush2.msra.mxu0 0.0
      %2708 = vmatprep.subr.mxu0 0.0
      %2709 = vmatpush2.msra.mxu0 0.0
      %2710 = vmatprep.subr.mxu0 0.0
      %2711 = vmatpush2.msra.mxu0 0.0
      %2712 = vmatprep.subr.mxu0 0.0
      %2713 = vmatpush2.msra.mxu0 0.0
      %2714 = vmatprep.subr.mxu0 0.0
      %2715 = vmatpush2.msra.mxu0 0.0
      %2716 = vmatprep.subr.mxu0 0.0
      %2717 = vmatpush2.msra.mxu0 0.0
      %2718 = vmatprep.subr.mxu0 0.0
      %2719 = vmatpush2.msra.mxu0 0.0
      %2720 = vmatprep.subr.mxu0 0.0
      %2721 = vmatpush2.msra.mxu0 0.0
      %2722 = vmatprep.subr.mxu0 0.0
      %2723 = vmatpush2.msra.mxu0 0.0
      %2724 = vmatprep.mubr.f32.mxu0 0.0
      %2725 = vmatmul.mubr.f32.gmra.mxu0 %v2643
      %v2726 = vpop.f32.mrf.mxu0
      %v2727 = vadd.f32 0.0, %v2726
      %v2728 = vpop.f32.mrf.mxu0
      %2729 = vdwg.mxu0
      %s2730 = smul.u32 %s2394, 8
      %s2731 = scalar_lea.vmem %s322, %s2730
      %2732 = vst [vmem:[%s2731] sm:$0xff] %v2727
      %v2733 = vsel %vm2642, %v2635, %v2391
      %v2734 = vsel %vm2642, %v2633, %v2392
      %s2735 = smul.u32 %s19, 4294967289
      %s2736 = sadd.s32 %s2735, 7
      %s2737 = smul.u32 %s2736, 4
      %s2738 = smul.addr %s2737, 8
      %s2739 = scalar_lea.vmem %s294, %s2738
      %v2740 = vld [vmem:[%s2739] sm:$0xff]
      %v2741 = vld [vmem:[%s2739 + $0x8] sm:$0xff]
      %v2742 = vld [vmem:[%s2739 + $0x10] sm:$0xff]
      %v2743 = vld [vmem:[%s2739 + $0x18] sm:$0xff]
      %v2744 = vld [vmem:[%s304] sm:$0xff]
      %v2745 = vld [vmem:[%s304 + $0x8] sm:$0xff]
      %v2746 = vld [vmem:[%s304 + $0x10] sm:$0xff]
      %v2747 = vld [vmem:[%s304 + $0x18] sm:$0xff]
      %v2748 = vld [vmem:[%s304 + $0x20] sm:$0xff]
      %v2749 = vld [vmem:[%s304 + $0x28] sm:$0xff]
      %v2750 = vld [vmem:[%s304 + $0x30] sm:$0xff]
      %v2751 = vld [vmem:[%s304 + $0x38] sm:$0xff]
      %v2752 = vld [vmem:[%s304 + $0x40] sm:$0xff]
      %v2753 = vld [vmem:[%s304 + $0x48] sm:$0xff]
      %v2754 = vld [vmem:[%s304 + $0x50] sm:$0xff]
      %v2755 = vld [vmem:[%s304 + $0x58] sm:$0xff]
      %v2756 = vld [vmem:[%s304 + $0x60] sm:$0xff]
      %v2757 = vld [vmem:[%s304 + $0x68] sm:$0xff]
      %v2758 = vld [vmem:[%s304 + $0x70] sm:$0xff]
      %v2759 = vld [vmem:[%s304 + $0x78] sm:$0xff]
      %v2760 = vld [vmem:[%s304 + $0x80] sm:$0xff]
      %v2761 = vld [vmem:[%s304 + $0x88] sm:$0xff]
      %v2762 = vld [vmem:[%s304 + $0x90] sm:$0xff]
      %v2763 = vld [vmem:[%s304 + $0x98] sm:$0xff]
      %v2764 = vld [vmem:[%s304 + $0xa0] sm:$0xff]
      %v2765 = vld [vmem:[%s304 + $0xa8] sm:$0xff]
      %v2766 = vld [vmem:[%s304 + $0xb0] sm:$0xff]
      %v2767 = vld [vmem:[%s304 + $0xb8] sm:$0xff]
      %v2768 = vld [vmem:[%s304 + $0xc0] sm:$0xff]
      %v2769 = vld [vmem:[%s304 + $0xc8] sm:$0xff]
      %v2770 = vld [vmem:[%s304 + $0xd0] sm:$0xff]
      %v2771 = vld [vmem:[%s304 + $0xd8] sm:$0xff]
      %v2772 = vld [vmem:[%s304 + $0xe0] sm:$0xff]
      %v2773 = vld [vmem:[%s304 + $0xe8] sm:$0xff]
      %v2774 = vld [vmem:[%s304 + $0xf0] sm:$0xff]
      %v2775 = vld [vmem:[%s304 + $0xf8] sm:$0xff]
      %v2776 = vld [vmem:[%s304 + $0x100] sm:$0xff]
      %v2777 = vld [vmem:[%s304 + $0x108] sm:$0xff]
      %v2778 = vld [vmem:[%s304 + $0x110] sm:$0xff]
      %v2779 = vld [vmem:[%s304 + $0x118] sm:$0xff]
      %v2780 = vld [vmem:[%s304 + $0x120] sm:$0xff]
      %v2781 = vld [vmem:[%s304 + $0x128] sm:$0xff]
      %v2782 = vld [vmem:[%s304 + $0x130] sm:$0xff]
      %v2783 = vld [vmem:[%s304 + $0x138] sm:$0xff]
      %v2784 = vld [vmem:[%s304 + $0x140] sm:$0xff]
      %v2785 = vld [vmem:[%s304 + $0x148] sm:$0xff]
      %v2786 = vld [vmem:[%s304 + $0x150] sm:$0xff]
      %v2787 = vld [vmem:[%s304 + $0x158] sm:$0xff]
      %v2788 = vld [vmem:[%s304 + $0x160] sm:$0xff]
      %v2789 = vld [vmem:[%s304 + $0x168] sm:$0xff]
      %v2790 = vld [vmem:[%s304 + $0x170] sm:$0xff]
      %v2791 = vld [vmem:[%s304 + $0x178] sm:$0xff]
      %v2792 = vld [vmem:[%s304 + $0x180] sm:$0xff]
      %v2793 = vld [vmem:[%s304 + $0x188] sm:$0xff]
      %v2794 = vld [vmem:[%s304 + $0x190] sm:$0xff]
      %v2795 = vld [vmem:[%s304 + $0x198] sm:$0xff]
      %v2796 = vld [vmem:[%s304 + $0x1a0] sm:$0xff]
      %v2797 = vld [vmem:[%s304 + $0x1a8] sm:$0xff]
      %v2798 = vld [vmem:[%s304 + $0x1b0] sm:$0xff]
      %v2799 = vld [vmem:[%s304 + $0x1b8] sm:$0xff]
      %v2800 = vld [vmem:[%s304 + $0x1c0] sm:$0xff]
      %v2801 = vld [vmem:[%s304 + $0x1c8] sm:$0xff]
      %v2802 = vld [vmem:[%s304 + $0x1d0] sm:$0xff]
      %v2803 = vld [vmem:[%s304 + $0x1d8] sm:$0xff]
      %v2804 = vld [vmem:[%s304 + $0x1e0] sm:$0xff]
      %v2805 = vld [vmem:[%s304 + $0x1e8] sm:$0xff]
      %v2806 = vld [vmem:[%s304 + $0x1f0] sm:$0xff]
      %v2807 = vld [vmem:[%s304 + $0x1f8] sm:$0xff]
      %2808 = vmatprep.subr.mxu0 %v2805
      %2809 = vmatpush1.msra.mxu0 %v2804
      %2810 = vmatprep.subr.mxu0 %v2801
      %2811 = vmatpush1.msra.mxu0 %v2800
      %2812 = vmatprep.subr.mxu0 %v2797
      %2813 = vmatpush1.msra.mxu0 %v2796
      %2814 = vmatprep.subr.mxu0 %v2793
      %2815 = vmatpush1.msra.mxu0 %v2792
      %2816 = vmatprep.subr.mxu0 %v2789
      %2817 = vmatpush1.msra.mxu0 %v2788
      %2818 = vmatprep.subr.mxu0 %v2785
      %2819 = vmatpush1.msra.mxu0 %v2784
      %2820 = vmatprep.subr.mxu0 %v2781
      %2821 = vmatpush1.msra.mxu0 %v2780
      %2822 = vmatprep.subr.mxu0 %v2777
      %2823 = vmatpush1.msra.mxu0 %v2776
      %2824 = vmatprep.subr.mxu0 %v2773
      %2825 = vmatpush1.msra.mxu0 %v2772
      %2826 = vmatprep.subr.mxu0 %v2769
      %2827 = vmatpush1.msra.mxu0 %v2768
      %2828 = vmatprep.subr.mxu0 %v2765
      %2829 = vmatpush1.msra.mxu0 %v2764
      %2830 = vmatprep.subr.mxu0 %v2761
      %2831 = vmatpush1.msra.mxu0 %v2760
      %2832 = vmatprep.subr.mxu0 %v2757
      %2833 = vmatpush1.msra.mxu0 %v2756
      %2834 = vmatprep.subr.mxu0 %v2753
      %2835 = vmatpush1.msra.mxu0 %v2752
      %2836 = vmatprep.subr.mxu0 %v2749
      %2837 = vmatpush1.msra.mxu0 %v2748
      %2838 = vmatprep.subr.mxu0 %v2745
      %2839 = vmatpush1.msra.mxu0 %v2744
      %2840 = vmatprep.subr.mxu0 0.0
      %2841 = vmatpush2.msra.mxu0 0.0
      %2842 = vmatprep.subr.mxu0 0.0
      %2843 = vmatpush2.msra.mxu0 0.0
      %2844 = vmatprep.subr.mxu0 0.0
      %2845 = vmatpush2.msra.mxu0 0.0
      %2846 = vmatprep.subr.mxu0 0.0
      %2847 = vmatpush2.msra.mxu0 0.0
      %2848 = vmatprep.subr.mxu0 0.0
      %2849 = vmatpush2.msra.mxu0 0.0
      %2850 = vmatprep.subr.mxu0 0.0
      %2851 = vmatpush2.msra.mxu0 0.0
      %2852 = vmatprep.subr.mxu0 0.0
      %2853 = vmatpush2.msra.mxu0 0.0
      %2854 = vmatprep.subr.mxu0 0.0
      %2855 = vmatpush2.msra.mxu0 0.0
      %2856 = vmatprep.subr.mxu0 0.0
      %2857 = vmatpush2.msra.mxu0 0.0
      %2858 = vmatprep.subr.mxu0 0.0
      %2859 = vmatpush2.msra.mxu0 0.0
      %2860 = vmatprep.subr.mxu0 0.0
      %2861 = vmatpush2.msra.mxu0 0.0
      %2862 = vmatprep.subr.mxu0 0.0
      %2863 = vmatpush2.msra.mxu0 0.0
      %2864 = vmatprep.subr.mxu0 0.0
      %2865 = vmatpush2.msra.mxu0 0.0
      %2866 = vmatprep.subr.mxu0 0.0
      %2867 = vmatpush2.msra.mxu0 0.0
      %2868 = vmatprep.subr.mxu0 0.0
      %2869 = vmatpush2.msra.mxu0 0.0
      %2870 = vmatprep.subr.mxu0 0.0
      %2871 = vmatpush2.msra.mxu0 0.0
      %2872 = vmatprep.mubr.f32.mxu0 0.0
      %2873 = vmatmul.mubr.f32.gmra.mxu0 %v2733
      %v2874 = vpop.f32.mrf.mxu0
      %v2875 = vadd.f32 0.0, %v2874
      %v2876 = vpop.f32.mrf.mxu0
      %v2877 = vadd.f32 0.0, %v2876
      %2878 = vdwg.mxu0
      %2879 = vmatprep.subr.mxu0 %v2807
      %2880 = vmatpush1.msra.mxu0 %v2806
      %2881 = vmatprep.subr.mxu0 %v2803
      %2882 = vmatpush1.msra.mxu0 %v2802
      %2883 = vmatprep.subr.mxu0 %v2799
      %2884 = vmatpush1.msra.mxu0 %v2798
      %2885 = vmatprep.subr.mxu0 %v2795
      %2886 = vmatpush1.msra.mxu0 %v2794
      %2887 = vmatprep.subr.mxu0 %v2791
      %2888 = vmatpush1.msra.mxu0 %v2790
      %2889 = vmatprep.subr.mxu0 %v2787
      %2890 = vmatpush1.msra.mxu0 %v2786
      %2891 = vmatprep.subr.mxu0 %v2783
      %2892 = vmatpush1.msra.mxu0 %v2782
      %2893 = vmatprep.subr.mxu0 %v2779
      %2894 = vmatpush1.msra.mxu0 %v2778
      %2895 = vmatprep.subr.mxu0 %v2775
      %2896 = vmatpush1.msra.mxu0 %v2774
      %2897 = vmatprep.subr.mxu0 %v2771
      %2898 = vmatpush1.msra.mxu0 %v2770
      %2899 = vmatprep.subr.mxu0 %v2767
      %2900 = vmatpush1.msra.mxu0 %v2766
      %2901 = vmatprep.subr.mxu0 %v2763
      %2902 = vmatpush1.msra.mxu0 %v2762
      %2903 = vmatprep.subr.mxu0 %v2759
      %2904 = vmatpush1.msra.mxu0 %v2758
      %2905 = vmatprep.subr.mxu0 %v2755
      %2906 = vmatpush1.msra.mxu0 %v2754
      %2907 = vmatprep.subr.mxu0 %v2751
      %2908 = vmatpush1.msra.mxu0 %v2750
      %2909 = vmatprep.subr.mxu0 %v2747
      %2910 = vmatpush1.msra.mxu0 %v2746
      %2911 = vmatprep.subr.mxu0 0.0
      %2912 = vmatpush2.msra.mxu0 0.0
      %2913 = vmatprep.subr.mxu0 0.0
      %2914 = vmatpush2.msra.mxu0 0.0
      %2915 = vmatprep.subr.mxu0 0.0
      %2916 = vmatpush2.msra.mxu0 0.0
      %2917 = vmatprep.subr.mxu0 0.0
      %2918 = vmatpush2.msra.mxu0 0.0
      %2919 = vmatprep.subr.mxu0 0.0
      %2920 = vmatpush2.msra.mxu0 0.0
      %2921 = vmatprep.subr.mxu0 0.0
      %2922 = vmatpush2.msra.mxu0 0.0
      %2923 = vmatprep.subr.mxu0 0.0
      %2924 = vmatpush2.msra.mxu0 0.0
      %2925 = vmatprep.subr.mxu0 0.0
      %2926 = vmatpush2.msra.mxu0 0.0
      %2927 = vmatprep.subr.mxu0 0.0
      %2928 = vmatpush2.msra.mxu0 0.0
      %2929 = vmatprep.subr.mxu0 0.0
      %2930 = vmatpush2.msra.mxu0 0.0
      %2931 = vmatprep.subr.mxu0 0.0
      %2932 = vmatpush2.msra.mxu0 0.0
      %2933 = vmatprep.subr.mxu0 0.0
      %2934 = vmatpush2.msra.mxu0 0.0
      %2935 = vmatprep.subr.mxu0 0.0
      %2936 = vmatpush2.msra.mxu0 0.0
      %2937 = vmatprep.subr.mxu0 0.0
      %2938 = vmatpush2.msra.mxu0 0.0
      %2939 = vmatprep.subr.mxu0 0.0
      %2940 = vmatpush2.msra.mxu0 0.0
      %2941 = vmatprep.subr.mxu0 0.0
      %2942 = vmatpush2.msra.mxu0 0.0
      %2943 = vmatprep.mubr.f32.mxu0 0.0
      %2944 = vmatmul.mubr.f32.gmra.mxu0 %v2733
      %v2945 = vpop.f32.mrf.mxu0
      %v2946 = vadd.f32 0.0, %v2945
      %v2947 = vpop.f32.mrf.mxu0
      %v2948 = vadd.f32 0.0, %v2947
      %2949 = vdwg.mxu0
      %v2950 = vadd.f32 %v2740, %v2875
      %v2951 = vadd.f32 %v2741, %v2877
      %v2952 = vadd.f32 %v2742, %v2946
      %v2953 = vadd.f32 %v2743, %v2948
      %v2954 = vxor.u32 %v2950, 2147483648
      %v2955 = vmul.f32 %v2954, 1.442695
      %v2956 = vpow.pop %v2955
      %v2957 = vadd.f32 %v2956, 1.0
      %v2958 = vrcp.pop %v2957
      %v2959 = vmul.f32 1.0, %v2958
      %v2960 = vxor.u32 %v2951, 2147483648
      %v2961 = vmul.f32 %v2960, 1.442695
      %v2962 = vpow.pop %v2961
      %v2963 = vadd.f32 %v2962, 1.0
      %v2964 = vrcp.pop %v2963
      %v2965 = vmul.f32 1.0, %v2964
      %v2966 = vtanh.pop %v2952
      %v2967 = vxor.u32 %v2953, 2147483648
      %v2968 = vmul.f32 %v2967, 1.442695
      %v2969 = vpow.pop %v2968
      %v2970 = vadd.f32 %v2969, 1.0
      %v2971 = vrcp.pop %v2970
      %v2972 = vmul.f32 1.0, %v2971
      %v2973 = vmul.f32 %v2965, %v2734
      %v2974 = vmul.f32 %v2959, %v2966
      %v2975 = vadd.f32 %v2973, %v2974
      %v2976 = vtanh.pop %v2975
      %v2977 = vmul.f32 %v2972, %v2976
      %v2978 = vstv %s2736
      %vm2979 = vcmp.lt.s32.totalorder %v2978, %v341
      %v2980 = vsel %vm2979, 1, 0
      %2981 = vset.pattern.permute.xlu0 0
      %2982 = vperm.xlu0 %2981, %v2980
      %v2983 = vpop.permute.xlu0 %2982
      %vm2984 = vcmp.eq.s32.totalorder %v2983, 1
      %v2985 = vsel %vm2984, %v2977, 0.0
      %v2986 = vld [vmem:[%s309] sm:$0xff]
      %v2987 = vld [vmem:[%s309 + $0x8] sm:$0xff]
      %v2988 = vld [vmem:[%s309 + $0x10] sm:$0xff]
      %v2989 = vld [vmem:[%s309 + $0x18] sm:$0xff]
      %v2990 = vld [vmem:[%s309 + $0x20] sm:$0xff]
      %v2991 = vld [vmem:[%s309 + $0x28] sm:$0xff]
      %v2992 = vld [vmem:[%s309 + $0x30] sm:$0xff]
      %v2993 = vld [vmem:[%s309 + $0x38] sm:$0xff]
      %v2994 = vld [vmem:[%s309 + $0x40] sm:$0xff]
      %v2995 = vld [vmem:[%s309 + $0x48] sm:$0xff]
      %v2996 = vld [vmem:[%s309 + $0x50] sm:$0xff]
      %v2997 = vld [vmem:[%s309 + $0x58] sm:$0xff]
      %v2998 = vld [vmem:[%s309 + $0x60] sm:$0xff]
      %v2999 = vld [vmem:[%s309 + $0x68] sm:$0xff]
      %v3000 = vld [vmem:[%s309 + $0x70] sm:$0xff]
      %v3001 = vld [vmem:[%s309 + $0x78] sm:$0xff]
      %3002 = vmatprep.subr.mxu0 0.0
      %3003 = vmatpush1.msra.mxu0 %v3001
      %3004 = vmatprep.subr.mxu0 0.0
      %3005 = vmatpush1.msra.mxu0 %v3000
      %3006 = vmatprep.subr.mxu0 0.0
      %3007 = vmatpush1.msra.mxu0 %v2999
      %3008 = vmatprep.subr.mxu0 0.0
      %3009 = vmatpush1.msra.mxu0 %v2998
      %3010 = vmatprep.subr.mxu0 0.0
      %3011 = vmatpush1.msra.mxu0 %v2997
      %3012 = vmatprep.subr.mxu0 0.0
      %3013 = vmatpush1.msra.mxu0 %v2996
      %3014 = vmatprep.subr.mxu0 0.0
      %3015 = vmatpush1.msra.mxu0 %v2995
      %3016 = vmatprep.subr.mxu0 0.0
      %3017 = vmatpush1.msra.mxu0 %v2994
      %3018 = vmatprep.subr.mxu0 0.0
      %3019 = vmatpush1.msra.mxu0 %v2993
      %3020 = vmatprep.subr.mxu0 0.0
      %3021 = vmatpush1.msra.mxu0 %v2992
      %3022 = vmatprep.subr.mxu0 0.0
      %3023 = vmatpush1.msra.mxu0 %v2991
      %3024 = vmatprep.subr.mxu0 0.0
      %3025 = vmatpush1.msra.mxu0 %v2990
      %3026 = vmatprep.subr.mxu0 0.0
      %3027 = vmatpush1.msra.mxu0 %v2989
      %3028 = vmatprep.subr.mxu0 0.0
      %3029 = vmatpush1.msra.mxu0 %v2988
      %3030 = vmatprep.subr.mxu0 0.0
      %3031 = vmatpush1.msra.mxu0 %v2987
      %3032 = vmatprep.subr.mxu0 0.0
      %3033 = vmatpush1.msra.mxu0 %v2986
      %3034 = vmatprep.subr.mxu0 0.0
      %3035 = vmatpush2.msra.mxu0 0.0
      %3036 = vmatprep.subr.mxu0 0.0
      %3037 = vmatpush2.msra.mxu0 0.0
      %3038 = vmatprep.subr.mxu0 0.0
      %3039 = vmatpush2.msra.mxu0 0.0
      %3040 = vmatprep.subr.mxu0 0.0
      %3041 = vmatpush2.msra.mxu0 0.0
      %3042 = vmatprep.subr.mxu0 0.0
      %3043 = vmatpush2.msra.mxu0 0.0
      %3044 = vmatprep.subr.mxu0 0.0
      %3045 = vmatpush2.msra.mxu0 0.0
      %3046 = vmatprep.subr.mxu0 0.0
      %3047 = vmatpush2.msra.mxu0 0.0
      %3048 = vmatprep.subr.mxu0 0.0
      %3049 = vmatpush2.msra.mxu0 0.0
      %3050 = vmatprep.subr.mxu0 0.0
      %3051 = vmatpush2.msra.mxu0 0.0
      %3052 = vmatprep.subr.mxu0 0.0
      %3053 = vmatpush2.msra.mxu0 0.0
      %3054 = vmatprep.subr.mxu0 0.0
      %3055 = vmatpush2.msra.mxu0 0.0
      %3056 = vmatprep.subr.mxu0 0.0
      %3057 = vmatpush2.msra.mxu0 0.0
      %3058 = vmatprep.subr.mxu0 0.0
      %3059 = vmatpush2.msra.mxu0 0.0
      %3060 = vmatprep.subr.mxu0 0.0
      %3061 = vmatpush2.msra.mxu0 0.0
      %3062 = vmatprep.subr.mxu0 0.0
      %3063 = vmatpush2.msra.mxu0 0.0
      %3064 = vmatprep.subr.mxu0 0.0
      %3065 = vmatpush2.msra.mxu0 0.0
      %3066 = vmatprep.mubr.f32.mxu0 0.0
      %3067 = vmatmul.mubr.f32.gmra.mxu0 %v2985
      %v3068 = vpop.f32.mrf.mxu0
      %v3069 = vadd.f32 0.0, %v3068
      %v3070 = vpop.f32.mrf.mxu0
      %3071 = vdwg.mxu0
      %s3072 = smul.u32 %s2736, 8
      %s3073 = scalar_lea.vmem %s322, %s3072
      %3074 = vst [vmem:[%s3073] sm:$0xff] %v3069
      %v3075 = vsel %vm2984, %v2977, %v2733
      %v3076 = vsel %vm2984, %v2975, %v2734
      %3077 = vst [vmem:[#allocation2] sm:$0xff] %v3075
      %3078 = vst [vmem:[#allocation3] sm:$0xff] %v3076
      %s3079 = smul.u32 %s20, 2
      %s3080 = ssub.s32 0, %s3079
      %s3081 = smul.u32 %s19, %s3080
      %s3082 = sadd.s32 %s20, %s3081
      %s3083 = smul.u32 8, %s3082
      %p3084 = scmp.lt.s32.totalorder %s19, 1
      %s3085 = scalar_select %p3084, %s19, 1
      %p3086 = scmp.lt.s32.totalorder %s3083, 7
      %s3087 = scalar_select %p3086, %s3083, 7
      %s3088 = smul.addr %s3085, 8
      %s3089 = sadd.s32 %s3087, %s3088
      %s3090 = smul.addr %s3089, 8
      %s3091 = scalar_lea.vmem %s4, %s3090
      // Predicated region
      $region41: #{bilstmp_forward.3} parent=35 // pred_check
        %p3092 = pneg %p164
      $region42: #{bilstmp_forward.3} parent=35 // pred_check_branch
        %3094 = sbr.rel (%p3092) target = $region44
      $region43: #{bilstmp_forward.3} parent=35 // pred_region
        %s3095 = smul.u32 %s20, 2
        %s3096 = ssub.s32 0, %s3095
        %s3097 = smul.u32 %s19, %s3096
        %s3098 = sadd.s32 %s20, %s3097
        %s3099 = smul.u32 8, %s3098
      $region44: #{bilstmp_forward.3} parent=35 // pred_fallthru
        _
    $region36: #{bilstmp_forward.3} parent=5 // pred_fallthru
      _
    %p3100 = scmp.le.s32.totalorder 2, %s10
    // Predicated region
    $region45: #{bilstmp_forward.3} parent=5 // pred_check
      %p3101 = pneg %p3100
    $region46: #{bilstmp_forward.3} parent=5 // pred_check_branch
      %3103 = sbr.rel (%p3101) target = $region48
    $region47: #{bilstmp_forward.3} parent=5 // pred_region
      %s3104 = ssub.s32 %s10, 2
      // Predicated region
      $region49: #{bilstmp_forward.3} parent=47 // pred_check
        %p3105 = pneg %p170
      $region50: #{bilstmp_forward.3} parent=47 // pred_check_branch
        %3107 = sbr.rel (%p3105) target = $region52
      $region51: #{bilstmp_forward.3} parent=47 // pred_region
        %s3108 = smul.u32 %s22, 2
        %s3109 = ssub.s32 0, %s3108
        %s3110 = smul.u32 %s21, %s3109
        %s3111 = sadd.s32 %s22, %s3110
        %s3112 = smul.u32 8, %s3111
        %p3113 = scmp.lt.s32.totalorder %s21, 1
        %s3114 = scalar_select %p3113, %s21, 1
        %p3115 = scmp.lt.s32.totalorder %s3112, 7
        %s3116 = scalar_select %p3115, %s3112, 7
        %s3117 = smul.addr %s3114, 8
        %s3118 = sadd.s32 %s3116, %s3117
        %s3119 = smul.addr %s3118, 8
        %s3120 = scalar_lea.vmem %s4, %s3119
      $region52: #{bilstmp_forward.3} parent=47 // pred_fallthru
        _
    $region48: #{bilstmp_forward.3} parent=5 // pred_fallthru
      _
  $region6: #{bilstmp_forward.3} parent=0 // loop_footer
    %s14 = sadd.s32 1, %s10
  $region7: #{bilstmp_forward.3} parent=0 // loop_footer_branch
    %9 = sbr.rel target = $region3
  $region8: #{bilstmp_forward.3} parent=0 // loop_exit
    _

</llo_original>
